<compile_context>
chip_gen: v7x
topology: tpu7x:2x2x1
jax: 0.10.0
libtpu: 0.0.40
codegen_flags: <defaults>
</compile_context>

<pallas_src>
import functools
import math

import jax
import jax.numpy as jnp
from jax import lax
from jax.experimental import pallas as pl
from jax.experimental.pallas import tpu as pltpu


_PARAM_ORDER = ("w1", "w1t", "b1", "w2blk", "w2tblk",
                "m0w", "m0b", "m1w", "m1b", "m2w", "m2b")

_CHUNK = 512          # lanes per inner compute chunk (multiple of 128)
_MAX_CHUNKS = 8       # cap on unrolled chunks per grid step (bounds code size)


def _elu(v):
    # ELU(alpha=1); clamp before exp so the unselected branch never overflows.
    return jnp.where(v > 0, v, jnp.exp(jnp.minimum(v, 0.0)) - 1.0)


def _fma_matmul(w, act, bias=None):
    """w @ act via unrolled VPU FMAs (weight-column outer products).

    w: (R, K) weights, act: (K, CH) activations with batch on lanes.
    K is tiny (2..8), so the MXU would be >90% idle; K broadcast
    multiply-adds on full-lane vregs are cheap, exact f32, and skip MXU latency.
    """
    k_dim = w.shape[1]
    acc = w[:, 0:1] * act[0:1, :]
    for k in range(1, k_dim):
        acc = acc + w[:, k:k + 1] * act[k:k + 1, :]
    if bias is not None:
        acc = acc + bias
    return acc


def _chev_kernel(x_ref,
                 w1_ref, w1t_ref, b1_ref, w2blk_ref, w2tblk_ref,
                 m0w_ref, m0b_ref, m1w_ref, m1b_ref, m2w_ref, m2b_ref,
                 out_ref, *, n_chunks):
    # Weights are tiny and grid-resident: load once per tile (hoisted out of
    # the chunk loop; JAX does not CSE broadcasts inside loops).
    w1 = w1_ref[...]                      # (V*P, D)
    w1t = w1t_ref[...]                    # (D, V*P)   pre-scaled by 2/n_V
    b1 = b1_ref[...]                      # (V*P, 1)
    w2blk = w2blk_ref[...]                # (V*P, P)   rows i*P..: W2_i
    w2tblk = w2tblk_ref[...]              # (V*P, P)   rows i*P..: W2_i^T diag(w3_i)
    m0w, m0b = m0w_ref[...], m0b_ref[...]
    m1w, m1b = m1w_ref[...], m1b_ref[...]
    m2w, m2b = m2w_ref[...], m2b_ref[...]

    p = w2blk.shape[1]
    n_v = w2blk.shape[0] // p
    ch = out_ref.shape[-1]
    row_idx = lax.broadcasted_iota(jnp.int32, (2, ch), 0)   # hoisted out of loop

    # Fully unrolled chunk loop: offsets are compile-time constants, so every
    # slice/store below is static.  n_chunks is small (<= _MAX_CHUNKS).
    for c in range(n_chunks):
        x = x_ref[c]                                          # (2, CH)

        # ---- total_grad: per-potential (P x P) chains (block-diag W2) -------
        h1 = _fma_matmul(w1, x, b1)                           # (V*P, CH)
        grad = None
        for i in range(n_v):
            sl = slice(i * p, (i + 1) * p)
            h1i = h1[sl, :]                                   # (P, CH)
            f2i = jnp.exp(_fma_matmul(w2blk[sl, :], h1i * h1i))
            ti = _fma_matmul(w2tblk[sl, :], f2i)              # w3 already folded in
            gi = _fma_matmul(w1t[:, sl], ti * h1i)            # 2/n_V already folded in
            grad = gi if grad is None else grad + gi          # (2, CH)

        # ---- metric MLP: Linear -> ELU -> Linear -> ELU -> Linear -----------
        m0 = _elu(_fma_matmul(m0w, x, m0b))                   # (M, CH)
        m1 = _elu(_fma_matmul(m1w, m0, m1b))                  # (M, CH)
        a = _fma_matmul(m2w, m1, m2b)                         # (4, CH)

        # chev = A @ A^T for A = [[a0, a1], [a2, a3]] (per sample, symmetric)
        a00, a01, a10, a11 = a[0:1, :], a[1:2, :], a[2:3, :], a[3:4, :]
        c00 = a00 * a00 + a01 * a01
        c01 = a00 * a10 + a01 * a11
        c11 = a10 * a10 + a11 * a11

        g0, g1 = grad[0:1, :], grad[1:2, :]
        top = c00 * g0 + c01 * g1
        bot = c01 * g0 + c11 * g1
        # Single full-tile (2, CH) lane-dense store (no masked sub-row stores).
        out_ref[c] = jnp.where(row_idx == 0, top, bot)


def chev_forward(x, kp, *, block_b=4096):
    """Forward pass.  x: (B, 2) float32 -> (B, 2) float32."""
    B, D = x.shape
    assert D == 2, "metric is a hard-coded 2x2 field; kernel specialized to dim=2"

    # ---- tiling: CHUNK-lane compute chunks, chunks_per_tile chunks per step --
    n_chunks_total = -(-B // _CHUNK)
    cpt = max(1, int(block_b) // _CHUNK)          # chunks per grid step
    cpt = min(cpt, n_chunks_total, _MAX_CHUNKS)
    # v7x megacore: keep >= 2 grid steps when there is enough work so
    # dimension_semantics=("parallel",) can split the batch over both cores.
    if n_chunks_total >= 2 and cpt >= n_chunks_total:
        cpt = -(-n_chunks_total // 2)
    n_tiles = -(-n_chunks_total // cpt)
    n_chunks_pad = n_tiles * cpt
    b_pad = n_chunks_pad * _CHUNK

    # Layout plumbing: batch -> lanes; chunk index on a leading (untiled) axis.
    xt = jnp.zeros((D, b_pad), jnp.float32).at[:, :B].set(x.T)
    x3 = xt.reshape(D, n_chunks_pad, _CHUNK).transpose(1, 0, 2)   # (nc, 2, CHUNK)

    weights = [kp[name] for name in _PARAM_ORDER]

    vp = kp["w1"].shape[0]                 # n_V * nhidden_P
    p = kp["w2blk"].shape[1]               # nhidden_P
    m = kp["m0w"].shape[0]                 # nhidden_M
    flops_per_col = (2 * vp * D + 3 * vp + 4 * vp * p + 2 * D * vp
                     + 2 * m * D + 2 * m * m + 2 * 4 * m + 8 * m + 40)
    weight_bytes = sum(int(w.size) * 4 for w in weights)
    cost = pl.CostEstimate(
        flops=int(b_pad * flops_per_col),
        transcendentals=int(b_pad * (vp + 2 * m)),
        bytes_accessed=int(b_pad * (D + 2) * 4 + weight_bytes),
    )

    grid = (n_tiles,)
    x_spec = pl.BlockSpec((cpt, D, _CHUNK), lambda i: (i, 0, 0))
    w_specs = [pl.BlockSpec(w.shape, lambda i: (0, 0)) for w in weights]
    out_spec = pl.BlockSpec((cpt, 2, _CHUNK), lambda i: (i, 0, 0))

    out3 = pl.pallas_call(
        functools.partial(_chev_kernel, n_chunks=cpt),
        out_shape=jax.ShapeDtypeStruct((n_chunks_pad, 2, _CHUNK), jnp.float32),
        grid=grid,
        in_specs=[x_spec] + w_specs,
        out_specs=out_spec,
        compiler_params=pltpu.CompilerParams(
            dimension_semantics=("parallel",)),
        cost_estimate=cost,
    )(x3, *weights)

    out_t = out3.transpose(1, 0, 2).reshape(2, b_pad)
    return out_t[:, :B].T


# ----------------------------------------------------------------------------
# Parameter construction (PyTorch nn.Linear-style init) + kernel packing.
# ----------------------------------------------------------------------------
def make_raw_params(key, dim=2, nhidden_M=8, nhidden_P=8, n_V=2, nlayer_M=1):
    assert nlayer_M == 1, "packing assumes the default nlayer_M=1"

    def linear(k, out_f, in_f, bias=True):
        k1, k2 = jax.random.split(k)
        bound = 1.0 / math.sqrt(in_f)
        w = jax.random.uniform(k1, (out_f, in_f), jnp.float32, -bound, bound)
        b = (jax.random.uniform(k2, (out_f,), jnp.float32, -bound, bound)
             if bias else None)
        return w, b

    keys = jax.random.split(key, 3 + 3 * n_V)
    M0, c0 = linear(keys[0], nhidden_M, dim)
    M1, c1 = linear(keys[1], nhidden_M, nhidden_M)
    M2, c2 = linear(keys[2], 4, nhidden_M)

    w1s, b1s, w2s, w3s = [], [], [], []
    for i in range(n_V):
        W1, b1 = linear(keys[3 + 3 * i + 0], nhidden_P, dim)
        W2, _ = linear(keys[3 + 3 * i + 1], nhidden_P, nhidden_P, bias=False)
        W3, _ = linear(keys[3 + 3 * i + 2], 1, nhidden_P, bias=False)
        w1s.append(W1)
        b1s.append(b1)
        w2s.append(W2)
        w3s.append(W3)

    return {
        "W1": jnp.stack(w1s),          # (V, P, D)
        "b1": jnp.stack(b1s),          # (V, P)
        "W2": jnp.stack(w2s),          # (V, P, P)
        "W3": jnp.stack(w3s),          # (V, 1, P)
        "M0": M0, "c0": c0, "M1": M1, "c1": c1, "M2": M2, "c2": c2,
    }


def pack_params(raw):
    """Pack raw per-potential weights into the stacked kernel layout.

    Folds performed here (exact algebra, zero in-kernel cost):
      * w2tblk_i = W2_i^T * diag(w3_i)   -> kernel does t_i = w2tblk_i @ exp(.)
      * w1t      = (2 / n_V) * W1_stacked^T -> kernel does grad = sum_i w1t_i @ (t_i*h1_i)
    """
    W1, b1, W2, W3 = raw["W1"], raw["b1"], raw["W2"], raw["W3"]
    V, P, D = W1.shape
    w1s = W1.reshape(V * P, D)
    w2blk = W2.reshape(V * P, P)                                   # rows i*P..: W2_i
    w2tblk = jnp.concatenate([W2[i].T * W3[i] for i in range(V)], axis=0)
    return {
        "w1": w1s,                          # (V*P, D)
        "w1t": w1s.T * (2.0 / V),           # (D, V*P) — folds 2*h1 and 1/n_V
        "b1": b1.reshape(V * P, 1),         # (V*P, 1)
        "w2blk": w2blk,                     # (V*P, P)
        "w2tblk": w2tblk,                   # (V*P, P) — folds w3 column scaling
        "m0w": raw["M0"], "m0b": raw["c0"][:, None],
        "m1w": raw["M1"], "m1b": raw["c1"][:, None],
        "m2w": raw["M2"], "m2b": raw["c2"][:, None],
    }


# ----------------------------------------------------------------------------
# Pure-JAX reference mirroring the PyTorch forward (uses raw, un-packed weights).
# ----------------------------------------------------------------------------
def ref_forward(x, raw):
    V = raw["W1"].shape[0]
    grad = jnp.zeros_like(x)
    for i in range(V):
        W1, b1, W2, W3 = raw["W1"][i], raw["b1"][i], raw["W2"][i], raw["W3"][i]
        h1 = x @ W1.T + b1
        f2 = jnp.exp((h1 * h1) @ W2.T)
        t = (W3 * f2) @ W2
        grad = grad + (t * (2.0 * h1)) @ W1
    grad = grad / V

    m0 = _elu(x @ raw["M0"].T + raw["c0"])
    m1 = _elu(m0 @ raw["M1"].T + raw["c1"])
    a = (m1 @ raw["M2"].T + raw["c2"]).reshape(-1, 2, 2)
    mag = jnp.einsum("bij,bkj->bik", a, a)            # A @ A^T
    return jnp.einsum("bij,bj->bi", mag, grad)        # (B, 2)


if __name__ == "__main__":
    key = jax.random.PRNGKey(0)
    k_x, k_p = jax.random.split(key)
    raw = make_raw_params(k_p, dim=2, nhidden_M=8, nhidden_P=8, n_V=2, nlayer_M=1)
    kp = pack_params(raw)

    # B=1000: pads to 2 chunks -> grid of 2 (v7x megacore split), 1 chunk/step.
    # B=3000: pads to 8 chunks -> grid of 2, 4-chunk unrolled inner loop.
    # TODO(synk): exp((h1*h1)@W2^T) can overflow for large |x|; inherited from the reference.
    for B in (1000, 3000):
        x = 0.5 * jax.random.normal(jax.random.fold_in(k_x, B), (B, 2), jnp.float32)
        out = jax.block_until_ready(chev_forward(x, kp))
        ref = jax.block_until_ready(ref_forward(x, raw))
        assert out.shape == (B, 2)
        assert bool(jnp.all(jnp.isfinite(out)))
        max_err = float(jnp.max(jnp.abs(out - ref)))
        assert jnp.allclose(out, ref, rtol=1e-4, atol=1e-4), (B, max_err)

    print("KERNEL_OK")
</pallas_src>

<mosaic_0001>
module attributes {stable_mosaic.version = 11 : i64} {
  func.func @_chev_kernel(%arg0: i32, %arg1: memref<1x2x512xf32, #tpu.memory_space<vmem>>, %arg2: memref<16x2xf32, #tpu.memory_space<vmem>>, %arg3: memref<2x16xf32, #tpu.memory_space<vmem>>, %arg4: memref<16x1xf32, #tpu.memory_space<vmem>>, %arg5: memref<16x8xf32, #tpu.memory_space<vmem>>, %arg6: memref<16x8xf32, #tpu.memory_space<vmem>>, %arg7: memref<8x2xf32, #tpu.memory_space<vmem>>, %arg8: memref<8x1xf32, #tpu.memory_space<vmem>>, %arg9: memref<8x8xf32, #tpu.memory_space<vmem>>, %arg10: memref<8x1xf32, #tpu.memory_space<vmem>>, %arg11: memref<4x8xf32, #tpu.memory_space<vmem>>, %arg12: memref<4x1xf32, #tpu.memory_space<vmem>>, %arg13: memref<1x2x512xf32, #tpu.memory_space<vmem>>) attributes {dimension_semantics = [#tpu.dimension_semantics<parallel>], iteration_bounds = array<i64: 2>, scalar_prefetch = 0 : i64, scratch_operands = 0 : i64, tpu.core_type = #tpu.core_type<tc>, window_params = [{transform_indices = @transform_0, window_bounds = array<i64: 1, 2, 512>}, {pipeline_mode = #tpu.pipeline_mode<synchronous>, transform_indices = @transform_1, window_bounds = array<i64: 16, 2>}, {pipeline_mode = #tpu.pipeline_mode<synchronous>, transform_indices = @transform_2, window_bounds = array<i64: 2, 16>}, {pipeline_mode = #tpu.pipeline_mode<synchronous>, transform_indices = @transform_3, window_bounds = array<i64: 16, 1>}, {pipeline_mode = #tpu.pipeline_mode<synchronous>, transform_indices = @transform_4, window_bounds = array<i64: 16, 8>}, {pipeline_mode = #tpu.pipeline_mode<synchronous>, transform_indices = @transform_5, window_bounds = array<i64: 16, 8>}, {pipeline_mode = #tpu.pipeline_mode<synchronous>, transform_indices = @transform_6, window_bounds = array<i64: 8, 2>}, {pipeline_mode = #tpu.pipeline_mode<synchronous>, transform_indices = @transform_7, window_bounds = array<i64: 8, 1>}, {pipeline_mode = #tpu.pipeline_mode<synchronous>, transform_indices = @transform_8, window_bounds = array<i64: 8, 8>}, {pipeline_mode = #tpu.pipeline_mode<synchronous>, transform_indices = @transform_9, window_bounds = array<i64: 8, 1>}, {pipeline_mode = #tpu.pipeline_mode<synchronous>, transform_indices = @transform_10, window_bounds = array<i64: 4, 8>}, {pipeline_mode = #tpu.pipeline_mode<synchronous>, transform_indices = @transform_11, window_bounds = array<i64: 4, 1>}, {transform_indices = @transform_12, window_bounds = array<i64: 1, 2, 512>}]} {
    %c0 = arith.constant 0 : index
    %c0_0 = arith.constant 0 : index
    %0 = vector.load %arg2[%c0, %c0_0] : memref<16x2xf32, #tpu.memory_space<vmem>>, vector<16x2xf32>
    %c0_1 = arith.constant 0 : index
    %c0_2 = arith.constant 0 : index
    %1 = vector.load %arg3[%c0_1, %c0_2] : memref<2x16xf32, #tpu.memory_space<vmem>>, vector<2x16xf32>
    %c0_3 = arith.constant 0 : index
    %c0_4 = arith.constant 0 : index
    %2 = vector.load %arg4[%c0_3, %c0_4] : memref<16x1xf32, #tpu.memory_space<vmem>>, vector<16x1xf32>
    %c0_5 = arith.constant 0 : index
    %c0_6 = arith.constant 0 : index
    %3 = vector.load %arg5[%c0_5, %c0_6] : memref<16x8xf32, #tpu.memory_space<vmem>>, vector<16x8xf32>
    %c0_7 = arith.constant 0 : index
    %c0_8 = arith.constant 0 : index
    %4 = vector.load %arg6[%c0_7, %c0_8] : memref<16x8xf32, #tpu.memory_space<vmem>>, vector<16x8xf32>
    %c0_9 = arith.constant 0 : index
    %c0_10 = arith.constant 0 : index
    %5 = vector.load %arg7[%c0_9, %c0_10] : memref<8x2xf32, #tpu.memory_space<vmem>>, vector<8x2xf32>
    %c0_11 = arith.constant 0 : index
    %c0_12 = arith.constant 0 : index
    %6 = vector.load %arg8[%c0_11, %c0_12] : memref<8x1xf32, #tpu.memory_space<vmem>>, vector<8x1xf32>
    %c0_13 = arith.constant 0 : index
    %c0_14 = arith.constant 0 : index
    %7 = vector.load %arg9[%c0_13, %c0_14] : memref<8x8xf32, #tpu.memory_space<vmem>>, vector<8x8xf32>
    %c0_15 = arith.constant 0 : index
    %c0_16 = arith.constant 0 : index
    %8 = vector.load %arg10[%c0_15, %c0_16] : memref<8x1xf32, #tpu.memory_space<vmem>>, vector<8x1xf32>
    %c0_17 = arith.constant 0 : index
    %c0_18 = arith.constant 0 : index
    %9 = vector.load %arg11[%c0_17, %c0_18] : memref<4x8xf32, #tpu.memory_space<vmem>>, vector<4x8xf32>
    %c0_19 = arith.constant 0 : index
    %c0_20 = arith.constant 0 : index
    %10 = vector.load %arg12[%c0_19, %c0_20] : memref<4x1xf32, #tpu.memory_space<vmem>>, vector<4x1xf32>
    %11 = tpu.iota {dimensions = array<i32: 0>} : vector<2x512xi32>
    %c0_21 = arith.constant 0 : index
    %c0_22 = arith.constant 0 : index
    %c0_23 = arith.constant 0 : index
    %12 = vector.load %arg1[%c0_21, %c0_22, %c0_23] : memref<1x2x512xf32, #tpu.memory_space<vmem>>, vector<1x2x512xf32>
    %13 = vector.shape_cast %12 : vector<1x2x512xf32> to vector<2x512xf32>
    %14 = vector.extract_strided_slice %0 {offsets = [0, 0], sizes = [16, 1], strides = [1, 1]} : vector<16x2xf32> to vector<16x1xf32>
    %15 = vector.extract_strided_slice %13 {offsets = [0, 0], sizes = [1, 512], strides = [1, 1]} : vector<2x512xf32> to vector<1x512xf32>
    %16 = vector.broadcast %14 : vector<16x1xf32> to vector<16x512xf32>
    %17 = vector.broadcast %15 : vector<1x512xf32> to vector<16x512xf32>
    %18 = arith.mulf %16, %17 : vector<16x512xf32>
    %19 = vector.extract_strided_slice %0 {offsets = [0, 1], sizes = [16, 1], strides = [1, 1]} : vector<16x2xf32> to vector<16x1xf32>
    %20 = vector.extract_strided_slice %13 {offsets = [1, 0], sizes = [1, 512], strides = [1, 1]} : vector<2x512xf32> to vector<1x512xf32>
    %21 = vector.broadcast %19 : vector<16x1xf32> to vector<16x512xf32>
    %22 = vector.broadcast %20 : vector<1x512xf32> to vector<16x512xf32>
    %23 = arith.mulf %21, %22 : vector<16x512xf32>
    %24 = arith.addf %18, %23 : vector<16x512xf32>
    %25 = vector.broadcast %2 : vector<16x1xf32> to vector<16x512xf32>
    %26 = arith.addf %24, %25 : vector<16x512xf32>
    %27 = vector.extract_strided_slice %26 {offsets = [0, 0], sizes = [8, 512], strides = [1, 1]} : vector<16x512xf32> to vector<8x512xf32>
    %28 = vector.extract_strided_slice %3 {offsets = [0, 0], sizes = [8, 8], strides = [1, 1]} : vector<16x8xf32> to vector<8x8xf32>
    %29 = arith.mulf %27, %27 : vector<8x512xf32>
    %30 = vector.extract_strided_slice %28 {offsets = [0, 0], sizes = [8, 1], strides = [1, 1]} : vector<8x8xf32> to vector<8x1xf32>
    %31 = vector.extract_strided_slice %29 {offsets = [0, 0], sizes = [1, 512], strides = [1, 1]} : vector<8x512xf32> to vector<1x512xf32>
    %32 = vector.broadcast %30 : vector<8x1xf32> to vector<8x512xf32>
    %33 = vector.broadcast %31 : vector<1x512xf32> to vector<8x512xf32>
    %34 = arith.mulf %32, %33 : vector<8x512xf32>
    %35 = vector.extract_strided_slice %28 {offsets = [0, 1], sizes = [8, 1], strides = [1, 1]} : vector<8x8xf32> to vector<8x1xf32>
    %36 = vector.extract_strided_slice %29 {offsets = [1, 0], sizes = [1, 512], strides = [1, 1]} : vector<8x512xf32> to vector<1x512xf32>
    %37 = vector.broadcast %35 : vector<8x1xf32> to vector<8x512xf32>
    %38 = vector.broadcast %36 : vector<1x512xf32> to vector<8x512xf32>
    %39 = arith.mulf %37, %38 : vector<8x512xf32>
    %40 = arith.addf %34, %39 : vector<8x512xf32>
    %41 = vector.extract_strided_slice %28 {offsets = [0, 2], sizes = [8, 1], strides = [1, 1]} : vector<8x8xf32> to vector<8x1xf32>
    %42 = vector.extract_strided_slice %29 {offsets = [2, 0], sizes = [1, 512], strides = [1, 1]} : vector<8x512xf32> to vector<1x512xf32>
    %43 = vector.broadcast %41 : vector<8x1xf32> to vector<8x512xf32>
    %44 = vector.broadcast %42 : vector<1x512xf32> to vector<8x512xf32>
    %45 = arith.mulf %43, %44 : vector<8x512xf32>
    %46 = arith.addf %40, %45 : vector<8x512xf32>
    %47 = vector.extract_strided_slice %28 {offsets = [0, 3], sizes = [8, 1], strides = [1, 1]} : vector<8x8xf32> to vector<8x1xf32>
    %48 = vector.extract_strided_slice %29 {offsets = [3, 0], sizes = [1, 512], strides = [1, 1]} : vector<8x512xf32> to vector<1x512xf32>
    %49 = vector.broadcast %47 : vector<8x1xf32> to vector<8x512xf32>
    %50 = vector.broadcast %48 : vector<1x512xf32> to vector<8x512xf32>
    %51 = arith.mulf %49, %50 : vector<8x512xf32>
    %52 = arith.addf %46, %51 : vector<8x512xf32>
    %53 = vector.extract_strided_slice %28 {offsets = [0, 4], sizes = [8, 1], strides = [1, 1]} : vector<8x8xf32> to vector<8x1xf32>
    %54 = vector.extract_strided_slice %29 {offsets = [4, 0], sizes = [1, 512], strides = [1, 1]} : vector<8x512xf32> to vector<1x512xf32>
    %55 = vector.broadcast %53 : vector<8x1xf32> to vector<8x512xf32>
    %56 = vector.broadcast %54 : vector<1x512xf32> to vector<8x512xf32>
    %57 = arith.mulf %55, %56 : vector<8x512xf32>
    %58 = arith.addf %52, %57 : vector<8x512xf32>
    %59 = vector.extract_strided_slice %28 {offsets = [0, 5], sizes = [8, 1], strides = [1, 1]} : vector<8x8xf32> to vector<8x1xf32>
    %60 = vector.extract_strided_slice %29 {offsets = [5, 0], sizes = [1, 512], strides = [1, 1]} : vector<8x512xf32> to vector<1x512xf32>
    %61 = vector.broadcast %59 : vector<8x1xf32> to vector<8x512xf32>
    %62 = vector.broadcast %60 : vector<1x512xf32> to vector<8x512xf32>
    %63 = arith.mulf %61, %62 : vector<8x512xf32>
    %64 = arith.addf %58, %63 : vector<8x512xf32>
    %65 = vector.extract_strided_slice %28 {offsets = [0, 6], sizes = [8, 1], strides = [1, 1]} : vector<8x8xf32> to vector<8x1xf32>
    %66 = vector.extract_strided_slice %29 {offsets = [6, 0], sizes = [1, 512], strides = [1, 1]} : vector<8x512xf32> to vector<1x512xf32>
    %67 = vector.broadcast %65 : vector<8x1xf32> to vector<8x512xf32>
    %68 = vector.broadcast %66 : vector<1x512xf32> to vector<8x512xf32>
    %69 = arith.mulf %67, %68 : vector<8x512xf32>
    %70 = arith.addf %64, %69 : vector<8x512xf32>
    %71 = vector.extract_strided_slice %28 {offsets = [0, 7], sizes = [8, 1], strides = [1, 1]} : vector<8x8xf32> to vector<8x1xf32>
    %72 = vector.extract_strided_slice %29 {offsets = [7, 0], sizes = [1, 512], strides = [1, 1]} : vector<8x512xf32> to vector<1x512xf32>
    %73 = vector.broadcast %71 : vector<8x1xf32> to vector<8x512xf32>
    %74 = vector.broadcast %72 : vector<1x512xf32> to vector<8x512xf32>
    %75 = arith.mulf %73, %74 : vector<8x512xf32>
    %76 = arith.addf %70, %75 : vector<8x512xf32>
    %77 = math.exp %76 : vector<8x512xf32>
    %78 = vector.extract_strided_slice %4 {offsets = [0, 0], sizes = [8, 8], strides = [1, 1]} : vector<16x8xf32> to vector<8x8xf32>
    %79 = vector.extract_strided_slice %78 {offsets = [0, 0], sizes = [8, 1], strides = [1, 1]} : vector<8x8xf32> to vector<8x1xf32>
    %80 = vector.extract_strided_slice %77 {offsets = [0, 0], sizes = [1, 512], strides = [1, 1]} : vector<8x512xf32> to vector<1x512xf32>
    %81 = vector.broadcast %79 : vector<8x1xf32> to vector<8x512xf32>
    %82 = vector.broadcast %80 : vector<1x512xf32> to vector<8x512xf32>
    %83 = arith.mulf %81, %82 : vector<8x512xf32>
    %84 = vector.extract_strided_slice %78 {offsets = [0, 1], sizes = [8, 1], strides = [1, 1]} : vector<8x8xf32> to vector<8x1xf32>
    %85 = vector.extract_strided_slice %77 {offsets = [1, 0], sizes = [1, 512], strides = [1, 1]} : vector<8x512xf32> to vector<1x512xf32>
    %86 = vector.broadcast %84 : vector<8x1xf32> to vector<8x512xf32>
    %87 = vector.broadcast %85 : vector<1x512xf32> to vector<8x512xf32>
    %88 = arith.mulf %86, %87 : vector<8x512xf32>
    %89 = arith.addf %83, %88 : vector<8x512xf32>
    %90 = vector.extract_strided_slice %78 {offsets = [0, 2], sizes = [8, 1], strides = [1, 1]} : vector<8x8xf32> to vector<8x1xf32>
    %91 = vector.extract_strided_slice %77 {offsets = [2, 0], sizes = [1, 512], strides = [1, 1]} : vector<8x512xf32> to vector<1x512xf32>
    %92 = vector.broadcast %90 : vector<8x1xf32> to vector<8x512xf32>
    %93 = vector.broadcast %91 : vector<1x512xf32> to vector<8x512xf32>
    %94 = arith.mulf %92, %93 : vector<8x512xf32>
    %95 = arith.addf %89, %94 : vector<8x512xf32>
    %96 = vector.extract_strided_slice %78 {offsets = [0, 3], sizes = [8, 1], strides = [1, 1]} : vector<8x8xf32> to vector<8x1xf32>
    %97 = vector.extract_strided_slice %77 {offsets = [3, 0], sizes = [1, 512], strides = [1, 1]} : vector<8x512xf32> to vector<1x512xf32>
    %98 = vector.broadcast %96 : vector<8x1xf32> to vector<8x512xf32>
    %99 = vector.broadcast %97 : vector<1x512xf32> to vector<8x512xf32>
    %100 = arith.mulf %98, %99 : vector<8x512xf32>
    %101 = arith.addf %95, %100 : vector<8x512xf32>
    %102 = vector.extract_strided_slice %78 {offsets = [0, 4], sizes = [8, 1], strides = [1, 1]} : vector<8x8xf32> to vector<8x1xf32>
    %103 = vector.extract_strided_slice %77 {offsets = [4, 0], sizes = [1, 512], strides = [1, 1]} : vector<8x512xf32> to vector<1x512xf32>
    %104 = vector.broadcast %102 : vector<8x1xf32> to vector<8x512xf32>
    %105 = vector.broadcast %103 : vector<1x512xf32> to vector<8x512xf32>
    %106 = arith.mulf %104, %105 : vector<8x512xf32>
    %107 = arith.addf %101, %106 : vector<8x512xf32>
    %108 = vector.extract_strided_slice %78 {offsets = [0, 5], sizes = [8, 1], strides = [1, 1]} : vector<8x8xf32> to vector<8x1xf32>
    %109 = vector.extract_strided_slice %77 {offsets = [5, 0], sizes = [1, 512], strides = [1, 1]} : vector<8x512xf32> to vector<1x512xf32>
    %110 = vector.broadcast %108 : vector<8x1xf32> to vector<8x512xf32>
    %111 = vector.broadcast %109 : vector<1x512xf32> to vector<8x512xf32>
    %112 = arith.mulf %110, %111 : vector<8x512xf32>
    %113 = arith.addf %107, %112 : vector<8x512xf32>
    %114 = vector.extract_strided_slice %78 {offsets = [0, 6], sizes = [8, 1], strides = [1, 1]} : vector<8x8xf32> to vector<8x1xf32>
    %115 = vector.extract_strided_slice %77 {offsets = [6, 0], sizes = [1, 512], strides = [1, 1]} : vector<8x512xf32> to vector<1x512xf32>
    %116 = vector.broadcast %114 : vector<8x1xf32> to vector<8x512xf32>
    %117 = vector.broadcast %115 : vector<1x512xf32> to vector<8x512xf32>
    %118 = arith.mulf %116, %117 : vector<8x512xf32>
    %119 = arith.addf %113, %118 : vector<8x512xf32>
    %120 = vector.extract_strided_slice %78 {offsets = [0, 7], sizes = [8, 1], strides = [1, 1]} : vector<8x8xf32> to vector<8x1xf32>
    %121 = vector.extract_strided_slice %77 {offsets = [7, 0], sizes = [1, 512], strides = [1, 1]} : vector<8x512xf32> to vector<1x512xf32>
    %122 = vector.broadcast %120 : vector<8x1xf32> to vector<8x512xf32>
    %123 = vector.broadcast %121 : vector<1x512xf32> to vector<8x512xf32>
    %124 = arith.mulf %122, %123 : vector<8x512xf32>
    %125 = arith.addf %119, %124 : vector<8x512xf32>
    %126 = vector.extract_strided_slice %1 {offsets = [0, 0], sizes = [2, 8], strides = [1, 1]} : vector<2x16xf32> to vector<2x8xf32>
    %127 = arith.mulf %125, %27 : vector<8x512xf32>
    %128 = vector.extract_strided_slice %126 {offsets = [0, 0], sizes = [2, 1], strides = [1, 1]} : vector<2x8xf32> to vector<2x1xf32>
    %129 = vector.extract_strided_slice %127 {offsets = [0, 0], sizes = [1, 512], strides = [1, 1]} : vector<8x512xf32> to vector<1x512xf32>
    %130 = vector.broadcast %128 : vector<2x1xf32> to vector<2x512xf32>
    %131 = vector.broadcast %129 : vector<1x512xf32> to vector<2x512xf32>
    %132 = arith.mulf %130, %131 : vector<2x512xf32>
    %133 = vector.extract_strided_slice %126 {offsets = [0, 1], sizes = [2, 1], strides = [1, 1]} : vector<2x8xf32> to vector<2x1xf32>
    %134 = vector.extract_strided_slice %127 {offsets = [1, 0], sizes = [1, 512], strides = [1, 1]} : vector<8x512xf32> to vector<1x512xf32>
    %135 = vector.broadcast %133 : vector<2x1xf32> to vector<2x512xf32>
    %136 = vector.broadcast %134 : vector<1x512xf32> to vector<2x512xf32>
    %137 = arith.mulf %135, %136 : vector<2x512xf32>
    %138 = arith.addf %132, %137 : vector<2x512xf32>
    %139 = vector.extract_strided_slice %126 {offsets = [0, 2], sizes = [2, 1], strides = [1, 1]} : vector<2x8xf32> to vector<2x1xf32>
    %140 = vector.extract_strided_slice %127 {offsets = [2, 0], sizes = [1, 512], strides = [1, 1]} : vector<8x512xf32> to vector<1x512xf32>
    %141 = vector.broadcast %139 : vector<2x1xf32> to vector<2x512xf32>
    %142 = vector.broadcast %140 : vector<1x512xf32> to vector<2x512xf32>
    %143 = arith.mulf %141, %142 : vector<2x512xf32>
    %144 = arith.addf %138, %143 : vector<2x512xf32>
    %145 = vector.extract_strided_slice %126 {offsets = [0, 3], sizes = [2, 1], strides = [1, 1]} : vector<2x8xf32> to vector<2x1xf32>
    %146 = vector.extract_strided_slice %127 {offsets = [3, 0], sizes = [1, 512], strides = [1, 1]} : vector<8x512xf32> to vector<1x512xf32>
    %147 = vector.broadcast %145 : vector<2x1xf32> to vector<2x512xf32>
    %148 = vector.broadcast %146 : vector<1x512xf32> to vector<2x512xf32>
    %149 = arith.mulf %147, %148 : vector<2x512xf32>
    %150 = arith.addf %144, %149 : vector<2x512xf32>
    %151 = vector.extract_strided_slice %126 {offsets = [0, 4], sizes = [2, 1], strides = [1, 1]} : vector<2x8xf32> to vector<2x1xf32>
    %152 = vector.extract_strided_slice %127 {offsets = [4, 0], sizes = [1, 512], strides = [1, 1]} : vector<8x512xf32> to vector<1x512xf32>
    %153 = vector.broadcast %151 : vector<2x1xf32> to vector<2x512xf32>
    %154 = vector.broadcast %152 : vector<1x512xf32> to vector<2x512xf32>
    %155 = arith.mulf %153, %154 : vector<2x512xf32>
    %156 = arith.addf %150, %155 : vector<2x512xf32>
    %157 = vector.extract_strided_slice %126 {offsets = [0, 5], sizes = [2, 1], strides = [1, 1]} : vector<2x8xf32> to vector<2x1xf32>
    %158 = vector.extract_strided_slice %127 {offsets = [5, 0], sizes = [1, 512], strides = [1, 1]} : vector<8x512xf32> to vector<1x512xf32>
    %159 = vector.broadcast %157 : vector<2x1xf32> to vector<2x512xf32>
    %160 = vector.broadcast %158 : vector<1x512xf32> to vector<2x512xf32>
    %161 = arith.mulf %159, %160 : vector<2x512xf32>
    %162 = arith.addf %156, %161 : vector<2x512xf32>
    %163 = vector.extract_strided_slice %126 {offsets = [0, 6], sizes = [2, 1], strides = [1, 1]} : vector<2x8xf32> to vector<2x1xf32>
    %164 = vector.extract_strided_slice %127 {offsets = [6, 0], sizes = [1, 512], strides = [1, 1]} : vector<8x512xf32> to vector<1x512xf32>
    %165 = vector.broadcast %163 : vector<2x1xf32> to vector<2x512xf32>
    %166 = vector.broadcast %164 : vector<1x512xf32> to vector<2x512xf32>
    %167 = arith.mulf %165, %166 : vector<2x512xf32>
    %168 = arith.addf %162, %167 : vector<2x512xf32>
    %169 = vector.extract_strided_slice %126 {offsets = [0, 7], sizes = [2, 1], strides = [1, 1]} : vector<2x8xf32> to vector<2x1xf32>
    %170 = vector.extract_strided_slice %127 {offsets = [7, 0], sizes = [1, 512], strides = [1, 1]} : vector<8x512xf32> to vector<1x512xf32>
    %171 = vector.broadcast %169 : vector<2x1xf32> to vector<2x512xf32>
    %172 = vector.broadcast %170 : vector<1x512xf32> to vector<2x512xf32>
    %173 = arith.mulf %171, %172 : vector<2x512xf32>
    %174 = arith.addf %168, %173 : vector<2x512xf32>
    %175 = vector.extract_strided_slice %26 {offsets = [8, 0], sizes = [8, 512], strides = [1, 1]} : vector<16x512xf32> to vector<8x512xf32>
    %176 = vector.extract_strided_slice %3 {offsets = [8, 0], sizes = [8, 8], strides = [1, 1]} : vector<16x8xf32> to vector<8x8xf32>
    %177 = arith.mulf %175, %175 : vector<8x512xf32>
    %178 = vector.extract_strided_slice %176 {offsets = [0, 0], sizes = [8, 1], strides = [1, 1]} : vector<8x8xf32> to vector<8x1xf32>
    %179 = vector.extract_strided_slice %177 {offsets = [0, 0], sizes = [1, 512], strides = [1, 1]} : vector<8x512xf32> to vector<1x512xf32>
    %180 = vector.broadcast %178 : vector<8x1xf32> to vector<8x512xf32>
    %181 = vector.broadcast %179 : vector<1x512xf32> to vector<8x512xf32>
    %182 = arith.mulf %180, %181 : vector<8x512xf32>
    %183 = vector.extract_strided_slice %176 {offsets = [0, 1], sizes = [8, 1], strides = [1, 1]} : vector<8x8xf32> to vector<8x1xf32>
    %184 = vector.extract_strided_slice %177 {offsets = [1, 0], sizes = [1, 512], strides = [1, 1]} : vector<8x512xf32> to vector<1x512xf32>
    %185 = vector.broadcast %183 : vector<8x1xf32> to vector<8x512xf32>
    %186 = vector.broadcast %184 : vector<1x512xf32> to vector<8x512xf32>
    %187 = arith.mulf %185, %186 : vector<8x512xf32>
    %188 = arith.addf %182, %187 : vector<8x512xf32>
    %189 = vector.extract_strided_slice %176 {offsets = [0, 2], sizes = [8, 1], strides = [1, 1]} : vector<8x8xf32> to vector<8x1xf32>
    %190 = vector.extract_strided_slice %177 {offsets = [2, 0], sizes = [1, 512], strides = [1, 1]} : vector<8x512xf32> to vector<1x512xf32>
    %191 = vector.broadcast %189 : vector<8x1xf32> to vector<8x512xf32>
    %192 = vector.broadcast %190 : vector<1x512xf32> to vector<8x512xf32>
    %193 = arith.mulf %191, %192 : vector<8x512xf32>
    %194 = arith.addf %188, %193 : vector<8x512xf32>
    %195 = vector.extract_strided_slice %176 {offsets = [0, 3], sizes = [8, 1], strides = [1, 1]} : vector<8x8xf32> to vector<8x1xf32>
    %196 = vector.extract_strided_slice %177 {offsets = [3, 0], sizes = [1, 512], strides = [1, 1]} : vector<8x512xf32> to vector<1x512xf32>
    %197 = vector.broadcast %195 : vector<8x1xf32> to vector<8x512xf32>
    %198 = vector.broadcast %196 : vector<1x512xf32> to vector<8x512xf32>
    %199 = arith.mulf %197, %198 : vector<8x512xf32>
    %200 = arith.addf %194, %199 : vector<8x512xf32>
    %201 = vector.extract_strided_slice %176 {offsets = [0, 4], sizes = [8, 1], strides = [1, 1]} : vector<8x8xf32> to vector<8x1xf32>
    %202 = vector.extract_strided_slice %177 {offsets = [4, 0], sizes = [1, 512], strides = [1, 1]} : vector<8x512xf32> to vector<1x512xf32>
    %203 = vector.broadcast %201 : vector<8x1xf32> to vector<8x512xf32>
    %204 = vector.broadcast %202 : vector<1x512xf32> to vector<8x512xf32>
    %205 = arith.mulf %203, %204 : vector<8x512xf32>
    %206 = arith.addf %200, %205 : vector<8x512xf32>
    %207 = vector.extract_strided_slice %176 {offsets = [0, 5], sizes = [8, 1], strides = [1, 1]} : vector<8x8xf32> to vector<8x1xf32>
    %208 = vector.extract_strided_slice %177 {offsets = [5, 0], sizes = [1, 512], strides = [1, 1]} : vector<8x512xf32> to vector<1x512xf32>
    %209 = vector.broadcast %207 : vector<8x1xf32> to vector<8x512xf32>
    %210 = vector.broadcast %208 : vector<1x512xf32> to vector<8x512xf32>
    %211 = arith.mulf %209, %210 : vector<8x512xf32>
    %212 = arith.addf %206, %211 : vector<8x512xf32>
    %213 = vector.extract_strided_slice %176 {offsets = [0, 6], sizes = [8, 1], strides = [1, 1]} : vector<8x8xf32> to vector<8x1xf32>
    %214 = vector.extract_strided_slice %177 {offsets = [6, 0], sizes = [1, 512], strides = [1, 1]} : vector<8x512xf32> to vector<1x512xf32>
    %215 = vector.broadcast %213 : vector<8x1xf32> to vector<8x512xf32>
    %216 = vector.broadcast %214 : vector<1x512xf32> to vector<8x512xf32>
    %217 = arith.mulf %215, %216 : vector<8x512xf32>
    %218 = arith.addf %212, %217 : vector<8x512xf32>
    %219 = vector.extract_strided_slice %176 {offsets = [0, 7], sizes = [8, 1], strides = [1, 1]} : vector<8x8xf32> to vector<8x1xf32>
    %220 = vector.extract_strided_slice %177 {offsets = [7, 0], sizes = [1, 512], strides = [1, 1]} : vector<8x512xf32> to vector<1x512xf32>
    %221 = vector.broadcast %219 : vector<8x1xf32> to vector<8x512xf32>
    %222 = vector.broadcast %220 : vector<1x512xf32> to vector<8x512xf32>
    %223 = arith.mulf %221, %222 : vector<8x512xf32>
    %224 = arith.addf %218, %223 : vector<8x512xf32>
    %225 = math.exp %224 : vector<8x512xf32>
    %226 = vector.extract_strided_slice %4 {offsets = [8, 0], sizes = [8, 8], strides = [1, 1]} : vector<16x8xf32> to vector<8x8xf32>
    %227 = vector.extract_strided_slice %226 {offsets = [0, 0], sizes = [8, 1], strides = [1, 1]} : vector<8x8xf32> to vector<8x1xf32>
    %228 = vector.extract_strided_slice %225 {offsets = [0, 0], sizes = [1, 512], strides = [1, 1]} : vector<8x512xf32> to vector<1x512xf32>
    %229 = vector.broadcast %227 : vector<8x1xf32> to vector<8x512xf32>
    %230 = vector.broadcast %228 : vector<1x512xf32> to vector<8x512xf32>
    %231 = arith.mulf %229, %230 : vector<8x512xf32>
    %232 = vector.extract_strided_slice %226 {offsets = [0, 1], sizes = [8, 1], strides = [1, 1]} : vector<8x8xf32> to vector<8x1xf32>
    %233 = vector.extract_strided_slice %225 {offsets = [1, 0], sizes = [1, 512], strides = [1, 1]} : vector<8x512xf32> to vector<1x512xf32>
    %234 = vector.broadcast %232 : vector<8x1xf32> to vector<8x512xf32>
    %235 = vector.broadcast %233 : vector<1x512xf32> to vector<8x512xf32>
    %236 = arith.mulf %234, %235 : vector<8x512xf32>
    %237 = arith.addf %231, %236 : vector<8x512xf32>
    %238 = vector.extract_strided_slice %226 {offsets = [0, 2], sizes = [8, 1], strides = [1, 1]} : vector<8x8xf32> to vector<8x1xf32>
    %239 = vector.extract_strided_slice %225 {offsets = [2, 0], sizes = [1, 512], strides = [1, 1]} : vector<8x512xf32> to vector<1x512xf32>
    %240 = vector.broadcast %238 : vector<8x1xf32> to vector<8x512xf32>
    %241 = vector.broadcast %239 : vector<1x512xf32> to vector<8x512xf32>
    %242 = arith.mulf %240, %241 : vector<8x512xf32>
    %243 = arith.addf %237, %242 : vector<8x512xf32>
    %244 = vector.extract_strided_slice %226 {offsets = [0, 3], sizes = [8, 1], strides = [1, 1]} : vector<8x8xf32> to vector<8x1xf32>
    %245 = vector.extract_strided_slice %225 {offsets = [3, 0], sizes = [1, 512], strides = [1, 1]} : vector<8x512xf32> to vector<1x512xf32>
    %246 = vector.broadcast %244 : vector<8x1xf32> to vector<8x512xf32>
    %247 = vector.broadcast %245 : vector<1x512xf32> to vector<8x512xf32>
    %248 = arith.mulf %246, %247 : vector<8x512xf32>
    %249 = arith.addf %243, %248 : vector<8x512xf32>
    %250 = vector.extract_strided_slice %226 {offsets = [0, 4], sizes = [8, 1], strides = [1, 1]} : vector<8x8xf32> to vector<8x1xf32>
    %251 = vector.extract_strided_slice %225 {offsets = [4, 0], sizes = [1, 512], strides = [1, 1]} : vector<8x512xf32> to vector<1x512xf32>
    %252 = vector.broadcast %250 : vector<8x1xf32> to vector<8x512xf32>
    %253 = vector.broadcast %251 : vector<1x512xf32> to vector<8x512xf32>
    %254 = arith.mulf %252, %253 : vector<8x512xf32>
    %255 = arith.addf %249, %254 : vector<8x512xf32>
    %256 = vector.extract_strided_slice %226 {offsets = [0, 5], sizes = [8, 1], strides = [1, 1]} : vector<8x8xf32> to vector<8x1xf32>
    %257 = vector.extract_strided_slice %225 {offsets = [5, 0], sizes = [1, 512], strides = [1, 1]} : vector<8x512xf32> to vector<1x512xf32>
    %258 = vector.broadcast %256 : vector<8x1xf32> to vector<8x512xf32>
    %259 = vector.broadcast %257 : vector<1x512xf32> to vector<8x512xf32>
    %260 = arith.mulf %258, %259 : vector<8x512xf32>
    %261 = arith.addf %255, %260 : vector<8x512xf32>
    %262 = vector.extract_strided_slice %226 {offsets = [0, 6], sizes = [8, 1], strides = [1, 1]} : vector<8x8xf32> to vector<8x1xf32>
    %263 = vector.extract_strided_slice %225 {offsets = [6, 0], sizes = [1, 512], strides = [1, 1]} : vector<8x512xf32> to vector<1x512xf32>
    %264 = vector.broadcast %262 : vector<8x1xf32> to vector<8x512xf32>
    %265 = vector.broadcast %263 : vector<1x512xf32> to vector<8x512xf32>
    %266 = arith.mulf %264, %265 : vector<8x512xf32>
    %267 = arith.addf %261, %266 : vector<8x512xf32>
    %268 = vector.extract_strided_slice %226 {offsets = [0, 7], sizes = [8, 1], strides = [1, 1]} : vector<8x8xf32> to vector<8x1xf32>
    %269 = vector.extract_strided_slice %225 {offsets = [7, 0], sizes = [1, 512], strides = [1, 1]} : vector<8x512xf32> to vector<1x512xf32>
    %270 = vector.broadcast %268 : vector<8x1xf32> to vector<8x512xf32>
    %271 = vector.broadcast %269 : vector<1x512xf32> to vector<8x512xf32>
    %272 = arith.mulf %270, %271 : vector<8x512xf32>
    %273 = arith.addf %267, %272 : vector<8x512xf32>
    %274 = vector.extract_strided_slice %1 {offsets = [0, 8], sizes = [2, 8], strides = [1, 1]} : vector<2x16xf32> to vector<2x8xf32>
    %275 = arith.mulf %273, %175 : vector<8x512xf32>
    %276 = vector.extract_strided_slice %274 {offsets = [0, 0], sizes = [2, 1], strides = [1, 1]} : vector<2x8xf32> to vector<2x1xf32>
    %277 = vector.extract_strided_slice %275 {offsets = [0, 0], sizes = [1, 512], strides = [1, 1]} : vector<8x512xf32> to vector<1x512xf32>
    %278 = vector.broadcast %276 : vector<2x1xf32> to vector<2x512xf32>
    %279 = vector.broadcast %277 : vector<1x512xf32> to vector<2x512xf32>
    %280 = arith.mulf %278, %279 : vector<2x512xf32>
    %281 = vector.extract_strided_slice %274 {offsets = [0, 1], sizes = [2, 1], strides = [1, 1]} : vector<2x8xf32> to vector<2x1xf32>
    %282 = vector.extract_strided_slice %275 {offsets = [1, 0], sizes = [1, 512], strides = [1, 1]} : vector<8x512xf32> to vector<1x512xf32>
    %283 = vector.broadcast %281 : vector<2x1xf32> to vector<2x512xf32>
    %284 = vector.broadcast %282 : vector<1x512xf32> to vector<2x512xf32>
    %285 = arith.mulf %283, %284 : vector<2x512xf32>
    %286 = arith.addf %280, %285 : vector<2x512xf32>
    %287 = vector.extract_strided_slice %274 {offsets = [0, 2], sizes = [2, 1], strides = [1, 1]} : vector<2x8xf32> to vector<2x1xf32>
    %288 = vector.extract_strided_slice %275 {offsets = [2, 0], sizes = [1, 512], strides = [1, 1]} : vector<8x512xf32> to vector<1x512xf32>
    %289 = vector.broadcast %287 : vector<2x1xf32> to vector<2x512xf32>
    %290 = vector.broadcast %288 : vector<1x512xf32> to vector<2x512xf32>
    %291 = arith.mulf %289, %290 : vector<2x512xf32>
    %292 = arith.addf %286, %291 : vector<2x512xf32>
    %293 = vector.extract_strided_slice %274 {offsets = [0, 3], sizes = [2, 1], strides = [1, 1]} : vector<2x8xf32> to vector<2x1xf32>
    %294 = vector.extract_strided_slice %275 {offsets = [3, 0], sizes = [1, 512], strides = [1, 1]} : vector<8x512xf32> to vector<1x512xf32>
    %295 = vector.broadcast %293 : vector<2x1xf32> to vector<2x512xf32>
    %296 = vector.broadcast %294 : vector<1x512xf32> to vector<2x512xf32>
    %297 = arith.mulf %295, %296 : vector<2x512xf32>
    %298 = arith.addf %292, %297 : vector<2x512xf32>
    %299 = vector.extract_strided_slice %274 {offsets = [0, 4], sizes = [2, 1], strides = [1, 1]} : vector<2x8xf32> to vector<2x1xf32>
    %300 = vector.extract_strided_slice %275 {offsets = [4, 0], sizes = [1, 512], strides = [1, 1]} : vector<8x512xf32> to vector<1x512xf32>
    %301 = vector.broadcast %299 : vector<2x1xf32> to vector<2x512xf32>
    %302 = vector.broadcast %300 : vector<1x512xf32> to vector<2x512xf32>
    %303 = arith.mulf %301, %302 : vector<2x512xf32>
    %304 = arith.addf %298, %303 : vector<2x512xf32>
    %305 = vector.extract_strided_slice %274 {offsets = [0, 5], sizes = [2, 1], strides = [1, 1]} : vector<2x8xf32> to vector<2x1xf32>
    %306 = vector.extract_strided_slice %275 {offsets = [5, 0], sizes = [1, 512], strides = [1, 1]} : vector<8x512xf32> to vector<1x512xf32>
    %307 = vector.broadcast %305 : vector<2x1xf32> to vector<2x512xf32>
    %308 = vector.broadcast %306 : vector<1x512xf32> to vector<2x512xf32>
    %309 = arith.mulf %307, %308 : vector<2x512xf32>
    %310 = arith.addf %304, %309 : vector<2x512xf32>
    %311 = vector.extract_strided_slice %274 {offsets = [0, 6], sizes = [2, 1], strides = [1, 1]} : vector<2x8xf32> to vector<2x1xf32>
    %312 = vector.extract_strided_slice %275 {offsets = [6, 0], sizes = [1, 512], strides = [1, 1]} : vector<8x512xf32> to vector<1x512xf32>
    %313 = vector.broadcast %311 : vector<2x1xf32> to vector<2x512xf32>
    %314 = vector.broadcast %312 : vector<1x512xf32> to vector<2x512xf32>
    %315 = arith.mulf %313, %314 : vector<2x512xf32>
    %316 = arith.addf %310, %315 : vector<2x512xf32>
    %317 = vector.extract_strided_slice %274 {offsets = [0, 7], sizes = [2, 1], strides = [1, 1]} : vector<2x8xf32> to vector<2x1xf32>
    %318 = vector.extract_strided_slice %275 {offsets = [7, 0], sizes = [1, 512], strides = [1, 1]} : vector<8x512xf32> to vector<1x512xf32>
    %319 = vector.broadcast %317 : vector<2x1xf32> to vector<2x512xf32>
    %320 = vector.broadcast %318 : vector<1x512xf32> to vector<2x512xf32>
    %321 = arith.mulf %319, %320 : vector<2x512xf32>
    %322 = arith.addf %316, %321 : vector<2x512xf32>
    %323 = arith.addf %174, %322 : vector<2x512xf32>
    %324 = vector.extract_strided_slice %5 {offsets = [0, 0], sizes = [8, 1], strides = [1, 1]} : vector<8x2xf32> to vector<8x1xf32>
    %325 = vector.extract_strided_slice %13 {offsets = [0, 0], sizes = [1, 512], strides = [1, 1]} : vector<2x512xf32> to vector<1x512xf32>
    %326 = vector.broadcast %324 : vector<8x1xf32> to vector<8x512xf32>
    %327 = vector.broadcast %325 : vector<1x512xf32> to vector<8x512xf32>
    %328 = arith.mulf %326, %327 : vector<8x512xf32>
    %329 = vector.extract_strided_slice %5 {offsets = [0, 1], sizes = [8, 1], strides = [1, 1]} : vector<8x2xf32> to vector<8x1xf32>
    %330 = vector.extract_strided_slice %13 {offsets = [1, 0], sizes = [1, 512], strides = [1, 1]} : vector<2x512xf32> to vector<1x512xf32>
    %331 = vector.broadcast %329 : vector<8x1xf32> to vector<8x512xf32>
    %332 = vector.broadcast %330 : vector<1x512xf32> to vector<8x512xf32>
    %333 = arith.mulf %331, %332 : vector<8x512xf32>
    %334 = arith.addf %328, %333 : vector<8x512xf32>
    %335 = vector.broadcast %6 : vector<8x1xf32> to vector<8x512xf32>
    %336 = arith.addf %334, %335 : vector<8x512xf32>
    %cst = arith.constant 0.000000e+00 : f32
    %337 = vector.broadcast %cst : f32 to vector<8x512xf32>
    %338 = arith.cmpf ogt, %336, %337 : vector<8x512xf32>
    %cst_24 = arith.constant 0.000000e+00 : f32
    %339 = vector.broadcast %cst_24 : f32 to vector<8x512xf32>
    %340 = arith.minimumf %336, %339 : vector<8x512xf32>
    %341 = math.exp %340 : vector<8x512xf32>
    %cst_25 = arith.constant 1.000000e+00 : f32
    %342 = vector.broadcast %cst_25 : f32 to vector<8x512xf32>
    %343 = arith.subf %341, %342 : vector<8x512xf32>
    %344 = arith.select %338, %336, %343 : vector<8x512xi1>, vector<8x512xf32>
    %345 = vector.extract_strided_slice %7 {offsets = [0, 0], sizes = [8, 1], strides = [1, 1]} : vector<8x8xf32> to vector<8x1xf32>
    %346 = vector.extract_strided_slice %344 {offsets = [0, 0], sizes = [1, 512], strides = [1, 1]} : vector<8x512xf32> to vector<1x512xf32>
    %347 = vector.broadcast %345 : vector<8x1xf32> to vector<8x512xf32>
    %348 = vector.broadcast %346 : vector<1x512xf32> to vector<8x512xf32>
    %349 = arith.mulf %347, %348 : vector<8x512xf32>
    %350 = vector.extract_strided_slice %7 {offsets = [0, 1], sizes = [8, 1], strides = [1, 1]} : vector<8x8xf32> to vector<8x1xf32>
    %351 = vector.extract_strided_slice %344 {offsets = [1, 0], sizes = [1, 512], strides = [1, 1]} : vector<8x512xf32> to vector<1x512xf32>
    %352 = vector.broadcast %350 : vector<8x1xf32> to vector<8x512xf32>
    %353 = vector.broadcast %351 : vector<1x512xf32> to vector<8x512xf32>
    %354 = arith.mulf %352, %353 : vector<8x512xf32>
    %355 = arith.addf %349, %354 : vector<8x512xf32>
    %356 = vector.extract_strided_slice %7 {offsets = [0, 2], sizes = [8, 1], strides = [1, 1]} : vector<8x8xf32> to vector<8x1xf32>
    %357 = vector.extract_strided_slice %344 {offsets = [2, 0], sizes = [1, 512], strides = [1, 1]} : vector<8x512xf32> to vector<1x512xf32>
    %358 = vector.broadcast %356 : vector<8x1xf32> to vector<8x512xf32>
    %359 = vector.broadcast %357 : vector<1x512xf32> to vector<8x512xf32>
    %360 = arith.mulf %358, %359 : vector<8x512xf32>
    %361 = arith.addf %355, %360 : vector<8x512xf32>
    %362 = vector.extract_strided_slice %7 {offsets = [0, 3], sizes = [8, 1], strides = [1, 1]} : vector<8x8xf32> to vector<8x1xf32>
    %363 = vector.extract_strided_slice %344 {offsets = [3, 0], sizes = [1, 512], strides = [1, 1]} : vector<8x512xf32> to vector<1x512xf32>
    %364 = vector.broadcast %362 : vector<8x1xf32> to vector<8x512xf32>
    %365 = vector.broadcast %363 : vector<1x512xf32> to vector<8x512xf32>
    %366 = arith.mulf %364, %365 : vector<8x512xf32>
    %367 = arith.addf %361, %366 : vector<8x512xf32>
    %368 = vector.extract_strided_slice %7 {offsets = [0, 4], sizes = [8, 1], strides = [1, 1]} : vector<8x8xf32> to vector<8x1xf32>
    %369 = vector.extract_strided_slice %344 {offsets = [4, 0], sizes = [1, 512], strides = [1, 1]} : vector<8x512xf32> to vector<1x512xf32>
    %370 = vector.broadcast %368 : vector<8x1xf32> to vector<8x512xf32>
    %371 = vector.broadcast %369 : vector<1x512xf32> to vector<8x512xf32>
    %372 = arith.mulf %370, %371 : vector<8x512xf32>
    %373 = arith.addf %367, %372 : vector<8x512xf32>
    %374 = vector.extract_strided_slice %7 {offsets = [0, 5], sizes = [8, 1], strides = [1, 1]} : vector<8x8xf32> to vector<8x1xf32>
    %375 = vector.extract_strided_slice %344 {offsets = [5, 0], sizes = [1, 512], strides = [1, 1]} : vector<8x512xf32> to vector<1x512xf32>
    %376 = vector.broadcast %374 : vector<8x1xf32> to vector<8x512xf32>
    %377 = vector.broadcast %375 : vector<1x512xf32> to vector<8x512xf32>
    %378 = arith.mulf %376, %377 : vector<8x512xf32>
    %379 = arith.addf %373, %378 : vector<8x512xf32>
    %380 = vector.extract_strided_slice %7 {offsets = [0, 6], sizes = [8, 1], strides = [1, 1]} : vector<8x8xf32> to vector<8x1xf32>
    %381 = vector.extract_strided_slice %344 {offsets = [6, 0], sizes = [1, 512], strides = [1, 1]} : vector<8x512xf32> to vector<1x512xf32>
    %382 = vector.broadcast %380 : vector<8x1xf32> to vector<8x512xf32>
    %383 = vector.broadcast %381 : vector<1x512xf32> to vector<8x512xf32>
    %384 = arith.mulf %382, %383 : vector<8x512xf32>
    %385 = arith.addf %379, %384 : vector<8x512xf32>
    %386 = vector.extract_strided_slice %7 {offsets = [0, 7], sizes = [8, 1], strides = [1, 1]} : vector<8x8xf32> to vector<8x1xf32>
    %387 = vector.extract_strided_slice %344 {offsets = [7, 0], sizes = [1, 512], strides = [1, 1]} : vector<8x512xf32> to vector<1x512xf32>
    %388 = vector.broadcast %386 : vector<8x1xf32> to vector<8x512xf32>
    %389 = vector.broadcast %387 : vector<1x512xf32> to vector<8x512xf32>
    %390 = arith.mulf %388, %389 : vector<8x512xf32>
    %391 = arith.addf %385, %390 : vector<8x512xf32>
    %392 = vector.broadcast %8 : vector<8x1xf32> to vector<8x512xf32>
    %393 = arith.addf %391, %392 : vector<8x512xf32>
    %cst_26 = arith.constant 0.000000e+00 : f32
    %394 = vector.broadcast %cst_26 : f32 to vector<8x512xf32>
    %395 = arith.cmpf ogt, %393, %394 : vector<8x512xf32>
    %cst_27 = arith.constant 0.000000e+00 : f32
    %396 = vector.broadcast %cst_27 : f32 to vector<8x512xf32>
    %397 = arith.minimumf %393, %396 : vector<8x512xf32>
    %398 = math.exp %397 : vector<8x512xf32>
    %cst_28 = arith.constant 1.000000e+00 : f32
    %399 = vector.broadcast %cst_28 : f32 to vector<8x512xf32>
    %400 = arith.subf %398, %399 : vector<8x512xf32>
    %401 = arith.select %395, %393, %400 : vector<8x512xi1>, vector<8x512xf32>
    %402 = vector.extract_strided_slice %9 {offsets = [0, 0], sizes = [4, 1], strides = [1, 1]} : vector<4x8xf32> to vector<4x1xf32>
    %403 = vector.extract_strided_slice %401 {offsets = [0, 0], sizes = [1, 512], strides = [1, 1]} : vector<8x512xf32> to vector<1x512xf32>
    %404 = vector.broadcast %402 : vector<4x1xf32> to vector<4x512xf32>
    %405 = vector.broadcast %403 : vector<1x512xf32> to vector<4x512xf32>
    %406 = arith.mulf %404, %405 : vector<4x512xf32>
    %407 = vector.extract_strided_slice %9 {offsets = [0, 1], sizes = [4, 1], strides = [1, 1]} : vector<4x8xf32> to vector<4x1xf32>
    %408 = vector.extract_strided_slice %401 {offsets = [1, 0], sizes = [1, 512], strides = [1, 1]} : vector<8x512xf32> to vector<1x512xf32>
    %409 = vector.broadcast %407 : vector<4x1xf32> to vector<4x512xf32>
    %410 = vector.broadcast %408 : vector<1x512xf32> to vector<4x512xf32>
    %411 = arith.mulf %409, %410 : vector<4x512xf32>
    %412 = arith.addf %406, %411 : vector<4x512xf32>
    %413 = vector.extract_strided_slice %9 {offsets = [0, 2], sizes = [4, 1], strides = [1, 1]} : vector<4x8xf32> to vector<4x1xf32>
    %414 = vector.extract_strided_slice %401 {offsets = [2, 0], sizes = [1, 512], strides = [1, 1]} : vector<8x512xf32> to vector<1x512xf32>
    %415 = vector.broadcast %413 : vector<4x1xf32> to vector<4x512xf32>
    %416 = vector.broadcast %414 : vector<1x512xf32> to vector<4x512xf32>
    %417 = arith.mulf %415, %416 : vector<4x512xf32>
    %418 = arith.addf %412, %417 : vector<4x512xf32>
    %419 = vector.extract_strided_slice %9 {offsets = [0, 3], sizes = [4, 1], strides = [1, 1]} : vector<4x8xf32> to vector<4x1xf32>
    %420 = vector.extract_strided_slice %401 {offsets = [3, 0], sizes = [1, 512], strides = [1, 1]} : vector<8x512xf32> to vector<1x512xf32>
    %421 = vector.broadcast %419 : vector<4x1xf32> to vector<4x512xf32>
    %422 = vector.broadcast %420 : vector<1x512xf32> to vector<4x512xf32>
    %423 = arith.mulf %421, %422 : vector<4x512xf32>
    %424 = arith.addf %418, %423 : vector<4x512xf32>
    %425 = vector.extract_strided_slice %9 {offsets = [0, 4], sizes = [4, 1], strides = [1, 1]} : vector<4x8xf32> to vector<4x1xf32>
    %426 = vector.extract_strided_slice %401 {offsets = [4, 0], sizes = [1, 512], strides = [1, 1]} : vector<8x512xf32> to vector<1x512xf32>
    %427 = vector.broadcast %425 : vector<4x1xf32> to vector<4x512xf32>
    %428 = vector.broadcast %426 : vector<1x512xf32> to vector<4x512xf32>
    %429 = arith.mulf %427, %428 : vector<4x512xf32>
    %430 = arith.addf %424, %429 : vector<4x512xf32>
    %431 = vector.extract_strided_slice %9 {offsets = [0, 5], sizes = [4, 1], strides = [1, 1]} : vector<4x8xf32> to vector<4x1xf32>
    %432 = vector.extract_strided_slice %401 {offsets = [5, 0], sizes = [1, 512], strides = [1, 1]} : vector<8x512xf32> to vector<1x512xf32>
    %433 = vector.broadcast %431 : vector<4x1xf32> to vector<4x512xf32>
    %434 = vector.broadcast %432 : vector<1x512xf32> to vector<4x512xf32>
    %435 = arith.mulf %433, %434 : vector<4x512xf32>
    %436 = arith.addf %430, %435 : vector<4x512xf32>
    %437 = vector.extract_strided_slice %9 {offsets = [0, 6], sizes = [4, 1], strides = [1, 1]} : vector<4x8xf32> to vector<4x1xf32>
    %438 = vector.extract_strided_slice %401 {offsets = [6, 0], sizes = [1, 512], strides = [1, 1]} : vector<8x512xf32> to vector<1x512xf32>
    %439 = vector.broadcast %437 : vector<4x1xf32> to vector<4x512xf32>
    %440 = vector.broadcast %438 : vector<1x512xf32> to vector<4x512xf32>
    %441 = arith.mulf %439, %440 : vector<4x512xf32>
    %442 = arith.addf %436, %441 : vector<4x512xf32>
    %443 = vector.extract_strided_slice %9 {offsets = [0, 7], sizes = [4, 1], strides = [1, 1]} : vector<4x8xf32> to vector<4x1xf32>
    %444 = vector.extract_strided_slice %401 {offsets = [7, 0], sizes = [1, 512], strides = [1, 1]} : vector<8x512xf32> to vector<1x512xf32>
    %445 = vector.broadcast %443 : vector<4x1xf32> to vector<4x512xf32>
    %446 = vector.broadcast %444 : vector<1x512xf32> to vector<4x512xf32>
    %447 = arith.mulf %445, %446 : vector<4x512xf32>
    %448 = arith.addf %442, %447 : vector<4x512xf32>
    %449 = vector.broadcast %10 : vector<4x1xf32> to vector<4x512xf32>
    %450 = arith.addf %448, %449 : vector<4x512xf32>
    %451 = vector.extract_strided_slice %450 {offsets = [0, 0], sizes = [1, 512], strides = [1, 1]} : vector<4x512xf32> to vector<1x512xf32>
    %452 = vector.extract_strided_slice %450 {offsets = [1, 0], sizes = [1, 512], strides = [1, 1]} : vector<4x512xf32> to vector<1x512xf32>
    %453 = vector.extract_strided_slice %450 {offsets = [2, 0], sizes = [1, 512], strides = [1, 1]} : vector<4x512xf32> to vector<1x512xf32>
    %454 = vector.extract_strided_slice %450 {offsets = [3, 0], sizes = [1, 512], strides = [1, 1]} : vector<4x512xf32> to vector<1x512xf32>
    %455 = arith.mulf %451, %451 : vector<1x512xf32>
    %456 = arith.mulf %452, %452 : vector<1x512xf32>
    %457 = arith.addf %455, %456 : vector<1x512xf32>
    %458 = arith.mulf %451, %453 : vector<1x512xf32>
    %459 = arith.mulf %452, %454 : vector<1x512xf32>
    %460 = arith.addf %458, %459 : vector<1x512xf32>
    %461 = arith.mulf %453, %453 : vector<1x512xf32>
    %462 = arith.mulf %454, %454 : vector<1x512xf32>
    %463 = arith.addf %461, %462 : vector<1x512xf32>
    %464 = vector.extract_strided_slice %323 {offsets = [0, 0], sizes = [1, 512], strides = [1, 1]} : vector<2x512xf32> to vector<1x512xf32>
    %465 = vector.extract_strided_slice %323 {offsets = [1, 0], sizes = [1, 512], strides = [1, 1]} : vector<2x512xf32> to vector<1x512xf32>
    %466 = arith.mulf %457, %464 : vector<1x512xf32>
    %467 = arith.mulf %460, %465 : vector<1x512xf32>
    %468 = arith.addf %466, %467 : vector<1x512xf32>
    %469 = arith.mulf %460, %464 : vector<1x512xf32>
    %470 = arith.mulf %463, %465 : vector<1x512xf32>
    %471 = arith.addf %469, %470 : vector<1x512xf32>
    %c0_i32 = arith.constant 0 : i32
    %472 = vector.broadcast %c0_i32 : i32 to vector<2x512xi32>
    %473 = arith.cmpi eq, %11, %472 : vector<2x512xi32>
    %474 = vector.shape_cast %468 : vector<1x512xf32> to vector<1x512xf32>
    %475 = vector.broadcast %474 : vector<1x512xf32> to vector<2x512xf32>
    %476 = vector.shape_cast %471 : vector<1x512xf32> to vector<1x512xf32>
    %477 = vector.broadcast %476 : vector<1x512xf32> to vector<2x512xf32>
    %478 = arith.select %473, %475, %477 : vector<2x512xi1>, vector<2x512xf32>
    %c0_29 = arith.constant 0 : index
    %c0_30 = arith.constant 0 : index
    %c0_31 = arith.constant 0 : index
    %479 = vector.load %arg13[%c0_29, %c0_30, %c0_31] : memref<1x2x512xf32, #tpu.memory_space<vmem>>, vector<1x2x512xf32>
    %480 = vector.shape_cast %479 : vector<1x2x512xf32> to vector<2x512xf32>
    %481 = vector.shape_cast %478 : vector<2x512xf32> to vector<1x2x512xf32>
    tpu.vector_store %arg13[%c0_29, %c0_30, %c0_31], %481 {strides = array<i32>} : memref<1x2x512xf32, #tpu.memory_space<vmem>>, vector<1x2x512xf32>,
    return
  }
  func.func @transform_0(%arg0: i32) -> (i32, i32, i32) {
    %c0_i32 = arith.constant 0 : i32
    %c0_i32_0 = arith.constant 0 : i32
    %c0_i32_1 = arith.constant 0 : i32
    return %arg0, %c0_i32, %c0_i32_0 : i32, i32, i32
  }
  func.func @transform_1(%arg0: i32) -> (i32, i32) {
    %c0_i32 = arith.constant 0 : i32
    %c0_i32_0 = arith.constant 0 : i32
    %c0_i32_1 = arith.constant 0 : i32
    return %c0_i32, %c0_i32_0 : i32, i32
  }
  func.func @transform_2(%arg0: i32) -> (i32, i32) {
    %c0_i32 = arith.constant 0 : i32
    %c0_i32_0 = arith.constant 0 : i32
    %c0_i32_1 = arith.constant 0 : i32
    return %c0_i32, %c0_i32_0 : i32, i32
  }
  func.func @transform_3(%arg0: i32) -> (i32, i32) {
    %c0_i32 = arith.constant 0 : i32
    %c0_i32_0 = arith.constant 0 : i32
    %c0_i32_1 = arith.constant 0 : i32
    return %c0_i32, %c0_i32_0 : i32, i32
  }
  func.func @transform_4(%arg0: i32) -> (i32, i32) {
    %c0_i32 = arith.constant 0 : i32
    %c0_i32_0 = arith.constant 0 : i32
    %c0_i32_1 = arith.constant 0 : i32
    return %c0_i32, %c0_i32_0 : i32, i32
  }
  func.func @transform_5(%arg0: i32) -> (i32, i32) {
    %c0_i32 = arith.constant 0 : i32
    %c0_i32_0 = arith.constant 0 : i32
    %c0_i32_1 = arith.constant 0 : i32
    return %c0_i32, %c0_i32_0 : i32, i32
  }
  func.func @transform_6(%arg0: i32) -> (i32, i32) {
    %c0_i32 = arith.constant 0 : i32
    %c0_i32_0 = arith.constant 0 : i32
    %c0_i32_1 = arith.constant 0 : i32
    return %c0_i32, %c0_i32_0 : i32, i32
  }
  func.func @transform_7(%arg0: i32) -> (i32, i32) {
    %c0_i32 = arith.constant 0 : i32
    %c0_i32_0 = arith.constant 0 : i32
    %c0_i32_1 = arith.constant 0 : i32
    return %c0_i32, %c0_i32_0 : i32, i32
  }
  func.func @transform_8(%arg0: i32) -> (i32, i32) {
    %c0_i32 = arith.constant 0 : i32
    %c0_i32_0 = arith.constant 0 : i32
    %c0_i32_1 = arith.constant 0 : i32
    return %c0_i32, %c0_i32_0 : i32, i32
  }
  func.func @transform_9(%arg0: i32) -> (i32, i32) {
    %c0_i32 = arith.constant 0 : i32
    %c0_i32_0 = arith.constant 0 : i32
    %c0_i32_1 = arith.constant 0 : i32
    return %c0_i32, %c0_i32_0 : i32, i32
  }
  func.func @transform_10(%arg0: i32) -> (i32, i32) {
    %c0_i32 = arith.constant 0 : i32
    %c0_i32_0 = arith.constant 0 : i32
    %c0_i32_1 = arith.constant 0 : i32
    return %c0_i32, %c0_i32_0 : i32, i32
  }
  func.func @transform_11(%arg0: i32) -> (i32, i32) {
    %c0_i32 = arith.constant 0 : i32
    %c0_i32_0 = arith.constant 0 : i32
    %c0_i32_1 = arith.constant 0 : i32
    return %c0_i32, %c0_i32_0 : i32, i32
  }
  func.func @transform_12(%arg0: i32) -> (i32, i32, i32) {
    %c0_i32 = arith.constant 0 : i32
    %c0_i32_0 = arith.constant 0 : i32
    %c0_i32_1 = arith.constant 0 : i32
    return %arg0, %c0_i32, %c0_i32_0 : i32, i32, i32
  }
}

</mosaic_0001>

<llo_original>
// kernel: tpu_custom_call.1
$region0: #{tpu_custom_call.1}
  #allocation0 [shape = 'u32[]', space=smem, size = 0x4, offset = 0x4, fixed_abs, tag = 'smem constant byte address 0x4 - core index']
  #allocation1 [shape = 'u32[144,128]{1,0:T(1,128)}', space=vmem, size = 0x12000, scoped, tag = 'internal scratch']
  %s0 = inlined_call_operand.vmem [shape: f32[2,2,512], index: 0, kind: input, shape index: {}]
  %s1 = inlined_call_operand.vmem [shape: f32[16,2], index: 1, kind: input, shape index: {}]
  %s2 = inlined_call_operand.vmem [shape: f32[2,16], index: 2, kind: input, shape index: {}]
  %s3 = inlined_call_operand.vmem [shape: f32[16,1], index: 3, kind: input, shape index: {}]
  %s4 = inlined_call_operand.vmem [shape: f32[16,8], index: 4, kind: input, shape index: {}]
  %s5 = inlined_call_operand.vmem [shape: f32[16,8], index: 5, kind: input, shape index: {}]
  %s6 = inlined_call_operand.vmem [shape: f32[8,2], index: 6, kind: input, shape index: {}]
  %s7 = inlined_call_operand.vmem [shape: f32[8,1], index: 7, kind: input, shape index: {}]
  %s8 = inlined_call_operand.vmem [shape: f32[8,8], index: 8, kind: input, shape index: {}]
  %s9 = inlined_call_operand.vmem [shape: f32[8,1], index: 9, kind: input, shape index: {}]
  %s10 = inlined_call_operand.vmem [shape: f32[4,8], index: 10, kind: input, shape index: {}]
  %s11 = inlined_call_operand.vmem [shape: f32[4,1], index: 11, kind: input, shape index: {}]
  %s12 = inlined_call_operand.hbm [shape: f32[2,2,512], index: 12, kind: output, shape index: {}]
  %s13 = sld [smem:[#allocation0]]
  $region81: #{tpu_custom_call.1} parent=0
    _
  %s15 = ssub.s32 1, %s13
  %s16 = scalar_select 0, %s15, %s13
  $region1: #{tpu_custom_call.1} parent=0
    #allocation2 [shape = 'u8[8192]{0}', space=vmem, size = 0x2000, scoped, tag = 'output window, operand 0']
    #allocation3 [shape = 's32[2]{0}', space=sflag, size = 0x8, scoped, tag = 'scoped memory for tpu_custom_call.1']
    %17 = vsyncpa [#allocation3], 0
    %s18 = scalar_lea.sflag [#allocation3], 1
    %19 = vsyncpa %s18, 0
    loop: start=0, step=1, limit=4
    $region2: #{tpu_custom_call.1} parent=1 // loop_pre_header
      _
    $region3: #{tpu_custom_call.1} parent=1 // loop_header
      %s21 = sphi 0, %s25
      %p22 = scmp.ge.s32.totalorder %s21, 4
      %s31 = sphi 0, %s33
      %s34 = sphi 0, %s31
      %s35 = sphi 0, %s34
      %s51 = sphi 0, %s35
      %s55 = sphi 0, %s55
      %s57 = sphi 0, %s55
      %s58 = sphi 0, %s57
      %s72 = sphi 0, %s58
      %s76 = sphi 0, %s76
      %s78 = sphi 0, %s76
      %s79 = sphi 0, %s78
      %s93 = sphi 0, %s79
      %s97 = sphi 0, %s97
      %s99 = sphi 0, %s97
      %s100 = sphi 0, %s99
      %s114 = sphi 0, %s100
      %s118 = sphi 0, %s118
      %s120 = sphi 0, %s118
      %s121 = sphi 0, %s120
      %s135 = sphi 0, %s121
      %s139 = sphi 0, %s139
      %s141 = sphi 0, %s139
      %s142 = sphi 0, %s141
      %s156 = sphi 0, %s142
      %s160 = sphi 0, %s160
      %s162 = sphi 0, %s160
      %s163 = sphi 0, %s162
      %s177 = sphi 0, %s163
      %s181 = sphi 0, %s181
      %s183 = sphi 0, %s181
      %s184 = sphi 0, %s183
      %s198 = sphi 0, %s184
      %s202 = sphi 0, %s202
      %s204 = sphi 0, %s202
      %s205 = sphi 0, %s204
      %s219 = sphi 0, %s205
      %s223 = sphi 0, %s223
      %s225 = sphi 0, %s223
      %s226 = sphi 0, %s225
      %s240 = sphi 0, %s226
      %s244 = sphi 0, %s244
      %s246 = sphi 0, %s244
      %s247 = sphi 0, %s246
      %s261 = sphi 0, %s247
      %s265 = sphi 0, %s265
      %s267 = sphi 0, %s265
      %s268 = sphi 0, %s267
      %s282 = sphi 0, %s268
      %s288 = sphi 0, %s290
      %s291 = sphi 0, %s288
      %s292 = sphi 0, %s291
      %s308 = sphi 0, %s292
    $region4: #{tpu_custom_call.1} parent=1 // loop_header_branch
      %24 = sbr.rel (%p22) target = $region8
    $region5: #{tpu_custom_call.1} parent=1 // loop_body
      %s26 = ssub.s32 %s21, 1
      %s27 = ssub.s32 %s21, 2
      %s28 = sadd.s32 %s21, 1
      %s29 = ssub.s32 %s21, %s28
      %p30 = scmp.eq.s32.totalorder %s29, 0
      %s32 = sadd.s32 %s31, 1
      %s33 = scalar_select %p30, %s31, %s32
      %p36 = pneg %p30
      %p37 = scmp.eq.s32.totalorder %s21, 1
      %p38 = por %p36, %p37
      %p39 = scmp.ne.s32.totalorder %s31, %s34
      %p40 = scmp.eq.s32.totalorder %s21, 0
      %p41 = por %p39, %p40
      %p42 = scmp.ne.s32.totalorder %s31, %s34
      %p43 = scmp.eq.s32.totalorder %s26, 1
      %p44 = por %p42, %p43
      %p45 = scmp.ne.s32.totalorder %s34, %s35
      %p46 = scmp.eq.s32.totalorder %s26, 0
      %p47 = por %p45, %p46
      %p48 = scmp.ne.s32.totalorder %s34, %s35
      %p49 = scmp.eq.s32.totalorder %s27, 1
      %p50 = por %p48, %p49
      %p52 = scmp.ne.s32.totalorder %s35, %s51
      %p53 = scmp.eq.s32.totalorder %s27, 0
      %p54 = por %p52, %p53
      %s56 = sadd.s32 %s55, 1
      %p59 = scmp.eq.s32.totalorder %s21, 1
      %p60 = scmp.ne.s32.totalorder %s55, %s57
      %p61 = scmp.eq.s32.totalorder %s21, 0
      %p62 = por %p60, %p61
      %p63 = scmp.ne.s32.totalorder %s55, %s57
      %p64 = scmp.eq.s32.totalorder %s26, 1
      %p65 = por %p63, %p64
      %p66 = scmp.ne.s32.totalorder %s57, %s58
      %p67 = scmp.eq.s32.totalorder %s26, 0
      %p68 = por %p66, %p67
      %p69 = scmp.ne.s32.totalorder %s57, %s58
      %p70 = scmp.eq.s32.totalorder %s27, 1
      %p71 = por %p69, %p70
      %p73 = scmp.ne.s32.totalorder %s58, %s72
      %p74 = scmp.eq.s32.totalorder %s27, 0
      %p75 = por %p73, %p74
      %s77 = sadd.s32 %s76, 1
      %p80 = scmp.eq.s32.totalorder %s21, 1
      %p81 = scmp.ne.s32.totalorder %s76, %s78
      %p82 = scmp.eq.s32.totalorder %s21, 0
      %p83 = por %p81, %p82
      %p84 = scmp.ne.s32.totalorder %s76, %s78
      %p85 = scmp.eq.s32.totalorder %s26, 1
      %p86 = por %p84, %p85
      %p87 = scmp.ne.s32.totalorder %s78, %s79
      %p88 = scmp.eq.s32.totalorder %s26, 0
      %p89 = por %p87, %p88
      %p90 = scmp.ne.s32.totalorder %s78, %s79
      %p91 = scmp.eq.s32.totalorder %s27, 1
      %p92 = por %p90, %p91
      %p94 = scmp.ne.s32.totalorder %s79, %s93
      %p95 = scmp.eq.s32.totalorder %s27, 0
      %p96 = por %p94, %p95
      %s98 = sadd.s32 %s97, 1
      %p101 = scmp.eq.s32.totalorder %s21, 1
      %p102 = scmp.ne.s32.totalorder %s97, %s99
      %p103 = scmp.eq.s32.totalorder %s21, 0
      %p104 = por %p102, %p103
      %p105 = scmp.ne.s32.totalorder %s97, %s99
      %p106 = scmp.eq.s32.totalorder %s26, 1
      %p107 = por %p105, %p106
      %p108 = scmp.ne.s32.totalorder %s99, %s100
      %p109 = scmp.eq.s32.totalorder %s26, 0
      %p110 = por %p108, %p109
      %p111 = scmp.ne.s32.totalorder %s99, %s100
      %p112 = scmp.eq.s32.totalorder %s27, 1
      %p113 = por %p111, %p112
      %p115 = scmp.ne.s32.totalorder %s100, %s114
      %p116 = scmp.eq.s32.totalorder %s27, 0
      %p117 = por %p115, %p116
      %s119 = sadd.s32 %s118, 1
      %p122 = scmp.eq.s32.totalorder %s21, 1
      %p123 = scmp.ne.s32.totalorder %s118, %s120
      %p124 = scmp.eq.s32.totalorder %s21, 0
      %p125 = por %p123, %p124
      %p126 = scmp.ne.s32.totalorder %s118, %s120
      %p127 = scmp.eq.s32.totalorder %s26, 1
      %p128 = por %p126, %p127
      %p129 = scmp.ne.s32.totalorder %s120, %s121
      %p130 = scmp.eq.s32.totalorder %s26, 0
      %p131 = por %p129, %p130
      %p132 = scmp.ne.s32.totalorder %s120, %s121
      %p133 = scmp.eq.s32.totalorder %s27, 1
      %p134 = por %p132, %p133
      %p136 = scmp.ne.s32.totalorder %s121, %s135
      %p137 = scmp.eq.s32.totalorder %s27, 0
      %p138 = por %p136, %p137
      %s140 = sadd.s32 %s139, 1
      %p143 = scmp.eq.s32.totalorder %s21, 1
      %p144 = scmp.ne.s32.totalorder %s139, %s141
      %p145 = scmp.eq.s32.totalorder %s21, 0
      %p146 = por %p144, %p145
      %p147 = scmp.ne.s32.totalorder %s139, %s141
      %p148 = scmp.eq.s32.totalorder %s26, 1
      %p149 = por %p147, %p148
      %p150 = scmp.ne.s32.totalorder %s141, %s142
      %p151 = scmp.eq.s32.totalorder %s26, 0
      %p152 = por %p150, %p151
      %p153 = scmp.ne.s32.totalorder %s141, %s142
      %p154 = scmp.eq.s32.totalorder %s27, 1
      %p155 = por %p153, %p154
      %p157 = scmp.ne.s32.totalorder %s142, %s156
      %p158 = scmp.eq.s32.totalorder %s27, 0
      %p159 = por %p157, %p158
      %s161 = sadd.s32 %s160, 1
      %p164 = scmp.eq.s32.totalorder %s21, 1
      %p165 = scmp.ne.s32.totalorder %s160, %s162
      %p166 = scmp.eq.s32.totalorder %s21, 0
      %p167 = por %p165, %p166
      %p168 = scmp.ne.s32.totalorder %s160, %s162
      %p169 = scmp.eq.s32.totalorder %s26, 1
      %p170 = por %p168, %p169
      %p171 = scmp.ne.s32.totalorder %s162, %s163
      %p172 = scmp.eq.s32.totalorder %s26, 0
      %p173 = por %p171, %p172
      %p174 = scmp.ne.s32.totalorder %s162, %s163
      %p175 = scmp.eq.s32.totalorder %s27, 1
      %p176 = por %p174, %p175
      %p178 = scmp.ne.s32.totalorder %s163, %s177
      %p179 = scmp.eq.s32.totalorder %s27, 0
      %p180 = por %p178, %p179
      %s182 = sadd.s32 %s181, 1
      %p185 = scmp.eq.s32.totalorder %s21, 1
      %p186 = scmp.ne.s32.totalorder %s181, %s183
      %p187 = scmp.eq.s32.totalorder %s21, 0
      %p188 = por %p186, %p187
      %p189 = scmp.ne.s32.totalorder %s181, %s183
      %p190 = scmp.eq.s32.totalorder %s26, 1
      %p191 = por %p189, %p190
      %p192 = scmp.ne.s32.totalorder %s183, %s184
      %p193 = scmp.eq.s32.totalorder %s26, 0
      %p194 = por %p192, %p193
      %p195 = scmp.ne.s32.totalorder %s183, %s184
      %p196 = scmp.eq.s32.totalorder %s27, 1
      %p197 = por %p195, %p196
      %p199 = scmp.ne.s32.totalorder %s184, %s198
      %p200 = scmp.eq.s32.totalorder %s27, 0
      %p201 = por %p199, %p200
      %s203 = sadd.s32 %s202, 1
      %p206 = scmp.eq.s32.totalorder %s21, 1
      %p207 = scmp.ne.s32.totalorder %s202, %s204
      %p208 = scmp.eq.s32.totalorder %s21, 0
      %p209 = por %p207, %p208
      %p210 = scmp.ne.s32.totalorder %s202, %s204
      %p211 = scmp.eq.s32.totalorder %s26, 1
      %p212 = por %p210, %p211
      %p213 = scmp.ne.s32.totalorder %s204, %s205
      %p214 = scmp.eq.s32.totalorder %s26, 0
      %p215 = por %p213, %p214
      %p216 = scmp.ne.s32.totalorder %s204, %s205
      %p217 = scmp.eq.s32.totalorder %s27, 1
      %p218 = por %p216, %p217
      %p220 = scmp.ne.s32.totalorder %s205, %s219
      %p221 = scmp.eq.s32.totalorder %s27, 0
      %p222 = por %p220, %p221
      %s224 = sadd.s32 %s223, 1
      %p227 = scmp.eq.s32.totalorder %s21, 1
      %p228 = scmp.ne.s32.totalorder %s223, %s225
      %p229 = scmp.eq.s32.totalorder %s21, 0
      %p230 = por %p228, %p229
      %p231 = scmp.ne.s32.totalorder %s223, %s225
      %p232 = scmp.eq.s32.totalorder %s26, 1
      %p233 = por %p231, %p232
      %p234 = scmp.ne.s32.totalorder %s225, %s226
      %p235 = scmp.eq.s32.totalorder %s26, 0
      %p236 = por %p234, %p235
      %p237 = scmp.ne.s32.totalorder %s225, %s226
      %p238 = scmp.eq.s32.totalorder %s27, 1
      %p239 = por %p237, %p238
      %p241 = scmp.ne.s32.totalorder %s226, %s240
      %p242 = scmp.eq.s32.totalorder %s27, 0
      %p243 = por %p241, %p242
      %s245 = sadd.s32 %s244, 1
      %p248 = scmp.eq.s32.totalorder %s21, 1
      %p249 = scmp.ne.s32.totalorder %s244, %s246
      %p250 = scmp.eq.s32.totalorder %s21, 0
      %p251 = por %p249, %p250
      %p252 = scmp.ne.s32.totalorder %s244, %s246
      %p253 = scmp.eq.s32.totalorder %s26, 1
      %p254 = por %p252, %p253
      %p255 = scmp.ne.s32.totalorder %s246, %s247
      %p256 = scmp.eq.s32.totalorder %s26, 0
      %p257 = por %p255, %p256
      %p258 = scmp.ne.s32.totalorder %s246, %s247
      %p259 = scmp.eq.s32.totalorder %s27, 1
      %p260 = por %p258, %p259
      %p262 = scmp.ne.s32.totalorder %s247, %s261
      %p263 = scmp.eq.s32.totalorder %s27, 0
      %p264 = por %p262, %p263
      %s266 = sadd.s32 %s265, 1
      %p269 = scmp.eq.s32.totalorder %s21, 1
      %p270 = scmp.ne.s32.totalorder %s265, %s267
      %p271 = scmp.eq.s32.totalorder %s21, 0
      %p272 = por %p270, %p271
      %p273 = scmp.ne.s32.totalorder %s265, %s267
      %p274 = scmp.eq.s32.totalorder %s26, 1
      %p275 = por %p273, %p274
      %p276 = scmp.ne.s32.totalorder %s267, %s268
      %p277 = scmp.eq.s32.totalorder %s26, 0
      %p278 = por %p276, %p277
      %p279 = scmp.ne.s32.totalorder %s267, %s268
      %p280 = scmp.eq.s32.totalorder %s27, 1
      %p281 = por %p279, %p280
      %p283 = scmp.ne.s32.totalorder %s268, %s282
      %p284 = scmp.eq.s32.totalorder %s27, 0
      %p285 = por %p283, %p284
      %s286 = ssub.s32 %s21, %s28
      %p287 = scmp.eq.s32.totalorder %s286, 0
      %s289 = sadd.s32 %s288, 1
      %s290 = scalar_select %p287, %s288, %s289
      %p293 = pneg %p287
      %p294 = scmp.eq.s32.totalorder %s21, 1
      %p295 = por %p293, %p294
      %p296 = scmp.ne.s32.totalorder %s288, %s291
      %p297 = scmp.eq.s32.totalorder %s21, 0
      %p298 = por %p296, %p297
      %p299 = scmp.ne.s32.totalorder %s288, %s291
      %p300 = scmp.eq.s32.totalorder %s26, 1
      %p301 = por %p299, %p300
      %p302 = scmp.ne.s32.totalorder %s291, %s292
      %p303 = scmp.eq.s32.totalorder %s26, 0
      %p304 = por %p302, %p303
      %p305 = scmp.ne.s32.totalorder %s291, %s292
      %p306 = scmp.eq.s32.totalorder %s27, 1
      %p307 = por %p305, %p306
      %p309 = scmp.ne.s32.totalorder %s292, %s308
      %p310 = scmp.eq.s32.totalorder %s27, 0
      %p311 = por %p309, %p310
      %p312 = scmp.le.s32.totalorder 1, %s21
      %p313 = scmp.lt.s32.totalorder %s21, 3
      %p314 = pnand %p312, %p313
      %p315 = pneg %p314
      // Predicated region
      $region9: #{tpu_custom_call.1} parent=5 // pred_check
        _
      $region10: #{tpu_custom_call.1} parent=5 // pred_check_branch
        %317 = sbr.rel (%p314) target = $region12
      $region11: #{tpu_custom_call.1} parent=5 // pred_region
        %s318 = ssub.s32 %s21, 1
        // Predicated region
        $region13: #{tpu_custom_call.1} parent=11 // pred_check
          %p319 = pneg %p68
        $region14: #{tpu_custom_call.1} parent=11 // pred_check_branch
          %321 = sbr.rel (%p319) target = $region16
        $region15: #{tpu_custom_call.1} parent=11 // pred_region
          _
        $region16: #{tpu_custom_call.1} parent=11 // pred_fallthru
          _
        // Predicated region
        $region17: #{tpu_custom_call.1} parent=11 // pred_check
          %p322 = pneg %p89
        $region18: #{tpu_custom_call.1} parent=11 // pred_check_branch
          %324 = sbr.rel (%p322) target = $region20
        $region19: #{tpu_custom_call.1} parent=11 // pred_region
          _
        $region20: #{tpu_custom_call.1} parent=11 // pred_fallthru
          _
        // Predicated region
        $region21: #{tpu_custom_call.1} parent=11 // pred_check
          %p325 = pneg %p110
        $region22: #{tpu_custom_call.1} parent=11 // pred_check_branch
          %327 = sbr.rel (%p325) target = $region24
        $region23: #{tpu_custom_call.1} parent=11 // pred_region
          _
        $region24: #{tpu_custom_call.1} parent=11 // pred_fallthru
          _
        // Predicated region
        $region25: #{tpu_custom_call.1} parent=11 // pred_check
          %p328 = pneg %p131
        $region26: #{tpu_custom_call.1} parent=11 // pred_check_branch
          %330 = sbr.rel (%p328) target = $region28
        $region27: #{tpu_custom_call.1} parent=11 // pred_region
          _
        $region28: #{tpu_custom_call.1} parent=11 // pred_fallthru
          _
        // Predicated region
        $region29: #{tpu_custom_call.1} parent=11 // pred_check
          %p331 = pneg %p152
        $region30: #{tpu_custom_call.1} parent=11 // pred_check_branch
          %333 = sbr.rel (%p331) target = $region32
        $region31: #{tpu_custom_call.1} parent=11 // pred_region
          _
        $region32: #{tpu_custom_call.1} parent=11 // pred_fallthru
          _
        // Predicated region
        $region33: #{tpu_custom_call.1} parent=11 // pred_check
          %p334 = pneg %p173
        $region34: #{tpu_custom_call.1} parent=11 // pred_check_branch
          %336 = sbr.rel (%p334) target = $region36
        $region35: #{tpu_custom_call.1} parent=11 // pred_region
          _
        $region36: #{tpu_custom_call.1} parent=11 // pred_fallthru
          _
        // Predicated region
        $region37: #{tpu_custom_call.1} parent=11 // pred_check
          %p337 = pneg %p194
        $region38: #{tpu_custom_call.1} parent=11 // pred_check_branch
          %339 = sbr.rel (%p337) target = $region40
        $region39: #{tpu_custom_call.1} parent=11 // pred_region
          _
        $region40: #{tpu_custom_call.1} parent=11 // pred_fallthru
          _
        // Predicated region
        $region41: #{tpu_custom_call.1} parent=11 // pred_check
          %p340 = pneg %p215
        $region42: #{tpu_custom_call.1} parent=11 // pred_check_branch
          %342 = sbr.rel (%p340) target = $region44
        $region43: #{tpu_custom_call.1} parent=11 // pred_region
          _
        $region44: #{tpu_custom_call.1} parent=11 // pred_fallthru
          _
        // Predicated region
        $region45: #{tpu_custom_call.1} parent=11 // pred_check
          %p343 = pneg %p236
        $region46: #{tpu_custom_call.1} parent=11 // pred_check_branch
          %345 = sbr.rel (%p343) target = $region48
        $region47: #{tpu_custom_call.1} parent=11 // pred_region
          _
        $region48: #{tpu_custom_call.1} parent=11 // pred_fallthru
          _
        // Predicated region
        $region49: #{tpu_custom_call.1} parent=11 // pred_check
          %p346 = pneg %p257
        $region50: #{tpu_custom_call.1} parent=11 // pred_check_branch
          %348 = sbr.rel (%p346) target = $region52
        $region51: #{tpu_custom_call.1} parent=11 // pred_region
          _
        $region52: #{tpu_custom_call.1} parent=11 // pred_fallthru
          _
        // Predicated region
        $region53: #{tpu_custom_call.1} parent=11 // pred_check
          %p349 = pneg %p278
        $region54: #{tpu_custom_call.1} parent=11 // pred_check_branch
          %351 = sbr.rel (%p349) target = $region56
        $region55: #{tpu_custom_call.1} parent=11 // pred_region
          _
        $region56: #{tpu_custom_call.1} parent=11 // pred_fallthru
          _
      $region12: #{tpu_custom_call.1} parent=5 // pred_fallthru
        _
      %p352 = scmp.lt.s32.totalorder %s21, 2
      // Predicated region
      $region57: #{tpu_custom_call.1} parent=5 // pred_check
        %p353 = pneg %p352
      $region58: #{tpu_custom_call.1} parent=5 // pred_check_branch
        %355 = sbr.rel (%p353) target = $region60
      $region59: #{tpu_custom_call.1} parent=5 // pred_region
        // Predicated region
        $region61: #{tpu_custom_call.1} parent=59 // pred_check
          %p356 = pneg %p41
        $region62: #{tpu_custom_call.1} parent=59 // pred_check_branch
          %358 = sbr.rel (%p356) target = $region64
        $region63: #{tpu_custom_call.1} parent=59 // pred_region
          %p359 = scmp.lt.s32.totalorder %s21, 1
          %s360 = scalar_select %p359, %s21, 1
          %s361 = smul.addr %s360, 4
          %s362 = smul.addr %s361, 2
          %s363 = scalar_lea.vmem %s0, %s362
        $region64: #{tpu_custom_call.1} parent=59 // pred_fallthru
          _
      $region60: #{tpu_custom_call.1} parent=5 // pred_fallthru
        _
      %p364 = scmp.le.s32.totalorder 1, %s21
      %p365 = scmp.lt.s32.totalorder %s21, 3
      %p366 = pnand %p364, %p365
      %p367 = pneg %p366
      // Predicated region
      $region65: #{tpu_custom_call.1} parent=5 // pred_check
        _
      $region66: #{tpu_custom_call.1} parent=5 // pred_check_branch
        %369 = sbr.rel (%p366) target = $region68
      $region67: #{tpu_custom_call.1} parent=5 // pred_region
        %s370 = ssub.s32 %s21, 1
        %p371 = scmp.lt.s32.totalorder %s26, 1
        %s372 = scalar_select %p371, %s26, 1
        %s373 = smul.addr %s372, 4
        %s374 = smul.addr %s373, 2
        %s375 = scalar_lea.vmem %s0, %s374
        %p376 = pneg %p47
        %p377 = pneg %p44
        %p378 = pneg %p68
        %p379 = pneg %p65
        %p380 = pneg %p89
        %p381 = pneg %p86
        %p382 = pneg %p110
        %p383 = pneg %p107
        %p384 = pneg %p131
        %p385 = pneg %p128
        %p386 = pneg %p152
        %p387 = pneg %p149
        %p388 = pneg %p173
        %p389 = pneg %p170
        %p390 = pneg %p194
        %p391 = pneg %p191
        %p392 = pneg %p215
        %p393 = pneg %p212
        %p394 = pneg %p236
        %p395 = pneg %p233
        %p396 = pneg %p257
        %p397 = pneg %p254
        %p398 = pneg %p278
        %p399 = pneg %p275
        %p400 = pneg %p304
        %p401 = pneg %p301
        %s402 = sand.u32 %s291, 1
        %s403 = scalar_lea.sflag [#allocation3], %s402
        %s404 = sand.u32 %s291, 1
        %s405 = smul.addr %s404, 8
        %s406 = scalar_lea.vmem [#allocation2], %s405
        %p407 = scmp.lt.s32.totalorder %s26, 1
        %s408 = scalar_select %p407, %s26, 1
        %s409 = smul.addr %s408, 4
        %s410 = smul.addr %s409, 2
        %s411 = scalar_lea.vmem %s0, %s410
        %v412 = vld [vmem:[%s1] sm:$0xff]
        %v413 = vld [vmem:[%s1 + $0x8] sm:$0xff]
        %v414 = vld [vmem:[%s2] sm:$0x3]
        %v415 = vld [vmem:[%s3] sm:$0xff]
        %v416 = vld [vmem:[%s3 + $0x8] sm:$0xff]
        %v417 = vld [vmem:[%s4] sm:$0xff]
        %v418 = vld [vmem:[%s4 + $0x8] sm:$0xff]
        %v419 = vld [vmem:[%s5] sm:$0xff]
        %v420 = vld [vmem:[%s5 + $0x8] sm:$0xff]
        %v421 = vld [vmem:[%s6] sm:$0xff]
        %v422 = vld [vmem:[%s7] sm:$0xff]
        %v423 = vld [vmem:[%s8] sm:$0xff]
        %v424 = vld [vmem:[%s9] sm:$0xff]
        %v425 = vld [vmem:[%s10] sm:$0xf]
        %v426 = vld [vmem:[%s11] sm:$0xf]
        %v427 = vlaneseq
        %v428 = vshrl.u32 %v427, 7
        %v429 = vld [vmem:[%s411] sm:$0xff]
        %431 = vset.pattern.permute.xlu0 0
        %432 = vperm.xlu0 %431, %v412
        %v433 = vpop.permute.xlu0 %432
        %436 = vset.pattern.permute.xlu0 0
        %437 = vperm.xlu0 %436, %v413
        %v438 = vpop.permute.xlu0 %437
        %v441 = vlaneseq
        %v442 = vshrl.u32 %v441, 7
        %v443 = vsub.s32 0, %v442
        %v444 = vrot.slane %v429, %v443
        %v445 = vlaneseq
        %v446 = vshrl.u32 %v445, 7
        %v447 = vsub.s32 2, %v446
        %v448 = vrot.slane %v429, %v447
        %v449 = vlaneseq
        %v450 = vshrl.u32 %v449, 7
        %v451 = vsub.s32 4, %v450
        %v452 = vrot.slane %v429, %v451
        %v453 = vlaneseq
        %v454 = vshrl.u32 %v453, 7
        %v455 = vsub.s32 6, %v454
        %v456 = vrot.slane %v429, %v455
        %v461 = vlaneseq
        %v462 = vshrl.u32 %v461, 7
        %v463 = vsub.s32 0, %v462
        %v464 = vrot.slane %v444, %v463
        %v465 = vlaneseq
        %v466 = vshrl.u32 %v465, 7
        %v467 = vsub.s32 0, %v466
        %v468 = vrot.slane %v448, %v467
        %v469 = vlaneseq
        %v470 = vshrl.u32 %v469, 7
        %v471 = vsub.s32 0, %v470
        %v472 = vrot.slane %v452, %v471
        %v473 = vlaneseq
        %v474 = vshrl.u32 %v473, 7
        %v475 = vsub.s32 0, %v474
        %v476 = vrot.slane %v456, %v475
        %v477 = vmul.f32 %v433, %v464
        %v478 = vmul.f32 %v433, %v468
        %v479 = vmul.f32 %v433, %v472
        %v480 = vmul.f32 %v433, %v476
        %v481 = vmul.f32 %v438, %v464
        %v482 = vmul.f32 %v438, %v468
        %v483 = vmul.f32 %v438, %v472
        %v484 = vmul.f32 %v438, %v476
        %485 = vset.pattern.permute.xlu0 1
        %486 = vperm.xlu0 %485, %v412
        %v487 = vpop.permute.xlu0 %486
        %489 = vset.pattern.permute.xlu0 1
        %490 = vperm.xlu0 %489, %v413
        %v491 = vpop.permute.xlu0 %490
        %v493 = vlaneseq
        %v494 = vshrl.u32 %v493, 7
        %v495 = vsub.s32 1, %v494
        %v496 = vrot.slane %v429, %v495
        %v497 = vlaneseq
        %v498 = vshrl.u32 %v497, 7
        %v499 = vsub.s32 3, %v498
        %v500 = vrot.slane %v429, %v499
        %v501 = vlaneseq
        %v502 = vshrl.u32 %v501, 7
        %v503 = vsub.s32 5, %v502
        %v504 = vrot.slane %v429, %v503
        %v505 = vlaneseq
        %v506 = vshrl.u32 %v505, 7
        %v507 = vsub.s32 7, %v506
        %v508 = vrot.slane %v429, %v507
        %v513 = vlaneseq
        %v514 = vshrl.u32 %v513, 7
        %v515 = vsub.s32 1, %v514
        %v516 = vrot.slane %v496, %v515
        %v517 = vlaneseq
        %v518 = vshrl.u32 %v517, 7
        %v519 = vsub.s32 1, %v518
        %v520 = vrot.slane %v500, %v519
        %v521 = vlaneseq
        %v522 = vshrl.u32 %v521, 7
        %v523 = vsub.s32 1, %v522
        %v524 = vrot.slane %v504, %v523
        %v525 = vlaneseq
        %v526 = vshrl.u32 %v525, 7
        %v527 = vsub.s32 1, %v526
        %v528 = vrot.slane %v508, %v527
        %v529 = vmul.f32 %v487, %v516
        %v530 = vmul.f32 %v487, %v520
        %v531 = vmul.f32 %v487, %v524
        %v532 = vmul.f32 %v487, %v528
        %v533 = vmul.f32 %v491, %v516
        %v534 = vmul.f32 %v491, %v520
        %v535 = vmul.f32 %v491, %v524
        %v536 = vmul.f32 %v491, %v528
        %v537 = vadd.f32 %v477, %v529
        %v538 = vadd.f32 %v478, %v530
        %v539 = vadd.f32 %v479, %v531
        %v540 = vadd.f32 %v480, %v532
        %v541 = vadd.f32 %v481, %v533
        %v542 = vadd.f32 %v482, %v534
        %v543 = vadd.f32 %v483, %v535
        %v544 = vadd.f32 %v484, %v536
        %546 = vset.pattern.permute.xlu0 0
        %547 = vperm.xlu0 %546, %v415
        %v548 = vpop.permute.xlu0 %547
        %551 = vset.pattern.permute.xlu0 0
        %552 = vperm.xlu0 %551, %v416
        %v553 = vpop.permute.xlu0 %552
        %v555 = vadd.f32 %v537, %v548
        %v556 = vadd.f32 %v538, %v548
        %v557 = vadd.f32 %v539, %v548
        %v558 = vadd.f32 %v540, %v548
        %v559 = vadd.f32 %v541, %v553
        %v560 = vadd.f32 %v542, %v553
        %v561 = vadd.f32 %v543, %v553
        %v562 = vadd.f32 %v544, %v553
        %v563 = vmul.f32 %v555, %v555
        %v564 = vmul.f32 %v556, %v556
        %v565 = vmul.f32 %v557, %v557
        %v566 = vmul.f32 %v558, %v558
        %568 = vset.pattern.permute.xlu0 0
        %569 = vperm.xlu0 %568, %v417
        %v570 = vpop.permute.xlu0 %569
        %v572 = vlaneseq
        %v573 = vshrl.u32 %v572, 7
        %v574 = vsub.s32 0, %v573
        %v575 = vrot.slane %v563, %v574
        %v576 = vlaneseq
        %v577 = vshrl.u32 %v576, 7
        %v578 = vsub.s32 0, %v577
        %v579 = vrot.slane %v564, %v578
        %v580 = vlaneseq
        %v581 = vshrl.u32 %v580, 7
        %v582 = vsub.s32 0, %v581
        %v583 = vrot.slane %v565, %v582
        %v584 = vlaneseq
        %v585 = vshrl.u32 %v584, 7
        %v586 = vsub.s32 0, %v585
        %v587 = vrot.slane %v566, %v586
        %v588 = vmul.f32 %v570, %v575
        %v589 = vmul.f32 %v570, %v579
        %v590 = vmul.f32 %v570, %v583
        %v591 = vmul.f32 %v570, %v587
        %592 = vset.pattern.permute.xlu0 1
        %593 = vperm.xlu0 %592, %v417
        %v594 = vpop.permute.xlu0 %593
        %v596 = vlaneseq
        %v597 = vshrl.u32 %v596, 7
        %v598 = vsub.s32 1, %v597
        %v599 = vrot.slane %v563, %v598
        %v600 = vlaneseq
        %v601 = vshrl.u32 %v600, 7
        %v602 = vsub.s32 1, %v601
        %v603 = vrot.slane %v564, %v602
        %v604 = vlaneseq
        %v605 = vshrl.u32 %v604, 7
        %v606 = vsub.s32 1, %v605
        %v607 = vrot.slane %v565, %v606
        %v608 = vlaneseq
        %v609 = vshrl.u32 %v608, 7
        %v610 = vsub.s32 1, %v609
        %v611 = vrot.slane %v566, %v610
        %v612 = vmul.f32 %v594, %v599
        %v613 = vmul.f32 %v594, %v603
        %v614 = vmul.f32 %v594, %v607
        %v615 = vmul.f32 %v594, %v611
        %v616 = vadd.f32 %v588, %v612
        %v617 = vadd.f32 %v589, %v613
        %v618 = vadd.f32 %v590, %v614
        %v619 = vadd.f32 %v591, %v615
        %620 = vset.pattern.permute.xlu0 2
        %621 = vperm.xlu0 %620, %v417
        %v622 = vpop.permute.xlu0 %621
        %v624 = vlaneseq
        %v625 = vshrl.u32 %v624, 7
        %v626 = vsub.s32 2, %v625
        %v627 = vrot.slane %v563, %v626
        %v628 = vlaneseq
        %v629 = vshrl.u32 %v628, 7
        %v630 = vsub.s32 2, %v629
        %v631 = vrot.slane %v564, %v630
        %v632 = vlaneseq
        %v633 = vshrl.u32 %v632, 7
        %v634 = vsub.s32 2, %v633
        %v635 = vrot.slane %v565, %v634
        %v636 = vlaneseq
        %v637 = vshrl.u32 %v636, 7
        %v638 = vsub.s32 2, %v637
        %v639 = vrot.slane %v566, %v638
        %v640 = vmul.f32 %v622, %v627
        %v641 = vmul.f32 %v622, %v631
        %v642 = vmul.f32 %v622, %v635
        %v643 = vmul.f32 %v622, %v639
        %v644 = vadd.f32 %v616, %v640
        %v645 = vadd.f32 %v617, %v641
        %v646 = vadd.f32 %v618, %v642
        %v647 = vadd.f32 %v619, %v643
        %648 = vset.pattern.permute.xlu0 3
        %649 = vperm.xlu0 %648, %v417
        %v650 = vpop.permute.xlu0 %649
        %v652 = vlaneseq
        %v653 = vshrl.u32 %v652, 7
        %v654 = vsub.s32 3, %v653
        %v655 = vrot.slane %v563, %v654
        %v656 = vlaneseq
        %v657 = vshrl.u32 %v656, 7
        %v658 = vsub.s32 3, %v657
        %v659 = vrot.slane %v564, %v658
        %v660 = vlaneseq
        %v661 = vshrl.u32 %v660, 7
        %v662 = vsub.s32 3, %v661
        %v663 = vrot.slane %v565, %v662
        %v664 = vlaneseq
        %v665 = vshrl.u32 %v664, 7
        %v666 = vsub.s32 3, %v665
        %v667 = vrot.slane %v566, %v666
        %v668 = vmul.f32 %v650, %v655
        %v669 = vmul.f32 %v650, %v659
        %v670 = vmul.f32 %v650, %v663
        %v671 = vmul.f32 %v650, %v667
        %v672 = vadd.f32 %v644, %v668
        %v673 = vadd.f32 %v645, %v669
        %v674 = vadd.f32 %v646, %v670
        %v675 = vadd.f32 %v647, %v671
        %676 = vset.pattern.permute.xlu0 4
        %677 = vperm.xlu0 %676, %v417
        %v678 = vpop.permute.xlu0 %677
        %v680 = vlaneseq
        %v681 = vshrl.u32 %v680, 7
        %v682 = vsub.s32 4, %v681
        %v683 = vrot.slane %v563, %v682
        %v684 = vlaneseq
        %v685 = vshrl.u32 %v684, 7
        %v686 = vsub.s32 4, %v685
        %v687 = vrot.slane %v564, %v686
        %v688 = vlaneseq
        %v689 = vshrl.u32 %v688, 7
        %v690 = vsub.s32 4, %v689
        %v691 = vrot.slane %v565, %v690
        %v692 = vlaneseq
        %v693 = vshrl.u32 %v692, 7
        %v694 = vsub.s32 4, %v693
        %v695 = vrot.slane %v566, %v694
        %v696 = vmul.f32 %v678, %v683
        %v697 = vmul.f32 %v678, %v687
        %v698 = vmul.f32 %v678, %v691
        %v699 = vmul.f32 %v678, %v695
        %v700 = vadd.f32 %v672, %v696
        %v701 = vadd.f32 %v673, %v697
        %v702 = vadd.f32 %v674, %v698
        %v703 = vadd.f32 %v675, %v699
        %704 = vset.pattern.permute.xlu0 5
        %705 = vperm.xlu0 %704, %v417
        %v706 = vpop.permute.xlu0 %705
        %v708 = vlaneseq
        %v709 = vshrl.u32 %v708, 7
        %v710 = vsub.s32 5, %v709
        %v711 = vrot.slane %v563, %v710
        %v712 = vlaneseq
        %v713 = vshrl.u32 %v712, 7
        %v714 = vsub.s32 5, %v713
        %v715 = vrot.slane %v564, %v714
        %v716 = vlaneseq
        %v717 = vshrl.u32 %v716, 7
        %v718 = vsub.s32 5, %v717
        %v719 = vrot.slane %v565, %v718
        %v720 = vlaneseq
        %v721 = vshrl.u32 %v720, 7
        %v722 = vsub.s32 5, %v721
        %v723 = vrot.slane %v566, %v722
        %v724 = vmul.f32 %v706, %v711
        %v725 = vmul.f32 %v706, %v715
        %v726 = vmul.f32 %v706, %v719
        %v727 = vmul.f32 %v706, %v723
        %v728 = vadd.f32 %v700, %v724
        %v729 = vadd.f32 %v701, %v725
        %v730 = vadd.f32 %v702, %v726
        %v731 = vadd.f32 %v703, %v727
        %732 = vset.pattern.permute.xlu0 6
        %733 = vperm.xlu0 %732, %v417
        %v734 = vpop.permute.xlu0 %733
        %v736 = vlaneseq
        %v737 = vshrl.u32 %v736, 7
        %v738 = vsub.s32 6, %v737
        %v739 = vrot.slane %v563, %v738
        %v740 = vlaneseq
        %v741 = vshrl.u32 %v740, 7
        %v742 = vsub.s32 6, %v741
        %v743 = vrot.slane %v564, %v742
        %v744 = vlaneseq
        %v745 = vshrl.u32 %v744, 7
        %v746 = vsub.s32 6, %v745
        %v747 = vrot.slane %v565, %v746
        %v748 = vlaneseq
        %v749 = vshrl.u32 %v748, 7
        %v750 = vsub.s32 6, %v749
        %v751 = vrot.slane %v566, %v750
        %v752 = vmul.f32 %v734, %v739
        %v753 = vmul.f32 %v734, %v743
        %v754 = vmul.f32 %v734, %v747
        %v755 = vmul.f32 %v734, %v751
        %v756 = vadd.f32 %v728, %v752
        %v757 = vadd.f32 %v729, %v753
        %v758 = vadd.f32 %v730, %v754
        %v759 = vadd.f32 %v731, %v755
        %760 = vset.pattern.permute.xlu0 7
        %761 = vperm.xlu0 %760, %v417
        %v762 = vpop.permute.xlu0 %761
        %v764 = vlaneseq
        %v765 = vshrl.u32 %v764, 7
        %v766 = vsub.s32 7, %v765
        %v767 = vrot.slane %v563, %v766
        %v768 = vlaneseq
        %v769 = vshrl.u32 %v768, 7
        %v770 = vsub.s32 7, %v769
        %v771 = vrot.slane %v564, %v770
        %v772 = vlaneseq
        %v773 = vshrl.u32 %v772, 7
        %v774 = vsub.s32 7, %v773
        %v775 = vrot.slane %v565, %v774
        %v776 = vlaneseq
        %v777 = vshrl.u32 %v776, 7
        %v778 = vsub.s32 7, %v777
        %v779 = vrot.slane %v566, %v778
        %v780 = vmul.f32 %v762, %v767
        %v781 = vmul.f32 %v762, %v771
        %v782 = vmul.f32 %v762, %v775
        %v783 = vmul.f32 %v762, %v779
        %v784 = vadd.f32 %v756, %v780
        %v785 = vadd.f32 %v757, %v781
        %v786 = vadd.f32 %v758, %v782
        %v787 = vadd.f32 %v759, %v783
        %v788 = vmul.f32 %v784, 1.442695
        %v789 = vpow.pop %v788
        %v790 = vmul.f32 %v785, 1.442695
        %v791 = vpow.pop %v790
        %v792 = vmul.f32 %v786, 1.442695
        %v793 = vpow.pop %v792
        %v794 = vmul.f32 %v787, 1.442695
        %v795 = vpow.pop %v794
        %797 = vset.pattern.permute.xlu0 0
        %798 = vperm.xlu0 %797, %v419
        %v799 = vpop.permute.xlu0 %798
        %v801 = vlaneseq
        %v802 = vshrl.u32 %v801, 7
        %v803 = vsub.s32 0, %v802
        %v804 = vrot.slane %v789, %v803
        %v805 = vlaneseq
        %v806 = vshrl.u32 %v805, 7
        %v807 = vsub.s32 0, %v806
        %v808 = vrot.slane %v791, %v807
        %v809 = vlaneseq
        %v810 = vshrl.u32 %v809, 7
        %v811 = vsub.s32 0, %v810
        %v812 = vrot.slane %v793, %v811
        %v813 = vlaneseq
        %v814 = vshrl.u32 %v813, 7
        %v815 = vsub.s32 0, %v814
        %v816 = vrot.slane %v795, %v815
        %v817 = vmul.f32 %v799, %v804
        %v818 = vmul.f32 %v799, %v808
        %v819 = vmul.f32 %v799, %v812
        %v820 = vmul.f32 %v799, %v816
        %821 = vset.pattern.permute.xlu0 1
        %822 = vperm.xlu0 %821, %v419
        %v823 = vpop.permute.xlu0 %822
        %v825 = vlaneseq
        %v826 = vshrl.u32 %v825, 7
        %v827 = vsub.s32 1, %v826
        %v828 = vrot.slane %v789, %v827
        %v829 = vlaneseq
        %v830 = vshrl.u32 %v829, 7
        %v831 = vsub.s32 1, %v830
        %v832 = vrot.slane %v791, %v831
        %v833 = vlaneseq
        %v834 = vshrl.u32 %v833, 7
        %v835 = vsub.s32 1, %v834
        %v836 = vrot.slane %v793, %v835
        %v837 = vlaneseq
        %v838 = vshrl.u32 %v837, 7
        %v839 = vsub.s32 1, %v838
        %v840 = vrot.slane %v795, %v839
        %v841 = vmul.f32 %v823, %v828
        %v842 = vmul.f32 %v823, %v832
        %v843 = vmul.f32 %v823, %v836
        %v844 = vmul.f32 %v823, %v840
        %v845 = vadd.f32 %v817, %v841
        %v846 = vadd.f32 %v818, %v842
        %v847 = vadd.f32 %v819, %v843
        %v848 = vadd.f32 %v820, %v844
        %849 = vset.pattern.permute.xlu0 2
        %850 = vperm.xlu0 %849, %v419
        %v851 = vpop.permute.xlu0 %850
        %v853 = vlaneseq
        %v854 = vshrl.u32 %v853, 7
        %v855 = vsub.s32 2, %v854
        %v856 = vrot.slane %v789, %v855
        %v857 = vlaneseq
        %v858 = vshrl.u32 %v857, 7
        %v859 = vsub.s32 2, %v858
        %v860 = vrot.slane %v791, %v859
        %v861 = vlaneseq
        %v862 = vshrl.u32 %v861, 7
        %v863 = vsub.s32 2, %v862
        %v864 = vrot.slane %v793, %v863
        %v865 = vlaneseq
        %v866 = vshrl.u32 %v865, 7
        %v867 = vsub.s32 2, %v866
        %v868 = vrot.slane %v795, %v867
        %v869 = vmul.f32 %v851, %v856
        %v870 = vmul.f32 %v851, %v860
        %v871 = vmul.f32 %v851, %v864
        %v872 = vmul.f32 %v851, %v868
        %v873 = vadd.f32 %v845, %v869
        %v874 = vadd.f32 %v846, %v870
        %v875 = vadd.f32 %v847, %v871
        %v876 = vadd.f32 %v848, %v872
        %877 = vset.pattern.permute.xlu0 3
        %878 = vperm.xlu0 %877, %v419
        %v879 = vpop.permute.xlu0 %878
        %v881 = vlaneseq
        %v882 = vshrl.u32 %v881, 7
        %v883 = vsub.s32 3, %v882
        %v884 = vrot.slane %v789, %v883
        %v885 = vlaneseq
        %v886 = vshrl.u32 %v885, 7
        %v887 = vsub.s32 3, %v886
        %v888 = vrot.slane %v791, %v887
        %v889 = vlaneseq
        %v890 = vshrl.u32 %v889, 7
        %v891 = vsub.s32 3, %v890
        %v892 = vrot.slane %v793, %v891
        %v893 = vlaneseq
        %v894 = vshrl.u32 %v893, 7
        %v895 = vsub.s32 3, %v894
        %v896 = vrot.slane %v795, %v895
        %v897 = vmul.f32 %v879, %v884
        %v898 = vmul.f32 %v879, %v888
        %v899 = vmul.f32 %v879, %v892
        %v900 = vmul.f32 %v879, %v896
        %v901 = vadd.f32 %v873, %v897
        %v902 = vadd.f32 %v874, %v898
        %v903 = vadd.f32 %v875, %v899
        %v904 = vadd.f32 %v876, %v900
        %905 = vset.pattern.permute.xlu0 4
        %906 = vperm.xlu0 %905, %v419
        %v907 = vpop.permute.xlu0 %906
        %v909 = vlaneseq
        %v910 = vshrl.u32 %v909, 7
        %v911 = vsub.s32 4, %v910
        %v912 = vrot.slane %v789, %v911
        %v913 = vlaneseq
        %v914 = vshrl.u32 %v913, 7
        %v915 = vsub.s32 4, %v914
        %v916 = vrot.slane %v791, %v915
        %v917 = vlaneseq
        %v918 = vshrl.u32 %v917, 7
        %v919 = vsub.s32 4, %v918
        %v920 = vrot.slane %v793, %v919
        %v921 = vlaneseq
        %v922 = vshrl.u32 %v921, 7
        %v923 = vsub.s32 4, %v922
        %v924 = vrot.slane %v795, %v923
        %v925 = vmul.f32 %v907, %v912
        %v926 = vmul.f32 %v907, %v916
        %v927 = vmul.f32 %v907, %v920
        %v928 = vmul.f32 %v907, %v924
        %v929 = vadd.f32 %v901, %v925
        %v930 = vadd.f32 %v902, %v926
        %v931 = vadd.f32 %v903, %v927
        %v932 = vadd.f32 %v904, %v928
        %933 = vset.pattern.permute.xlu0 5
        %934 = vperm.xlu0 %933, %v419
        %v935 = vpop.permute.xlu0 %934
        %v937 = vlaneseq
        %v938 = vshrl.u32 %v937, 7
        %v939 = vsub.s32 5, %v938
        %v940 = vrot.slane %v789, %v939
        %v941 = vlaneseq
        %v942 = vshrl.u32 %v941, 7
        %v943 = vsub.s32 5, %v942
        %v944 = vrot.slane %v791, %v943
        %v945 = vlaneseq
        %v946 = vshrl.u32 %v945, 7
        %v947 = vsub.s32 5, %v946
        %v948 = vrot.slane %v793, %v947
        %v949 = vlaneseq
        %v950 = vshrl.u32 %v949, 7
        %v951 = vsub.s32 5, %v950
        %v952 = vrot.slane %v795, %v951
        %v953 = vmul.f32 %v935, %v940
        %v954 = vmul.f32 %v935, %v944
        %v955 = vmul.f32 %v935, %v948
        %v956 = vmul.f32 %v935, %v952
        %v957 = vadd.f32 %v929, %v953
        %v958 = vadd.f32 %v930, %v954
        %v959 = vadd.f32 %v931, %v955
        %v960 = vadd.f32 %v932, %v956
        %961 = vset.pattern.permute.xlu0 6
        %962 = vperm.xlu0 %961, %v419
        %v963 = vpop.permute.xlu0 %962
        %v965 = vlaneseq
        %v966 = vshrl.u32 %v965, 7
        %v967 = vsub.s32 6, %v966
        %v968 = vrot.slane %v789, %v967
        %v969 = vlaneseq
        %v970 = vshrl.u32 %v969, 7
        %v971 = vsub.s32 6, %v970
        %v972 = vrot.slane %v791, %v971
        %v973 = vlaneseq
        %v974 = vshrl.u32 %v973, 7
        %v975 = vsub.s32 6, %v974
        %v976 = vrot.slane %v793, %v975
        %v977 = vlaneseq
        %v978 = vshrl.u32 %v977, 7
        %v979 = vsub.s32 6, %v978
        %v980 = vrot.slane %v795, %v979
        %v981 = vmul.f32 %v963, %v968
        %v982 = vmul.f32 %v963, %v972
        %v983 = vmul.f32 %v963, %v976
        %v984 = vmul.f32 %v963, %v980
        %v985 = vadd.f32 %v957, %v981
        %v986 = vadd.f32 %v958, %v982
        %v987 = vadd.f32 %v959, %v983
        %v988 = vadd.f32 %v960, %v984
        %989 = vset.pattern.permute.xlu0 7
        %990 = vperm.xlu0 %989, %v419
        %v991 = vpop.permute.xlu0 %990
        %v993 = vlaneseq
        %v994 = vshrl.u32 %v993, 7
        %v995 = vsub.s32 7, %v994
        %v996 = vrot.slane %v789, %v995
        %v997 = vlaneseq
        %v998 = vshrl.u32 %v997, 7
        %v999 = vsub.s32 7, %v998
        %v1000 = vrot.slane %v791, %v999
        %v1001 = vlaneseq
        %v1002 = vshrl.u32 %v1001, 7
        %v1003 = vsub.s32 7, %v1002
        %v1004 = vrot.slane %v793, %v1003
        %v1005 = vlaneseq
        %v1006 = vshrl.u32 %v1005, 7
        %v1007 = vsub.s32 7, %v1006
        %v1008 = vrot.slane %v795, %v1007
        %v1009 = vmul.f32 %v991, %v996
        %v1010 = vmul.f32 %v991, %v1000
        %v1011 = vmul.f32 %v991, %v1004
        %v1012 = vmul.f32 %v991, %v1008
        %v1013 = vadd.f32 %v985, %v1009
        %v1014 = vadd.f32 %v986, %v1010
        %v1015 = vadd.f32 %v987, %v1011
        %v1016 = vadd.f32 %v988, %v1012
        %v1017 = vmul.f32 %v1013, %v555
        %v1018 = vmul.f32 %v1014, %v556
        %v1019 = vmul.f32 %v1015, %v557
        %v1020 = vmul.f32 %v1016, %v558
        %1022 = vset.pattern.permute.xlu0 0
        %1023 = vperm.xlu0 %1022, %v414
        %v1024 = vpop.permute.xlu0 %1023
        %v1026 = vlaneseq
        %v1027 = vshrl.u32 %v1026, 7
        %v1028 = vsub.s32 0, %v1027
        %v1029 = vrot.slane %v1017, %v1028
        %v1030 = vlaneseq
        %v1031 = vshrl.u32 %v1030, 7
        %v1032 = vsub.s32 0, %v1031
        %v1033 = vrot.slane %v1018, %v1032
        %v1034 = vlaneseq
        %v1035 = vshrl.u32 %v1034, 7
        %v1036 = vsub.s32 0, %v1035
        %v1037 = vrot.slane %v1019, %v1036
        %v1038 = vlaneseq
        %v1039 = vshrl.u32 %v1038, 7
        %v1040 = vsub.s32 0, %v1039
        %v1041 = vrot.slane %v1020, %v1040
        %v1042 = vmul.f32 %v1024, %v1029
        %v1043 = vmul.f32 %v1024, %v1033
        %v1044 = vmul.f32 %v1024, %v1037
        %v1045 = vmul.f32 %v1024, %v1041
        %1046 = vset.pattern.permute.xlu0 1
        %1047 = vperm.xlu0 %1046, %v414
        %v1048 = vpop.permute.xlu0 %1047
        %v1050 = vlaneseq
        %v1051 = vshrl.u32 %v1050, 7
        %v1052 = vsub.s32 1, %v1051
        %v1053 = vrot.slane %v1017, %v1052
        %v1054 = vlaneseq
        %v1055 = vshrl.u32 %v1054, 7
        %v1056 = vsub.s32 1, %v1055
        %v1057 = vrot.slane %v1018, %v1056
        %v1058 = vlaneseq
        %v1059 = vshrl.u32 %v1058, 7
        %v1060 = vsub.s32 1, %v1059
        %v1061 = vrot.slane %v1019, %v1060
        %v1062 = vlaneseq
        %v1063 = vshrl.u32 %v1062, 7
        %v1064 = vsub.s32 1, %v1063
        %v1065 = vrot.slane %v1020, %v1064
        %v1066 = vmul.f32 %v1048, %v1053
        %v1067 = vmul.f32 %v1048, %v1057
        %v1068 = vmul.f32 %v1048, %v1061
        %v1069 = vmul.f32 %v1048, %v1065
        %v1070 = vadd.f32 %v1042, %v1066
        %v1071 = vadd.f32 %v1043, %v1067
        %v1072 = vadd.f32 %v1044, %v1068
        %v1073 = vadd.f32 %v1045, %v1069
        %1074 = vset.pattern.permute.xlu0 2
        %1075 = vperm.xlu0 %1074, %v414
        %v1076 = vpop.permute.xlu0 %1075
        %v1078 = vlaneseq
        %v1079 = vshrl.u32 %v1078, 7
        %v1080 = vsub.s32 2, %v1079
        %v1081 = vrot.slane %v1017, %v1080
        %v1082 = vlaneseq
        %v1083 = vshrl.u32 %v1082, 7
        %v1084 = vsub.s32 2, %v1083
        %v1085 = vrot.slane %v1018, %v1084
        %v1086 = vlaneseq
        %v1087 = vshrl.u32 %v1086, 7
        %v1088 = vsub.s32 2, %v1087
        %v1089 = vrot.slane %v1019, %v1088
        %v1090 = vlaneseq
        %v1091 = vshrl.u32 %v1090, 7
        %v1092 = vsub.s32 2, %v1091
        %v1093 = vrot.slane %v1020, %v1092
        %v1094 = vmul.f32 %v1076, %v1081
        %v1095 = vmul.f32 %v1076, %v1085
        %v1096 = vmul.f32 %v1076, %v1089
        %v1097 = vmul.f32 %v1076, %v1093
        %v1098 = vadd.f32 %v1070, %v1094
        %v1099 = vadd.f32 %v1071, %v1095
        %v1100 = vadd.f32 %v1072, %v1096
        %v1101 = vadd.f32 %v1073, %v1097
        %1102 = vset.pattern.permute.xlu0 3
        %1103 = vperm.xlu0 %1102, %v414
        %v1104 = vpop.permute.xlu0 %1103
        %v1106 = vlaneseq
        %v1107 = vshrl.u32 %v1106, 7
        %v1108 = vsub.s32 3, %v1107
        %v1109 = vrot.slane %v1017, %v1108
        %v1110 = vlaneseq
        %v1111 = vshrl.u32 %v1110, 7
        %v1112 = vsub.s32 3, %v1111
        %v1113 = vrot.slane %v1018, %v1112
        %v1114 = vlaneseq
        %v1115 = vshrl.u32 %v1114, 7
        %v1116 = vsub.s32 3, %v1115
        %v1117 = vrot.slane %v1019, %v1116
        %v1118 = vlaneseq
        %v1119 = vshrl.u32 %v1118, 7
        %v1120 = vsub.s32 3, %v1119
        %v1121 = vrot.slane %v1020, %v1120
        %v1122 = vmul.f32 %v1104, %v1109
        %v1123 = vmul.f32 %v1104, %v1113
        %v1124 = vmul.f32 %v1104, %v1117
        %v1125 = vmul.f32 %v1104, %v1121
        %v1126 = vadd.f32 %v1098, %v1122
        %v1127 = vadd.f32 %v1099, %v1123
        %v1128 = vadd.f32 %v1100, %v1124
        %v1129 = vadd.f32 %v1101, %v1125
        %1130 = vset.pattern.permute.xlu0 4
        %1131 = vperm.xlu0 %1130, %v414
        %v1132 = vpop.permute.xlu0 %1131
        %v1134 = vlaneseq
        %v1135 = vshrl.u32 %v1134, 7
        %v1136 = vsub.s32 4, %v1135
        %v1137 = vrot.slane %v1017, %v1136
        %v1138 = vlaneseq
        %v1139 = vshrl.u32 %v1138, 7
        %v1140 = vsub.s32 4, %v1139
        %v1141 = vrot.slane %v1018, %v1140
        %v1142 = vlaneseq
        %v1143 = vshrl.u32 %v1142, 7
        %v1144 = vsub.s32 4, %v1143
        %v1145 = vrot.slane %v1019, %v1144
        %v1146 = vlaneseq
        %v1147 = vshrl.u32 %v1146, 7
        %v1148 = vsub.s32 4, %v1147
        %v1149 = vrot.slane %v1020, %v1148
        %v1150 = vmul.f32 %v1132, %v1137
        %v1151 = vmul.f32 %v1132, %v1141
        %v1152 = vmul.f32 %v1132, %v1145
        %v1153 = vmul.f32 %v1132, %v1149
        %v1154 = vadd.f32 %v1126, %v1150
        %v1155 = vadd.f32 %v1127, %v1151
        %v1156 = vadd.f32 %v1128, %v1152
        %v1157 = vadd.f32 %v1129, %v1153
        %1158 = vset.pattern.permute.xlu0 5
        %1159 = vperm.xlu0 %1158, %v414
        %v1160 = vpop.permute.xlu0 %1159
        %v1162 = vlaneseq
        %v1163 = vshrl.u32 %v1162, 7
        %v1164 = vsub.s32 5, %v1163
        %v1165 = vrot.slane %v1017, %v1164
        %v1166 = vlaneseq
        %v1167 = vshrl.u32 %v1166, 7
        %v1168 = vsub.s32 5, %v1167
        %v1169 = vrot.slane %v1018, %v1168
        %v1170 = vlaneseq
        %v1171 = vshrl.u32 %v1170, 7
        %v1172 = vsub.s32 5, %v1171
        %v1173 = vrot.slane %v1019, %v1172
        %v1174 = vlaneseq
        %v1175 = vshrl.u32 %v1174, 7
        %v1176 = vsub.s32 5, %v1175
        %v1177 = vrot.slane %v1020, %v1176
        %v1178 = vmul.f32 %v1160, %v1165
        %v1179 = vmul.f32 %v1160, %v1169
        %v1180 = vmul.f32 %v1160, %v1173
        %v1181 = vmul.f32 %v1160, %v1177
        %v1182 = vadd.f32 %v1154, %v1178
        %v1183 = vadd.f32 %v1155, %v1179
        %v1184 = vadd.f32 %v1156, %v1180
        %v1185 = vadd.f32 %v1157, %v1181
        %1186 = vset.pattern.permute.xlu0 6
        %1187 = vperm.xlu0 %1186, %v414
        %v1188 = vpop.permute.xlu0 %1187
        %v1190 = vlaneseq
        %v1191 = vshrl.u32 %v1190, 7
        %v1192 = vsub.s32 6, %v1191
        %v1193 = vrot.slane %v1017, %v1192
        %v1194 = vlaneseq
        %v1195 = vshrl.u32 %v1194, 7
        %v1196 = vsub.s32 6, %v1195
        %v1197 = vrot.slane %v1018, %v1196
        %v1198 = vlaneseq
        %v1199 = vshrl.u32 %v1198, 7
        %v1200 = vsub.s32 6, %v1199
        %v1201 = vrot.slane %v1019, %v1200
        %v1202 = vlaneseq
        %v1203 = vshrl.u32 %v1202, 7
        %v1204 = vsub.s32 6, %v1203
        %v1205 = vrot.slane %v1020, %v1204
        %v1206 = vmul.f32 %v1188, %v1193
        %v1207 = vmul.f32 %v1188, %v1197
        %v1208 = vmul.f32 %v1188, %v1201
        %v1209 = vmul.f32 %v1188, %v1205
        %v1210 = vadd.f32 %v1182, %v1206
        %v1211 = vadd.f32 %v1183, %v1207
        %v1212 = vadd.f32 %v1184, %v1208
        %v1213 = vadd.f32 %v1185, %v1209
        %1214 = vset.pattern.permute.xlu0 7
        %1215 = vperm.xlu0 %1214, %v414
        %v1216 = vpop.permute.xlu0 %1215
        %v1218 = vlaneseq
        %v1219 = vshrl.u32 %v1218, 7
        %v1220 = vsub.s32 7, %v1219
        %v1221 = vrot.slane %v1017, %v1220
        %v1222 = vlaneseq
        %v1223 = vshrl.u32 %v1222, 7
        %v1224 = vsub.s32 7, %v1223
        %v1225 = vrot.slane %v1018, %v1224
        %v1226 = vlaneseq
        %v1227 = vshrl.u32 %v1226, 7
        %v1228 = vsub.s32 7, %v1227
        %v1229 = vrot.slane %v1019, %v1228
        %v1230 = vlaneseq
        %v1231 = vshrl.u32 %v1230, 7
        %v1232 = vsub.s32 7, %v1231
        %v1233 = vrot.slane %v1020, %v1232
        %v1234 = vmul.f32 %v1216, %v1221
        %v1235 = vmul.f32 %v1216, %v1225
        %v1236 = vmul.f32 %v1216, %v1229
        %v1237 = vmul.f32 %v1216, %v1233
        %v1238 = vadd.f32 %v1210, %v1234
        %v1239 = vadd.f32 %v1211, %v1235
        %v1240 = vadd.f32 %v1212, %v1236
        %v1241 = vadd.f32 %v1213, %v1237
        %v1242 = vmul.f32 %v559, %v559
        %v1243 = vmul.f32 %v560, %v560
        %v1244 = vmul.f32 %v561, %v561
        %v1245 = vmul.f32 %v562, %v562
        %1247 = vset.pattern.permute.xlu0 0
        %1248 = vperm.xlu0 %1247, %v418
        %v1249 = vpop.permute.xlu0 %1248
        %v1251 = vlaneseq
        %v1252 = vshrl.u32 %v1251, 7
        %v1253 = vsub.s32 0, %v1252
        %v1254 = vrot.slane %v1242, %v1253
        %v1255 = vlaneseq
        %v1256 = vshrl.u32 %v1255, 7
        %v1257 = vsub.s32 0, %v1256
        %v1258 = vrot.slane %v1243, %v1257
        %v1259 = vlaneseq
        %v1260 = vshrl.u32 %v1259, 7
        %v1261 = vsub.s32 0, %v1260
        %v1262 = vrot.slane %v1244, %v1261
        %v1263 = vlaneseq
        %v1264 = vshrl.u32 %v1263, 7
        %v1265 = vsub.s32 0, %v1264
        %v1266 = vrot.slane %v1245, %v1265
        %v1267 = vmul.f32 %v1249, %v1254
        %v1268 = vmul.f32 %v1249, %v1258
        %v1269 = vmul.f32 %v1249, %v1262
        %v1270 = vmul.f32 %v1249, %v1266
        %1271 = vset.pattern.permute.xlu0 1
        %1272 = vperm.xlu0 %1271, %v418
        %v1273 = vpop.permute.xlu0 %1272
        %v1275 = vlaneseq
        %v1276 = vshrl.u32 %v1275, 7
        %v1277 = vsub.s32 1, %v1276
        %v1278 = vrot.slane %v1242, %v1277
        %v1279 = vlaneseq
        %v1280 = vshrl.u32 %v1279, 7
        %v1281 = vsub.s32 1, %v1280
        %v1282 = vrot.slane %v1243, %v1281
        %v1283 = vlaneseq
        %v1284 = vshrl.u32 %v1283, 7
        %v1285 = vsub.s32 1, %v1284
        %v1286 = vrot.slane %v1244, %v1285
        %v1287 = vlaneseq
        %v1288 = vshrl.u32 %v1287, 7
        %v1289 = vsub.s32 1, %v1288
        %v1290 = vrot.slane %v1245, %v1289
        %v1291 = vmul.f32 %v1273, %v1278
        %v1292 = vmul.f32 %v1273, %v1282
        %v1293 = vmul.f32 %v1273, %v1286
        %v1294 = vmul.f32 %v1273, %v1290
        %v1295 = vadd.f32 %v1267, %v1291
        %v1296 = vadd.f32 %v1268, %v1292
        %v1297 = vadd.f32 %v1269, %v1293
        %v1298 = vadd.f32 %v1270, %v1294
        %1299 = vset.pattern.permute.xlu0 2
        %1300 = vperm.xlu0 %1299, %v418
        %v1301 = vpop.permute.xlu0 %1300
        %v1303 = vlaneseq
        %v1304 = vshrl.u32 %v1303, 7
        %v1305 = vsub.s32 2, %v1304
        %v1306 = vrot.slane %v1242, %v1305
        %v1307 = vlaneseq
        %v1308 = vshrl.u32 %v1307, 7
        %v1309 = vsub.s32 2, %v1308
        %v1310 = vrot.slane %v1243, %v1309
        %v1311 = vlaneseq
        %v1312 = vshrl.u32 %v1311, 7
        %v1313 = vsub.s32 2, %v1312
        %v1314 = vrot.slane %v1244, %v1313
        %v1315 = vlaneseq
        %v1316 = vshrl.u32 %v1315, 7
        %v1317 = vsub.s32 2, %v1316
        %v1318 = vrot.slane %v1245, %v1317
        %v1319 = vmul.f32 %v1301, %v1306
        %v1320 = vmul.f32 %v1301, %v1310
        %v1321 = vmul.f32 %v1301, %v1314
        %v1322 = vmul.f32 %v1301, %v1318
        %v1323 = vadd.f32 %v1295, %v1319
        %v1324 = vadd.f32 %v1296, %v1320
        %v1325 = vadd.f32 %v1297, %v1321
        %v1326 = vadd.f32 %v1298, %v1322
        %1327 = vset.pattern.permute.xlu0 3
        %1328 = vperm.xlu0 %1327, %v418
        %v1329 = vpop.permute.xlu0 %1328
        %v1331 = vlaneseq
        %v1332 = vshrl.u32 %v1331, 7
        %v1333 = vsub.s32 3, %v1332
        %v1334 = vrot.slane %v1242, %v1333
        %v1335 = vlaneseq
        %v1336 = vshrl.u32 %v1335, 7
        %v1337 = vsub.s32 3, %v1336
        %v1338 = vrot.slane %v1243, %v1337
        %v1339 = vlaneseq
        %v1340 = vshrl.u32 %v1339, 7
        %v1341 = vsub.s32 3, %v1340
        %v1342 = vrot.slane %v1244, %v1341
        %v1343 = vlaneseq
        %v1344 = vshrl.u32 %v1343, 7
        %v1345 = vsub.s32 3, %v1344
        %v1346 = vrot.slane %v1245, %v1345
        %v1347 = vmul.f32 %v1329, %v1334
        %v1348 = vmul.f32 %v1329, %v1338
        %v1349 = vmul.f32 %v1329, %v1342
        %v1350 = vmul.f32 %v1329, %v1346
        %v1351 = vadd.f32 %v1323, %v1347
        %v1352 = vadd.f32 %v1324, %v1348
        %v1353 = vadd.f32 %v1325, %v1349
        %v1354 = vadd.f32 %v1326, %v1350
        %1355 = vset.pattern.permute.xlu0 4
        %1356 = vperm.xlu0 %1355, %v418
        %v1357 = vpop.permute.xlu0 %1356
        %v1359 = vlaneseq
        %v1360 = vshrl.u32 %v1359, 7
        %v1361 = vsub.s32 4, %v1360
        %v1362 = vrot.slane %v1242, %v1361
        %v1363 = vlaneseq
        %v1364 = vshrl.u32 %v1363, 7
        %v1365 = vsub.s32 4, %v1364
        %v1366 = vrot.slane %v1243, %v1365
        %v1367 = vlaneseq
        %v1368 = vshrl.u32 %v1367, 7
        %v1369 = vsub.s32 4, %v1368
        %v1370 = vrot.slane %v1244, %v1369
        %v1371 = vlaneseq
        %v1372 = vshrl.u32 %v1371, 7
        %v1373 = vsub.s32 4, %v1372
        %v1374 = vrot.slane %v1245, %v1373
        %v1375 = vmul.f32 %v1357, %v1362
        %v1376 = vmul.f32 %v1357, %v1366
        %v1377 = vmul.f32 %v1357, %v1370
        %v1378 = vmul.f32 %v1357, %v1374
        %v1379 = vadd.f32 %v1351, %v1375
        %v1380 = vadd.f32 %v1352, %v1376
        %v1381 = vadd.f32 %v1353, %v1377
        %v1382 = vadd.f32 %v1354, %v1378
        %1383 = vset.pattern.permute.xlu0 5
        %1384 = vperm.xlu0 %1383, %v418
        %v1385 = vpop.permute.xlu0 %1384
        %v1387 = vlaneseq
        %v1388 = vshrl.u32 %v1387, 7
        %v1389 = vsub.s32 5, %v1388
        %v1390 = vrot.slane %v1242, %v1389
        %v1391 = vlaneseq
        %v1392 = vshrl.u32 %v1391, 7
        %v1393 = vsub.s32 5, %v1392
        %v1394 = vrot.slane %v1243, %v1393
        %v1395 = vlaneseq
        %v1396 = vshrl.u32 %v1395, 7
        %v1397 = vsub.s32 5, %v1396
        %v1398 = vrot.slane %v1244, %v1397
        %v1399 = vlaneseq
        %v1400 = vshrl.u32 %v1399, 7
        %v1401 = vsub.s32 5, %v1400
        %v1402 = vrot.slane %v1245, %v1401
        %v1403 = vmul.f32 %v1385, %v1390
        %v1404 = vmul.f32 %v1385, %v1394
        %v1405 = vmul.f32 %v1385, %v1398
        %v1406 = vmul.f32 %v1385, %v1402
        %v1407 = vadd.f32 %v1379, %v1403
        %v1408 = vadd.f32 %v1380, %v1404
        %v1409 = vadd.f32 %v1381, %v1405
        %v1410 = vadd.f32 %v1382, %v1406
        %1411 = vset.pattern.permute.xlu0 6
        %1412 = vperm.xlu0 %1411, %v418
        %v1413 = vpop.permute.xlu0 %1412
        %v1415 = vlaneseq
        %v1416 = vshrl.u32 %v1415, 7
        %v1417 = vsub.s32 6, %v1416
        %v1418 = vrot.slane %v1242, %v1417
        %v1419 = vlaneseq
        %v1420 = vshrl.u32 %v1419, 7
        %v1421 = vsub.s32 6, %v1420
        %v1422 = vrot.slane %v1243, %v1421
        %v1423 = vlaneseq
        %v1424 = vshrl.u32 %v1423, 7
        %v1425 = vsub.s32 6, %v1424
        %v1426 = vrot.slane %v1244, %v1425
        %v1427 = vlaneseq
        %v1428 = vshrl.u32 %v1427, 7
        %v1429 = vsub.s32 6, %v1428
        %v1430 = vrot.slane %v1245, %v1429
        %v1431 = vmul.f32 %v1413, %v1418
        %v1432 = vmul.f32 %v1413, %v1422
        %v1433 = vmul.f32 %v1413, %v1426
        %v1434 = vmul.f32 %v1413, %v1430
        %v1435 = vadd.f32 %v1407, %v1431
        %v1436 = vadd.f32 %v1408, %v1432
        %v1437 = vadd.f32 %v1409, %v1433
        %v1438 = vadd.f32 %v1410, %v1434
        %1439 = vset.pattern.permute.xlu0 7
        %1440 = vperm.xlu0 %1439, %v418
        %v1441 = vpop.permute.xlu0 %1440
        %v1443 = vlaneseq
        %v1444 = vshrl.u32 %v1443, 7
        %v1445 = vsub.s32 7, %v1444
        %v1446 = vrot.slane %v1242, %v1445
        %v1447 = vlaneseq
        %v1448 = vshrl.u32 %v1447, 7
        %v1449 = vsub.s32 7, %v1448
        %v1450 = vrot.slane %v1243, %v1449
        %v1451 = vlaneseq
        %v1452 = vshrl.u32 %v1451, 7
        %v1453 = vsub.s32 7, %v1452
        %v1454 = vrot.slane %v1244, %v1453
        %v1455 = vlaneseq
        %v1456 = vshrl.u32 %v1455, 7
        %v1457 = vsub.s32 7, %v1456
        %v1458 = vrot.slane %v1245, %v1457
        %v1459 = vmul.f32 %v1441, %v1446
        %v1460 = vmul.f32 %v1441, %v1450
        %v1461 = vmul.f32 %v1441, %v1454
        %v1462 = vmul.f32 %v1441, %v1458
        %v1463 = vadd.f32 %v1435, %v1459
        %v1464 = vadd.f32 %v1436, %v1460
        %v1465 = vadd.f32 %v1437, %v1461
        %v1466 = vadd.f32 %v1438, %v1462
        %v1467 = vmul.f32 %v1463, 1.442695
        %v1468 = vpow.pop %v1467
        %v1469 = vmul.f32 %v1464, 1.442695
        %v1470 = vpow.pop %v1469
        %v1471 = vmul.f32 %v1465, 1.442695
        %v1472 = vpow.pop %v1471
        %v1473 = vmul.f32 %v1466, 1.442695
        %v1474 = vpow.pop %v1473
        %1476 = vset.pattern.permute.xlu0 0
        %1477 = vperm.xlu0 %1476, %v420
        %v1478 = vpop.permute.xlu0 %1477
        %v1480 = vlaneseq
        %v1481 = vshrl.u32 %v1480, 7
        %v1482 = vsub.s32 0, %v1481
        %v1483 = vrot.slane %v1468, %v1482
        %v1484 = vlaneseq
        %v1485 = vshrl.u32 %v1484, 7
        %v1486 = vsub.s32 0, %v1485
        %v1487 = vrot.slane %v1470, %v1486
        %v1488 = vlaneseq
        %v1489 = vshrl.u32 %v1488, 7
        %v1490 = vsub.s32 0, %v1489
        %v1491 = vrot.slane %v1472, %v1490
        %v1492 = vlaneseq
        %v1493 = vshrl.u32 %v1492, 7
        %v1494 = vsub.s32 0, %v1493
        %v1495 = vrot.slane %v1474, %v1494
        %v1496 = vmul.f32 %v1478, %v1483
        %v1497 = vmul.f32 %v1478, %v1487
        %v1498 = vmul.f32 %v1478, %v1491
        %v1499 = vmul.f32 %v1478, %v1495
        %1500 = vset.pattern.permute.xlu0 1
        %1501 = vperm.xlu0 %1500, %v420
        %v1502 = vpop.permute.xlu0 %1501
        %v1504 = vlaneseq
        %v1505 = vshrl.u32 %v1504, 7
        %v1506 = vsub.s32 1, %v1505
        %v1507 = vrot.slane %v1468, %v1506
        %v1508 = vlaneseq
        %v1509 = vshrl.u32 %v1508, 7
        %v1510 = vsub.s32 1, %v1509
        %v1511 = vrot.slane %v1470, %v1510
        %v1512 = vlaneseq
        %v1513 = vshrl.u32 %v1512, 7
        %v1514 = vsub.s32 1, %v1513
        %v1515 = vrot.slane %v1472, %v1514
        %v1516 = vlaneseq
        %v1517 = vshrl.u32 %v1516, 7
        %v1518 = vsub.s32 1, %v1517
        %v1519 = vrot.slane %v1474, %v1518
        %v1520 = vmul.f32 %v1502, %v1507
        %v1521 = vmul.f32 %v1502, %v1511
        %v1522 = vmul.f32 %v1502, %v1515
        %v1523 = vmul.f32 %v1502, %v1519
        %v1524 = vadd.f32 %v1496, %v1520
        %v1525 = vadd.f32 %v1497, %v1521
        %v1526 = vadd.f32 %v1498, %v1522
        %v1527 = vadd.f32 %v1499, %v1523
        %1528 = vset.pattern.permute.xlu0 2
        %1529 = vperm.xlu0 %1528, %v420
        %v1530 = vpop.permute.xlu0 %1529
        %v1532 = vlaneseq
        %v1533 = vshrl.u32 %v1532, 7
        %v1534 = vsub.s32 2, %v1533
        %v1535 = vrot.slane %v1468, %v1534
        %v1536 = vlaneseq
        %v1537 = vshrl.u32 %v1536, 7
        %v1538 = vsub.s32 2, %v1537
        %v1539 = vrot.slane %v1470, %v1538
        %v1540 = vlaneseq
        %v1541 = vshrl.u32 %v1540, 7
        %v1542 = vsub.s32 2, %v1541
        %v1543 = vrot.slane %v1472, %v1542
        %v1544 = vlaneseq
        %v1545 = vshrl.u32 %v1544, 7
        %v1546 = vsub.s32 2, %v1545
        %v1547 = vrot.slane %v1474, %v1546
        %v1548 = vmul.f32 %v1530, %v1535
        %v1549 = vmul.f32 %v1530, %v1539
        %v1550 = vmul.f32 %v1530, %v1543
        %v1551 = vmul.f32 %v1530, %v1547
        %v1552 = vadd.f32 %v1524, %v1548
        %v1553 = vadd.f32 %v1525, %v1549
        %v1554 = vadd.f32 %v1526, %v1550
        %v1555 = vadd.f32 %v1527, %v1551
        %1556 = vset.pattern.permute.xlu0 3
        %1557 = vperm.xlu0 %1556, %v420
        %v1558 = vpop.permute.xlu0 %1557
        %v1560 = vlaneseq
        %v1561 = vshrl.u32 %v1560, 7
        %v1562 = vsub.s32 3, %v1561
        %v1563 = vrot.slane %v1468, %v1562
        %v1564 = vlaneseq
        %v1565 = vshrl.u32 %v1564, 7
        %v1566 = vsub.s32 3, %v1565
        %v1567 = vrot.slane %v1470, %v1566
        %v1568 = vlaneseq
        %v1569 = vshrl.u32 %v1568, 7
        %v1570 = vsub.s32 3, %v1569
        %v1571 = vrot.slane %v1472, %v1570
        %v1572 = vlaneseq
        %v1573 = vshrl.u32 %v1572, 7
        %v1574 = vsub.s32 3, %v1573
        %v1575 = vrot.slane %v1474, %v1574
        %v1576 = vmul.f32 %v1558, %v1563
        %v1577 = vmul.f32 %v1558, %v1567
        %v1578 = vmul.f32 %v1558, %v1571
        %v1579 = vmul.f32 %v1558, %v1575
        %v1580 = vadd.f32 %v1552, %v1576
        %v1581 = vadd.f32 %v1553, %v1577
        %v1582 = vadd.f32 %v1554, %v1578
        %v1583 = vadd.f32 %v1555, %v1579
        %1584 = vset.pattern.permute.xlu0 4
        %1585 = vperm.xlu0 %1584, %v420
        %v1586 = vpop.permute.xlu0 %1585
        %v1588 = vlaneseq
        %v1589 = vshrl.u32 %v1588, 7
        %v1590 = vsub.s32 4, %v1589
        %v1591 = vrot.slane %v1468, %v1590
        %v1592 = vlaneseq
        %v1593 = vshrl.u32 %v1592, 7
        %v1594 = vsub.s32 4, %v1593
        %v1595 = vrot.slane %v1470, %v1594
        %v1596 = vlaneseq
        %v1597 = vshrl.u32 %v1596, 7
        %v1598 = vsub.s32 4, %v1597
        %v1599 = vrot.slane %v1472, %v1598
        %v1600 = vlaneseq
        %v1601 = vshrl.u32 %v1600, 7
        %v1602 = vsub.s32 4, %v1601
        %v1603 = vrot.slane %v1474, %v1602
        %v1604 = vmul.f32 %v1586, %v1591
        %v1605 = vmul.f32 %v1586, %v1595
        %v1606 = vmul.f32 %v1586, %v1599
        %v1607 = vmul.f32 %v1586, %v1603
        %v1608 = vadd.f32 %v1580, %v1604
        %v1609 = vadd.f32 %v1581, %v1605
        %v1610 = vadd.f32 %v1582, %v1606
        %v1611 = vadd.f32 %v1583, %v1607
        %1612 = vset.pattern.permute.xlu0 5
        %1613 = vperm.xlu0 %1612, %v420
        %v1614 = vpop.permute.xlu0 %1613
        %v1616 = vlaneseq
        %v1617 = vshrl.u32 %v1616, 7
        %v1618 = vsub.s32 5, %v1617
        %v1619 = vrot.slane %v1468, %v1618
        %v1620 = vlaneseq
        %v1621 = vshrl.u32 %v1620, 7
        %v1622 = vsub.s32 5, %v1621
        %v1623 = vrot.slane %v1470, %v1622
        %v1624 = vlaneseq
        %v1625 = vshrl.u32 %v1624, 7
        %v1626 = vsub.s32 5, %v1625
        %v1627 = vrot.slane %v1472, %v1626
        %v1628 = vlaneseq
        %v1629 = vshrl.u32 %v1628, 7
        %v1630 = vsub.s32 5, %v1629
        %v1631 = vrot.slane %v1474, %v1630
        %v1632 = vmul.f32 %v1614, %v1619
        %v1633 = vmul.f32 %v1614, %v1623
        %v1634 = vmul.f32 %v1614, %v1627
        %v1635 = vmul.f32 %v1614, %v1631
        %v1636 = vadd.f32 %v1608, %v1632
        %v1637 = vadd.f32 %v1609, %v1633
        %v1638 = vadd.f32 %v1610, %v1634
        %v1639 = vadd.f32 %v1611, %v1635
        %1640 = vset.pattern.permute.xlu0 6
        %1641 = vperm.xlu0 %1640, %v420
        %v1642 = vpop.permute.xlu0 %1641
        %v1644 = vlaneseq
        %v1645 = vshrl.u32 %v1644, 7
        %v1646 = vsub.s32 6, %v1645
        %v1647 = vrot.slane %v1468, %v1646
        %v1648 = vlaneseq
        %v1649 = vshrl.u32 %v1648, 7
        %v1650 = vsub.s32 6, %v1649
        %v1651 = vrot.slane %v1470, %v1650
        %v1652 = vlaneseq
        %v1653 = vshrl.u32 %v1652, 7
        %v1654 = vsub.s32 6, %v1653
        %v1655 = vrot.slane %v1472, %v1654
        %v1656 = vlaneseq
        %v1657 = vshrl.u32 %v1656, 7
        %v1658 = vsub.s32 6, %v1657
        %v1659 = vrot.slane %v1474, %v1658
        %v1660 = vmul.f32 %v1642, %v1647
        %v1661 = vmul.f32 %v1642, %v1651
        %v1662 = vmul.f32 %v1642, %v1655
        %v1663 = vmul.f32 %v1642, %v1659
        %v1664 = vadd.f32 %v1636, %v1660
        %v1665 = vadd.f32 %v1637, %v1661
        %v1666 = vadd.f32 %v1638, %v1662
        %v1667 = vadd.f32 %v1639, %v1663
        %1668 = vset.pattern.permute.xlu0 7
        %1669 = vperm.xlu0 %1668, %v420
        %v1670 = vpop.permute.xlu0 %1669
        %v1672 = vlaneseq
        %v1673 = vshrl.u32 %v1672, 7
        %v1674 = vsub.s32 7, %v1673
        %v1675 = vrot.slane %v1468, %v1674
        %v1676 = vlaneseq
        %v1677 = vshrl.u32 %v1676, 7
        %v1678 = vsub.s32 7, %v1677
        %v1679 = vrot.slane %v1470, %v1678
        %v1680 = vlaneseq
        %v1681 = vshrl.u32 %v1680, 7
        %v1682 = vsub.s32 7, %v1681
        %v1683 = vrot.slane %v1472, %v1682
        %v1684 = vlaneseq
        %v1685 = vshrl.u32 %v1684, 7
        %v1686 = vsub.s32 7, %v1685
        %v1687 = vrot.slane %v1474, %v1686
        %v1688 = vmul.f32 %v1670, %v1675
        %v1689 = vmul.f32 %v1670, %v1679
        %v1690 = vmul.f32 %v1670, %v1683
        %v1691 = vmul.f32 %v1670, %v1687
        %v1692 = vadd.f32 %v1664, %v1688
        %v1693 = vadd.f32 %v1665, %v1689
        %v1694 = vadd.f32 %v1666, %v1690
        %v1695 = vadd.f32 %v1667, %v1691
        %v1696 = vmul.f32 %v1692, %v559
        %v1697 = vmul.f32 %v1693, %v560
        %v1698 = vmul.f32 %v1694, %v561
        %v1699 = vmul.f32 %v1695, %v562
        %1700 = vset.pattern.permute.xlu0 8
        %1701 = vperm.xlu0 %1700, %v414
        %v1702 = vpop.permute.xlu0 %1701
        %v1704 = vlaneseq
        %v1705 = vshrl.u32 %v1704, 7
        %v1706 = vsub.s32 0, %v1705
        %v1707 = vrot.slane %v1696, %v1706
        %v1708 = vlaneseq
        %v1709 = vshrl.u32 %v1708, 7
        %v1710 = vsub.s32 0, %v1709
        %v1711 = vrot.slane %v1697, %v1710
        %v1712 = vlaneseq
        %v1713 = vshrl.u32 %v1712, 7
        %v1714 = vsub.s32 0, %v1713
        %v1715 = vrot.slane %v1698, %v1714
        %v1716 = vlaneseq
        %v1717 = vshrl.u32 %v1716, 7
        %v1718 = vsub.s32 0, %v1717
        %v1719 = vrot.slane %v1699, %v1718
        %v1720 = vmul.f32 %v1702, %v1707
        %v1721 = vmul.f32 %v1702, %v1711
        %v1722 = vmul.f32 %v1702, %v1715
        %v1723 = vmul.f32 %v1702, %v1719
        %1724 = vset.pattern.permute.xlu0 9
        %1725 = vperm.xlu0 %1724, %v414
        %v1726 = vpop.permute.xlu0 %1725
        %v1728 = vlaneseq
        %v1729 = vshrl.u32 %v1728, 7
        %v1730 = vsub.s32 1, %v1729
        %v1731 = vrot.slane %v1696, %v1730
        %v1732 = vlaneseq
        %v1733 = vshrl.u32 %v1732, 7
        %v1734 = vsub.s32 1, %v1733
        %v1735 = vrot.slane %v1697, %v1734
        %v1736 = vlaneseq
        %v1737 = vshrl.u32 %v1736, 7
        %v1738 = vsub.s32 1, %v1737
        %v1739 = vrot.slane %v1698, %v1738
        %v1740 = vlaneseq
        %v1741 = vshrl.u32 %v1740, 7
        %v1742 = vsub.s32 1, %v1741
        %v1743 = vrot.slane %v1699, %v1742
        %v1744 = vmul.f32 %v1726, %v1731
        %v1745 = vmul.f32 %v1726, %v1735
        %v1746 = vmul.f32 %v1726, %v1739
        %v1747 = vmul.f32 %v1726, %v1743
        %v1748 = vadd.f32 %v1720, %v1744
        %v1749 = vadd.f32 %v1721, %v1745
        %v1750 = vadd.f32 %v1722, %v1746
        %v1751 = vadd.f32 %v1723, %v1747
        %1752 = vset.pattern.permute.xlu0 10
        %1753 = vperm.xlu0 %1752, %v414
        %v1754 = vpop.permute.xlu0 %1753
        %v1756 = vlaneseq
        %v1757 = vshrl.u32 %v1756, 7
        %v1758 = vsub.s32 2, %v1757
        %v1759 = vrot.slane %v1696, %v1758
        %v1760 = vlaneseq
        %v1761 = vshrl.u32 %v1760, 7
        %v1762 = vsub.s32 2, %v1761
        %v1763 = vrot.slane %v1697, %v1762
        %v1764 = vlaneseq
        %v1765 = vshrl.u32 %v1764, 7
        %v1766 = vsub.s32 2, %v1765
        %v1767 = vrot.slane %v1698, %v1766
        %v1768 = vlaneseq
        %v1769 = vshrl.u32 %v1768, 7
        %v1770 = vsub.s32 2, %v1769
        %v1771 = vrot.slane %v1699, %v1770
        %v1772 = vmul.f32 %v1754, %v1759
        %v1773 = vmul.f32 %v1754, %v1763
        %v1774 = vmul.f32 %v1754, %v1767
        %v1775 = vmul.f32 %v1754, %v1771
        %v1776 = vadd.f32 %v1748, %v1772
        %v1777 = vadd.f32 %v1749, %v1773
        %v1778 = vadd.f32 %v1750, %v1774
        %v1779 = vadd.f32 %v1751, %v1775
        %1780 = vset.pattern.permute.xlu0 11
        %1781 = vperm.xlu0 %1780, %v414
        %v1782 = vpop.permute.xlu0 %1781
        %v1784 = vlaneseq
        %v1785 = vshrl.u32 %v1784, 7
        %v1786 = vsub.s32 3, %v1785
        %v1787 = vrot.slane %v1696, %v1786
        %v1788 = vlaneseq
        %v1789 = vshrl.u32 %v1788, 7
        %v1790 = vsub.s32 3, %v1789
        %v1791 = vrot.slane %v1697, %v1790
        %v1792 = vlaneseq
        %v1793 = vshrl.u32 %v1792, 7
        %v1794 = vsub.s32 3, %v1793
        %v1795 = vrot.slane %v1698, %v1794
        %v1796 = vlaneseq
        %v1797 = vshrl.u32 %v1796, 7
        %v1798 = vsub.s32 3, %v1797
        %v1799 = vrot.slane %v1699, %v1798
        %v1800 = vmul.f32 %v1782, %v1787
        %v1801 = vmul.f32 %v1782, %v1791
        %v1802 = vmul.f32 %v1782, %v1795
        %v1803 = vmul.f32 %v1782, %v1799
        %v1804 = vadd.f32 %v1776, %v1800
        %v1805 = vadd.f32 %v1777, %v1801
        %v1806 = vadd.f32 %v1778, %v1802
        %v1807 = vadd.f32 %v1779, %v1803
        %1808 = vset.pattern.permute.xlu0 12
        %1809 = vperm.xlu0 %1808, %v414
        %v1810 = vpop.permute.xlu0 %1809
        %v1812 = vlaneseq
        %v1813 = vshrl.u32 %v1812, 7
        %v1814 = vsub.s32 4, %v1813
        %v1815 = vrot.slane %v1696, %v1814
        %v1816 = vlaneseq
        %v1817 = vshrl.u32 %v1816, 7
        %v1818 = vsub.s32 4, %v1817
        %v1819 = vrot.slane %v1697, %v1818
        %v1820 = vlaneseq
        %v1821 = vshrl.u32 %v1820, 7
        %v1822 = vsub.s32 4, %v1821
        %v1823 = vrot.slane %v1698, %v1822
        %v1824 = vlaneseq
        %v1825 = vshrl.u32 %v1824, 7
        %v1826 = vsub.s32 4, %v1825
        %v1827 = vrot.slane %v1699, %v1826
        %v1828 = vmul.f32 %v1810, %v1815
        %v1829 = vmul.f32 %v1810, %v1819
        %v1830 = vmul.f32 %v1810, %v1823
        %v1831 = vmul.f32 %v1810, %v1827
        %v1832 = vadd.f32 %v1804, %v1828
        %v1833 = vadd.f32 %v1805, %v1829
        %v1834 = vadd.f32 %v1806, %v1830
        %v1835 = vadd.f32 %v1807, %v1831
        %1836 = vset.pattern.permute.xlu0 13
        %1837 = vperm.xlu0 %1836, %v414
        %v1838 = vpop.permute.xlu0 %1837
        %v1840 = vlaneseq
        %v1841 = vshrl.u32 %v1840, 7
        %v1842 = vsub.s32 5, %v1841
        %v1843 = vrot.slane %v1696, %v1842
        %v1844 = vlaneseq
        %v1845 = vshrl.u32 %v1844, 7
        %v1846 = vsub.s32 5, %v1845
        %v1847 = vrot.slane %v1697, %v1846
        %v1848 = vlaneseq
        %v1849 = vshrl.u32 %v1848, 7
        %v1850 = vsub.s32 5, %v1849
        %v1851 = vrot.slane %v1698, %v1850
        %v1852 = vlaneseq
        %v1853 = vshrl.u32 %v1852, 7
        %v1854 = vsub.s32 5, %v1853
        %v1855 = vrot.slane %v1699, %v1854
        %v1856 = vmul.f32 %v1838, %v1843
        %v1857 = vmul.f32 %v1838, %v1847
        %v1858 = vmul.f32 %v1838, %v1851
        %v1859 = vmul.f32 %v1838, %v1855
        %v1860 = vadd.f32 %v1832, %v1856
        %v1861 = vadd.f32 %v1833, %v1857
        %v1862 = vadd.f32 %v1834, %v1858
        %v1863 = vadd.f32 %v1835, %v1859
        %1864 = vset.pattern.permute.xlu0 14
        %1865 = vperm.xlu0 %1864, %v414
        %v1866 = vpop.permute.xlu0 %1865
        %v1868 = vlaneseq
        %v1869 = vshrl.u32 %v1868, 7
        %v1870 = vsub.s32 6, %v1869
        %v1871 = vrot.slane %v1696, %v1870
        %v1872 = vlaneseq
        %v1873 = vshrl.u32 %v1872, 7
        %v1874 = vsub.s32 6, %v1873
        %v1875 = vrot.slane %v1697, %v1874
        %v1876 = vlaneseq
        %v1877 = vshrl.u32 %v1876, 7
        %v1878 = vsub.s32 6, %v1877
        %v1879 = vrot.slane %v1698, %v1878
        %v1880 = vlaneseq
        %v1881 = vshrl.u32 %v1880, 7
        %v1882 = vsub.s32 6, %v1881
        %v1883 = vrot.slane %v1699, %v1882
        %v1884 = vmul.f32 %v1866, %v1871
        %v1885 = vmul.f32 %v1866, %v1875
        %v1886 = vmul.f32 %v1866, %v1879
        %v1887 = vmul.f32 %v1866, %v1883
        %v1888 = vadd.f32 %v1860, %v1884
        %v1889 = vadd.f32 %v1861, %v1885
        %v1890 = vadd.f32 %v1862, %v1886
        %v1891 = vadd.f32 %v1863, %v1887
        %1892 = vset.pattern.permute.xlu0 15
        %1893 = vperm.xlu0 %1892, %v414
        %v1894 = vpop.permute.xlu0 %1893
        %v1896 = vlaneseq
        %v1897 = vshrl.u32 %v1896, 7
        %v1898 = vsub.s32 7, %v1897
        %v1899 = vrot.slane %v1696, %v1898
        %v1900 = vlaneseq
        %v1901 = vshrl.u32 %v1900, 7
        %v1902 = vsub.s32 7, %v1901
        %v1903 = vrot.slane %v1697, %v1902
        %v1904 = vlaneseq
        %v1905 = vshrl.u32 %v1904, 7
        %v1906 = vsub.s32 7, %v1905
        %v1907 = vrot.slane %v1698, %v1906
        %v1908 = vlaneseq
        %v1909 = vshrl.u32 %v1908, 7
        %v1910 = vsub.s32 7, %v1909
        %v1911 = vrot.slane %v1699, %v1910
        %v1912 = vmul.f32 %v1894, %v1899
        %v1913 = vmul.f32 %v1894, %v1903
        %v1914 = vmul.f32 %v1894, %v1907
        %v1915 = vmul.f32 %v1894, %v1911
        %v1916 = vadd.f32 %v1888, %v1912
        %v1917 = vadd.f32 %v1889, %v1913
        %v1918 = vadd.f32 %v1890, %v1914
        %v1919 = vadd.f32 %v1891, %v1915
        %v1920 = vadd.f32 %v1238, %v1916
        %v1921 = vadd.f32 %v1239, %v1917
        %v1922 = vadd.f32 %v1240, %v1918
        %v1923 = vadd.f32 %v1241, %v1919
        %1925 = vset.pattern.permute.xlu0 0
        %1926 = vperm.xlu0 %1925, %v421
        %v1927 = vpop.permute.xlu0 %1926
        %v1929 = vmul.f32 %v1927, %v464
        %v1930 = vmul.f32 %v1927, %v468
        %v1931 = vmul.f32 %v1927, %v472
        %v1932 = vmul.f32 %v1927, %v476
        %1933 = vset.pattern.permute.xlu0 1
        %1934 = vperm.xlu0 %1933, %v421
        %v1935 = vpop.permute.xlu0 %1934
        %v1937 = vmul.f32 %v1935, %v516
        %v1938 = vmul.f32 %v1935, %v520
        %v1939 = vmul.f32 %v1935, %v524
        %v1940 = vmul.f32 %v1935, %v528
        %v1941 = vadd.f32 %v1929, %v1937
        %v1942 = vadd.f32 %v1930, %v1938
        %v1943 = vadd.f32 %v1931, %v1939
        %v1944 = vadd.f32 %v1932, %v1940
        %1946 = vset.pattern.permute.xlu0 0
        %1947 = vperm.xlu0 %1946, %v422
        %v1948 = vpop.permute.xlu0 %1947
        %v1950 = vadd.f32 %v1941, %v1948
        %v1951 = vadd.f32 %v1942, %v1948
        %v1952 = vadd.f32 %v1943, %v1948
        %v1953 = vadd.f32 %v1944, %v1948
        %vm1954 = vcmp.gt.f32.partialorder %v1950, 0.0
        %vm1955 = vcmp.gt.f32.partialorder %v1951, 0.0
        %vm1956 = vcmp.gt.f32.partialorder %v1952, 0.0
        %vm1957 = vcmp.gt.f32.partialorder %v1953, 0.0
        %v1958 = vmin.f32 %v1950, 0.0
        %v1959 = vmin.f32 %v1951, 0.0
        %v1960 = vmin.f32 %v1952, 0.0
        %v1961 = vmin.f32 %v1953, 0.0
        %v1962 = vmul.f32 %v1958, 1.442695
        %v1963 = vpow.pop %v1962
        %v1964 = vmul.f32 %v1959, 1.442695
        %v1965 = vpow.pop %v1964
        %v1966 = vmul.f32 %v1960, 1.442695
        %v1967 = vpow.pop %v1966
        %v1968 = vmul.f32 %v1961, 1.442695
        %v1969 = vpow.pop %v1968
        %v1970 = vsub.f32 %v1963, 1.0
        %v1971 = vsub.f32 %v1965, 1.0
        %v1972 = vsub.f32 %v1967, 1.0
        %v1973 = vsub.f32 %v1969, 1.0
        %v1974 = vsel %vm1954, %v1950, %v1970
        %v1975 = vsel %vm1955, %v1951, %v1971
        %v1976 = vsel %vm1956, %v1952, %v1972
        %v1977 = vsel %vm1957, %v1953, %v1973
        %1979 = vset.pattern.permute.xlu0 0
        %1980 = vperm.xlu0 %1979, %v423
        %v1981 = vpop.permute.xlu0 %1980
        %v1983 = vlaneseq
        %v1984 = vshrl.u32 %v1983, 7
        %v1985 = vsub.s32 0, %v1984
        %v1986 = vrot.slane %v1974, %v1985
        %v1987 = vlaneseq
        %v1988 = vshrl.u32 %v1987, 7
        %v1989 = vsub.s32 0, %v1988
        %v1990 = vrot.slane %v1975, %v1989
        %v1991 = vlaneseq
        %v1992 = vshrl.u32 %v1991, 7
        %v1993 = vsub.s32 0, %v1992
        %v1994 = vrot.slane %v1976, %v1993
        %v1995 = vlaneseq
        %v1996 = vshrl.u32 %v1995, 7
        %v1997 = vsub.s32 0, %v1996
        %v1998 = vrot.slane %v1977, %v1997
        %v1999 = vmul.f32 %v1981, %v1986
        %v2000 = vmul.f32 %v1981, %v1990
        %v2001 = vmul.f32 %v1981, %v1994
        %v2002 = vmul.f32 %v1981, %v1998
        %2003 = vset.pattern.permute.xlu0 1
        %2004 = vperm.xlu0 %2003, %v423
        %v2005 = vpop.permute.xlu0 %2004
        %v2007 = vlaneseq
        %v2008 = vshrl.u32 %v2007, 7
        %v2009 = vsub.s32 1, %v2008
        %v2010 = vrot.slane %v1974, %v2009
        %v2011 = vlaneseq
        %v2012 = vshrl.u32 %v2011, 7
        %v2013 = vsub.s32 1, %v2012
        %v2014 = vrot.slane %v1975, %v2013
        %v2015 = vlaneseq
        %v2016 = vshrl.u32 %v2015, 7
        %v2017 = vsub.s32 1, %v2016
        %v2018 = vrot.slane %v1976, %v2017
        %v2019 = vlaneseq
        %v2020 = vshrl.u32 %v2019, 7
        %v2021 = vsub.s32 1, %v2020
        %v2022 = vrot.slane %v1977, %v2021
        %v2023 = vmul.f32 %v2005, %v2010
        %v2024 = vmul.f32 %v2005, %v2014
        %v2025 = vmul.f32 %v2005, %v2018
        %v2026 = vmul.f32 %v2005, %v2022
        %v2027 = vadd.f32 %v1999, %v2023
        %v2028 = vadd.f32 %v2000, %v2024
        %v2029 = vadd.f32 %v2001, %v2025
        %v2030 = vadd.f32 %v2002, %v2026
        %2031 = vset.pattern.permute.xlu0 2
        %2032 = vperm.xlu0 %2031, %v423
        %v2033 = vpop.permute.xlu0 %2032
        %v2035 = vlaneseq
        %v2036 = vshrl.u32 %v2035, 7
        %v2037 = vsub.s32 2, %v2036
        %v2038 = vrot.slane %v1974, %v2037
        %v2039 = vlaneseq
        %v2040 = vshrl.u32 %v2039, 7
        %v2041 = vsub.s32 2, %v2040
        %v2042 = vrot.slane %v1975, %v2041
        %v2043 = vlaneseq
        %v2044 = vshrl.u32 %v2043, 7
        %v2045 = vsub.s32 2, %v2044
        %v2046 = vrot.slane %v1976, %v2045
        %v2047 = vlaneseq
        %v2048 = vshrl.u32 %v2047, 7
        %v2049 = vsub.s32 2, %v2048
        %v2050 = vrot.slane %v1977, %v2049
        %v2051 = vmul.f32 %v2033, %v2038
        %v2052 = vmul.f32 %v2033, %v2042
        %v2053 = vmul.f32 %v2033, %v2046
        %v2054 = vmul.f32 %v2033, %v2050
        %v2055 = vadd.f32 %v2027, %v2051
        %v2056 = vadd.f32 %v2028, %v2052
        %v2057 = vadd.f32 %v2029, %v2053
        %v2058 = vadd.f32 %v2030, %v2054
        %2059 = vset.pattern.permute.xlu0 3
        %2060 = vperm.xlu0 %2059, %v423
        %v2061 = vpop.permute.xlu0 %2060
        %v2063 = vlaneseq
        %v2064 = vshrl.u32 %v2063, 7
        %v2065 = vsub.s32 3, %v2064
        %v2066 = vrot.slane %v1974, %v2065
        %v2067 = vlaneseq
        %v2068 = vshrl.u32 %v2067, 7
        %v2069 = vsub.s32 3, %v2068
        %v2070 = vrot.slane %v1975, %v2069
        %v2071 = vlaneseq
        %v2072 = vshrl.u32 %v2071, 7
        %v2073 = vsub.s32 3, %v2072
        %v2074 = vrot.slane %v1976, %v2073
        %v2075 = vlaneseq
        %v2076 = vshrl.u32 %v2075, 7
        %v2077 = vsub.s32 3, %v2076
        %v2078 = vrot.slane %v1977, %v2077
        %v2079 = vmul.f32 %v2061, %v2066
        %v2080 = vmul.f32 %v2061, %v2070
        %v2081 = vmul.f32 %v2061, %v2074
        %v2082 = vmul.f32 %v2061, %v2078
        %v2083 = vadd.f32 %v2055, %v2079
        %v2084 = vadd.f32 %v2056, %v2080
        %v2085 = vadd.f32 %v2057, %v2081
        %v2086 = vadd.f32 %v2058, %v2082
        %2087 = vset.pattern.permute.xlu0 4
        %2088 = vperm.xlu0 %2087, %v423
        %v2089 = vpop.permute.xlu0 %2088
        %v2091 = vlaneseq
        %v2092 = vshrl.u32 %v2091, 7
        %v2093 = vsub.s32 4, %v2092
        %v2094 = vrot.slane %v1974, %v2093
        %v2095 = vlaneseq
        %v2096 = vshrl.u32 %v2095, 7
        %v2097 = vsub.s32 4, %v2096
        %v2098 = vrot.slane %v1975, %v2097
        %v2099 = vlaneseq
        %v2100 = vshrl.u32 %v2099, 7
        %v2101 = vsub.s32 4, %v2100
        %v2102 = vrot.slane %v1976, %v2101
        %v2103 = vlaneseq
        %v2104 = vshrl.u32 %v2103, 7
        %v2105 = vsub.s32 4, %v2104
        %v2106 = vrot.slane %v1977, %v2105
        %v2107 = vmul.f32 %v2089, %v2094
        %v2108 = vmul.f32 %v2089, %v2098
        %v2109 = vmul.f32 %v2089, %v2102
        %v2110 = vmul.f32 %v2089, %v2106
        %v2111 = vadd.f32 %v2083, %v2107
        %v2112 = vadd.f32 %v2084, %v2108
        %v2113 = vadd.f32 %v2085, %v2109
        %v2114 = vadd.f32 %v2086, %v2110
        %2115 = vset.pattern.permute.xlu0 5
        %2116 = vperm.xlu0 %2115, %v423
        %v2117 = vpop.permute.xlu0 %2116
        %v2119 = vlaneseq
        %v2120 = vshrl.u32 %v2119, 7
        %v2121 = vsub.s32 5, %v2120
        %v2122 = vrot.slane %v1974, %v2121
        %v2123 = vlaneseq
        %v2124 = vshrl.u32 %v2123, 7
        %v2125 = vsub.s32 5, %v2124
        %v2126 = vrot.slane %v1975, %v2125
        %v2127 = vlaneseq
        %v2128 = vshrl.u32 %v2127, 7
        %v2129 = vsub.s32 5, %v2128
        %v2130 = vrot.slane %v1976, %v2129
        %v2131 = vlaneseq
        %v2132 = vshrl.u32 %v2131, 7
        %v2133 = vsub.s32 5, %v2132
        %v2134 = vrot.slane %v1977, %v2133
        %v2135 = vmul.f32 %v2117, %v2122
        %v2136 = vmul.f32 %v2117, %v2126
        %v2137 = vmul.f32 %v2117, %v2130
        %v2138 = vmul.f32 %v2117, %v2134
        %v2139 = vadd.f32 %v2111, %v2135
        %v2140 = vadd.f32 %v2112, %v2136
        %v2141 = vadd.f32 %v2113, %v2137
        %v2142 = vadd.f32 %v2114, %v2138
        %2143 = vset.pattern.permute.xlu0 6
        %2144 = vperm.xlu0 %2143, %v423
        %v2145 = vpop.permute.xlu0 %2144
        %v2147 = vlaneseq
        %v2148 = vshrl.u32 %v2147, 7
        %v2149 = vsub.s32 6, %v2148
        %v2150 = vrot.slane %v1974, %v2149
        %v2151 = vlaneseq
        %v2152 = vshrl.u32 %v2151, 7
        %v2153 = vsub.s32 6, %v2152
        %v2154 = vrot.slane %v1975, %v2153
        %v2155 = vlaneseq
        %v2156 = vshrl.u32 %v2155, 7
        %v2157 = vsub.s32 6, %v2156
        %v2158 = vrot.slane %v1976, %v2157
        %v2159 = vlaneseq
        %v2160 = vshrl.u32 %v2159, 7
        %v2161 = vsub.s32 6, %v2160
        %v2162 = vrot.slane %v1977, %v2161
        %v2163 = vmul.f32 %v2145, %v2150
        %v2164 = vmul.f32 %v2145, %v2154
        %v2165 = vmul.f32 %v2145, %v2158
        %v2166 = vmul.f32 %v2145, %v2162
        %v2167 = vadd.f32 %v2139, %v2163
        %v2168 = vadd.f32 %v2140, %v2164
        %v2169 = vadd.f32 %v2141, %v2165
        %v2170 = vadd.f32 %v2142, %v2166
        %2171 = vset.pattern.permute.xlu0 7
        %2172 = vperm.xlu0 %2171, %v423
        %v2173 = vpop.permute.xlu0 %2172
        %v2175 = vlaneseq
        %v2176 = vshrl.u32 %v2175, 7
        %v2177 = vsub.s32 7, %v2176
        %v2178 = vrot.slane %v1974, %v2177
        %v2179 = vlaneseq
        %v2180 = vshrl.u32 %v2179, 7
        %v2181 = vsub.s32 7, %v2180
        %v2182 = vrot.slane %v1975, %v2181
        %v2183 = vlaneseq
        %v2184 = vshrl.u32 %v2183, 7
        %v2185 = vsub.s32 7, %v2184
        %v2186 = vrot.slane %v1976, %v2185
        %v2187 = vlaneseq
        %v2188 = vshrl.u32 %v2187, 7
        %v2189 = vsub.s32 7, %v2188
        %v2190 = vrot.slane %v1977, %v2189
        %v2191 = vmul.f32 %v2173, %v2178
        %v2192 = vmul.f32 %v2173, %v2182
        %v2193 = vmul.f32 %v2173, %v2186
        %v2194 = vmul.f32 %v2173, %v2190
        %v2195 = vadd.f32 %v2167, %v2191
        %v2196 = vadd.f32 %v2168, %v2192
        %v2197 = vadd.f32 %v2169, %v2193
        %v2198 = vadd.f32 %v2170, %v2194
        %2200 = vset.pattern.permute.xlu0 0
        %2201 = vperm.xlu0 %2200, %v424
        %v2202 = vpop.permute.xlu0 %2201
        %v2204 = vadd.f32 %v2195, %v2202
        %v2205 = vadd.f32 %v2196, %v2202
        %v2206 = vadd.f32 %v2197, %v2202
        %v2207 = vadd.f32 %v2198, %v2202
        %vm2208 = vcmp.gt.f32.partialorder %v2204, 0.0
        %vm2209 = vcmp.gt.f32.partialorder %v2205, 0.0
        %vm2210 = vcmp.gt.f32.partialorder %v2206, 0.0
        %vm2211 = vcmp.gt.f32.partialorder %v2207, 0.0
        %v2212 = vmin.f32 %v2204, 0.0
        %v2213 = vmin.f32 %v2205, 0.0
        %v2214 = vmin.f32 %v2206, 0.0
        %v2215 = vmin.f32 %v2207, 0.0
        %v2216 = vmul.f32 %v2212, 1.442695
        %v2217 = vpow.pop %v2216
        %v2218 = vmul.f32 %v2213, 1.442695
        %v2219 = vpow.pop %v2218
        %v2220 = vmul.f32 %v2214, 1.442695
        %v2221 = vpow.pop %v2220
        %v2222 = vmul.f32 %v2215, 1.442695
        %v2223 = vpow.pop %v2222
        %v2224 = vsub.f32 %v2217, 1.0
        %v2225 = vsub.f32 %v2219, 1.0
        %v2226 = vsub.f32 %v2221, 1.0
        %v2227 = vsub.f32 %v2223, 1.0
        %v2228 = vsel %vm2208, %v2204, %v2224
        %v2229 = vsel %vm2209, %v2205, %v2225
        %v2230 = vsel %vm2210, %v2206, %v2226
        %v2231 = vsel %vm2211, %v2207, %v2227
        %2233 = vset.pattern.permute.xlu0 0
        %2234 = vperm.xlu0 %2233, %v425
        %v2235 = vpop.permute.xlu0 %2234
        %v2237 = vlaneseq
        %v2238 = vshrl.u32 %v2237, 7
        %v2239 = vsub.s32 0, %v2238
        %v2240 = vrot.slane %v2228, %v2239
        %v2241 = vlaneseq
        %v2242 = vshrl.u32 %v2241, 7
        %v2243 = vsub.s32 0, %v2242
        %v2244 = vrot.slane %v2229, %v2243
        %v2245 = vlaneseq
        %v2246 = vshrl.u32 %v2245, 7
        %v2247 = vsub.s32 0, %v2246
        %v2248 = vrot.slane %v2230, %v2247
        %v2249 = vlaneseq
        %v2250 = vshrl.u32 %v2249, 7
        %v2251 = vsub.s32 0, %v2250
        %v2252 = vrot.slane %v2231, %v2251
        %v2253 = vmul.f32 %v2235, %v2240
        %v2254 = vmul.f32 %v2235, %v2244
        %v2255 = vmul.f32 %v2235, %v2248
        %v2256 = vmul.f32 %v2235, %v2252
        %2257 = vset.pattern.permute.xlu0 1
        %2258 = vperm.xlu0 %2257, %v425
        %v2259 = vpop.permute.xlu0 %2258
        %v2261 = vlaneseq
        %v2262 = vshrl.u32 %v2261, 7
        %v2263 = vsub.s32 1, %v2262
        %v2264 = vrot.slane %v2228, %v2263
        %v2265 = vlaneseq
        %v2266 = vshrl.u32 %v2265, 7
        %v2267 = vsub.s32 1, %v2266
        %v2268 = vrot.slane %v2229, %v2267
        %v2269 = vlaneseq
        %v2270 = vshrl.u32 %v2269, 7
        %v2271 = vsub.s32 1, %v2270
        %v2272 = vrot.slane %v2230, %v2271
        %v2273 = vlaneseq
        %v2274 = vshrl.u32 %v2273, 7
        %v2275 = vsub.s32 1, %v2274
        %v2276 = vrot.slane %v2231, %v2275
        %v2277 = vmul.f32 %v2259, %v2264
        %v2278 = vmul.f32 %v2259, %v2268
        %v2279 = vmul.f32 %v2259, %v2272
        %v2280 = vmul.f32 %v2259, %v2276
        %v2281 = vadd.f32 %v2253, %v2277
        %v2282 = vadd.f32 %v2254, %v2278
        %v2283 = vadd.f32 %v2255, %v2279
        %v2284 = vadd.f32 %v2256, %v2280
        %2285 = vset.pattern.permute.xlu0 2
        %2286 = vperm.xlu0 %2285, %v425
        %v2287 = vpop.permute.xlu0 %2286
        %v2289 = vlaneseq
        %v2290 = vshrl.u32 %v2289, 7
        %v2291 = vsub.s32 2, %v2290
        %v2292 = vrot.slane %v2228, %v2291
        %v2293 = vlaneseq
        %v2294 = vshrl.u32 %v2293, 7
        %v2295 = vsub.s32 2, %v2294
        %v2296 = vrot.slane %v2229, %v2295
        %v2297 = vlaneseq
        %v2298 = vshrl.u32 %v2297, 7
        %v2299 = vsub.s32 2, %v2298
        %v2300 = vrot.slane %v2230, %v2299
        %v2301 = vlaneseq
        %v2302 = vshrl.u32 %v2301, 7
        %v2303 = vsub.s32 2, %v2302
        %v2304 = vrot.slane %v2231, %v2303
        %v2305 = vmul.f32 %v2287, %v2292
        %v2306 = vmul.f32 %v2287, %v2296
        %v2307 = vmul.f32 %v2287, %v2300
        %v2308 = vmul.f32 %v2287, %v2304
        %v2309 = vadd.f32 %v2281, %v2305
        %v2310 = vadd.f32 %v2282, %v2306
        %v2311 = vadd.f32 %v2283, %v2307
        %v2312 = vadd.f32 %v2284, %v2308
        %2313 = vset.pattern.permute.xlu0 3
        %2314 = vperm.xlu0 %2313, %v425
        %v2315 = vpop.permute.xlu0 %2314
        %v2317 = vlaneseq
        %v2318 = vshrl.u32 %v2317, 7
        %v2319 = vsub.s32 3, %v2318
        %v2320 = vrot.slane %v2228, %v2319
        %v2321 = vlaneseq
        %v2322 = vshrl.u32 %v2321, 7
        %v2323 = vsub.s32 3, %v2322
        %v2324 = vrot.slane %v2229, %v2323
        %v2325 = vlaneseq
        %v2326 = vshrl.u32 %v2325, 7
        %v2327 = vsub.s32 3, %v2326
        %v2328 = vrot.slane %v2230, %v2327
        %v2329 = vlaneseq
        %v2330 = vshrl.u32 %v2329, 7
        %v2331 = vsub.s32 3, %v2330
        %v2332 = vrot.slane %v2231, %v2331
        %v2333 = vmul.f32 %v2315, %v2320
        %v2334 = vmul.f32 %v2315, %v2324
        %v2335 = vmul.f32 %v2315, %v2328
        %v2336 = vmul.f32 %v2315, %v2332
        %v2337 = vadd.f32 %v2309, %v2333
        %v2338 = vadd.f32 %v2310, %v2334
        %v2339 = vadd.f32 %v2311, %v2335
        %v2340 = vadd.f32 %v2312, %v2336
        %2341 = vset.pattern.permute.xlu0 4
        %2342 = vperm.xlu0 %2341, %v425
        %v2343 = vpop.permute.xlu0 %2342
        %v2345 = vlaneseq
        %v2346 = vshrl.u32 %v2345, 7
        %v2347 = vsub.s32 4, %v2346
        %v2348 = vrot.slane %v2228, %v2347
        %v2349 = vlaneseq
        %v2350 = vshrl.u32 %v2349, 7
        %v2351 = vsub.s32 4, %v2350
        %v2352 = vrot.slane %v2229, %v2351
        %v2353 = vlaneseq
        %v2354 = vshrl.u32 %v2353, 7
        %v2355 = vsub.s32 4, %v2354
        %v2356 = vrot.slane %v2230, %v2355
        %v2357 = vlaneseq
        %v2358 = vshrl.u32 %v2357, 7
        %v2359 = vsub.s32 4, %v2358
        %v2360 = vrot.slane %v2231, %v2359
        %v2361 = vmul.f32 %v2343, %v2348
        %v2362 = vmul.f32 %v2343, %v2352
        %v2363 = vmul.f32 %v2343, %v2356
        %v2364 = vmul.f32 %v2343, %v2360
        %v2365 = vadd.f32 %v2337, %v2361
        %v2366 = vadd.f32 %v2338, %v2362
        %v2367 = vadd.f32 %v2339, %v2363
        %v2368 = vadd.f32 %v2340, %v2364
        %2369 = vset.pattern.permute.xlu0 5
        %2370 = vperm.xlu0 %2369, %v425
        %v2371 = vpop.permute.xlu0 %2370
        %v2373 = vlaneseq
        %v2374 = vshrl.u32 %v2373, 7
        %v2375 = vsub.s32 5, %v2374
        %v2376 = vrot.slane %v2228, %v2375
        %v2377 = vlaneseq
        %v2378 = vshrl.u32 %v2377, 7
        %v2379 = vsub.s32 5, %v2378
        %v2380 = vrot.slane %v2229, %v2379
        %v2381 = vlaneseq
        %v2382 = vshrl.u32 %v2381, 7
        %v2383 = vsub.s32 5, %v2382
        %v2384 = vrot.slane %v2230, %v2383
        %v2385 = vlaneseq
        %v2386 = vshrl.u32 %v2385, 7
        %v2387 = vsub.s32 5, %v2386
        %v2388 = vrot.slane %v2231, %v2387
        %v2389 = vmul.f32 %v2371, %v2376
        %v2390 = vmul.f32 %v2371, %v2380
        %v2391 = vmul.f32 %v2371, %v2384
        %v2392 = vmul.f32 %v2371, %v2388
        %v2393 = vadd.f32 %v2365, %v2389
        %v2394 = vadd.f32 %v2366, %v2390
        %v2395 = vadd.f32 %v2367, %v2391
        %v2396 = vadd.f32 %v2368, %v2392
        %2397 = vset.pattern.permute.xlu0 6
        %2398 = vperm.xlu0 %2397, %v425
        %v2399 = vpop.permute.xlu0 %2398
        %v2401 = vlaneseq
        %v2402 = vshrl.u32 %v2401, 7
        %v2403 = vsub.s32 6, %v2402
        %v2404 = vrot.slane %v2228, %v2403
        %v2405 = vlaneseq
        %v2406 = vshrl.u32 %v2405, 7
        %v2407 = vsub.s32 6, %v2406
        %v2408 = vrot.slane %v2229, %v2407
        %v2409 = vlaneseq
        %v2410 = vshrl.u32 %v2409, 7
        %v2411 = vsub.s32 6, %v2410
        %v2412 = vrot.slane %v2230, %v2411
        %v2413 = vlaneseq
        %v2414 = vshrl.u32 %v2413, 7
        %v2415 = vsub.s32 6, %v2414
        %v2416 = vrot.slane %v2231, %v2415
        %v2417 = vmul.f32 %v2399, %v2404
        %v2418 = vmul.f32 %v2399, %v2408
        %v2419 = vmul.f32 %v2399, %v2412
        %v2420 = vmul.f32 %v2399, %v2416
        %v2421 = vadd.f32 %v2393, %v2417
        %v2422 = vadd.f32 %v2394, %v2418
        %v2423 = vadd.f32 %v2395, %v2419
        %v2424 = vadd.f32 %v2396, %v2420
        %2425 = vset.pattern.permute.xlu0 7
        %2426 = vperm.xlu0 %2425, %v425
        %v2427 = vpop.permute.xlu0 %2426
        %v2429 = vlaneseq
        %v2430 = vshrl.u32 %v2429, 7
        %v2431 = vsub.s32 7, %v2430
        %v2432 = vrot.slane %v2228, %v2431
        %v2433 = vlaneseq
        %v2434 = vshrl.u32 %v2433, 7
        %v2435 = vsub.s32 7, %v2434
        %v2436 = vrot.slane %v2229, %v2435
        %v2437 = vlaneseq
        %v2438 = vshrl.u32 %v2437, 7
        %v2439 = vsub.s32 7, %v2438
        %v2440 = vrot.slane %v2230, %v2439
        %v2441 = vlaneseq
        %v2442 = vshrl.u32 %v2441, 7
        %v2443 = vsub.s32 7, %v2442
        %v2444 = vrot.slane %v2231, %v2443
        %v2445 = vmul.f32 %v2427, %v2432
        %v2446 = vmul.f32 %v2427, %v2436
        %v2447 = vmul.f32 %v2427, %v2440
        %v2448 = vmul.f32 %v2427, %v2444
        %v2449 = vadd.f32 %v2421, %v2445
        %v2450 = vadd.f32 %v2422, %v2446
        %v2451 = vadd.f32 %v2423, %v2447
        %v2452 = vadd.f32 %v2424, %v2448
        %2454 = vset.pattern.permute.xlu0 0
        %2455 = vperm.xlu0 %2454, %v426
        %v2456 = vpop.permute.xlu0 %2455
        %v2458 = vadd.f32 %v2449, %v2456
        %v2459 = vadd.f32 %v2450, %v2456
        %v2460 = vadd.f32 %v2451, %v2456
        %v2461 = vadd.f32 %v2452, %v2456
        %v2462 = vmul.f32 %v2458, %v2458
        %v2463 = vmul.f32 %v2459, %v2459
        %v2464 = vmul.f32 %v2460, %v2460
        %v2465 = vmul.f32 %v2461, %v2461
        %v2470 = vrot.slane %v2462, 1
        %v2471 = vrot.slane %v2463, 1
        %v2472 = vrot.slane %v2464, 1
        %v2473 = vrot.slane %v2465, 1
        %v2478 = vadd.f32 %v2462, %v2470
        %v2479 = vadd.f32 %v2463, %v2471
        %v2480 = vadd.f32 %v2464, %v2472
        %v2481 = vadd.f32 %v2465, %v2473
        %v2486 = vrot.slane %v2458, 2
        %v2487 = vrot.slane %v2459, 2
        %v2488 = vrot.slane %v2460, 2
        %v2489 = vrot.slane %v2461, 2
        %v2494 = vmul.f32 %v2458, %v2486
        %v2495 = vmul.f32 %v2459, %v2487
        %v2496 = vmul.f32 %v2460, %v2488
        %v2497 = vmul.f32 %v2461, %v2489
        %v2502 = vrot.slane %v2494, 1
        %v2503 = vrot.slane %v2495, 1
        %v2504 = vrot.slane %v2496, 1
        %v2505 = vrot.slane %v2497, 1
        %v2510 = vadd.f32 %v2494, %v2502
        %v2511 = vadd.f32 %v2495, %v2503
        %v2512 = vadd.f32 %v2496, %v2504
        %v2513 = vadd.f32 %v2497, %v2505
        %v2514 = vmul.f32 %v2478, %v1920
        %v2515 = vmul.f32 %v2479, %v1921
        %v2516 = vmul.f32 %v2480, %v1922
        %v2517 = vmul.f32 %v2481, %v1923
        %v2522 = vrot.slane %v1920, 1
        %v2523 = vrot.slane %v1921, 1
        %v2524 = vrot.slane %v1922, 1
        %v2525 = vrot.slane %v1923, 1
        %v2530 = vmul.f32 %v2510, %v2522
        %v2531 = vmul.f32 %v2511, %v2523
        %v2532 = vmul.f32 %v2512, %v2524
        %v2533 = vmul.f32 %v2513, %v2525
        %v2534 = vadd.f32 %v2514, %v2530
        %v2535 = vadd.f32 %v2515, %v2531
        %v2536 = vadd.f32 %v2516, %v2532
        %v2537 = vadd.f32 %v2517, %v2533
        %v2538 = vmul.f32 %v2510, %v1920
        %v2539 = vmul.f32 %v2511, %v1921
        %v2540 = vmul.f32 %v2512, %v1922
        %v2541 = vmul.f32 %v2513, %v1923
        %v2542 = vrot.slane %v1920, 7
        %v2543 = vrot.slane %v1921, 7
        %v2544 = vrot.slane %v1922, 7
        %v2545 = vrot.slane %v1923, 7
        %v2550 = vmul.f32 %v2478, %v2542
        %v2551 = vmul.f32 %v2479, %v2543
        %v2552 = vmul.f32 %v2480, %v2544
        %v2553 = vmul.f32 %v2481, %v2545
        %v2558 = vrot.slane %v2550, 2
        %v2559 = vrot.slane %v2551, 2
        %v2560 = vrot.slane %v2552, 2
        %v2561 = vrot.slane %v2553, 2
        %v2566 = vadd.f32 %v2538, %v2558
        %v2567 = vadd.f32 %v2539, %v2559
        %v2568 = vadd.f32 %v2540, %v2560
        %v2569 = vadd.f32 %v2541, %v2561
        %vm2570 = vcmp.eq.s32.totalorder %v428, 0
        %v2571 = vlaneseq
        %v2572 = vshrl.u32 %v2571, 7
        %v2573 = vsub.s32 0, %v2572
        %v2574 = vrot.slane %v2534, %v2573
        %v2575 = vlaneseq
        %v2576 = vshrl.u32 %v2575, 7
        %v2577 = vsub.s32 0, %v2576
        %v2578 = vrot.slane %v2535, %v2577
        %v2579 = vlaneseq
        %v2580 = vshrl.u32 %v2579, 7
        %v2581 = vsub.s32 0, %v2580
        %v2582 = vrot.slane %v2536, %v2581
        %v2583 = vlaneseq
        %v2584 = vshrl.u32 %v2583, 7
        %v2585 = vsub.s32 0, %v2584
        %v2586 = vrot.slane %v2537, %v2585
        %v2587 = vlaneseq
        %v2588 = vshrl.u32 %v2587, 7
        %v2589 = vsub.s32 0, %v2588
        %v2590 = vrot.slane %v2566, %v2589
        %v2591 = vlaneseq
        %v2592 = vshrl.u32 %v2591, 7
        %v2593 = vsub.s32 0, %v2592
        %v2594 = vrot.slane %v2567, %v2593
        %v2595 = vlaneseq
        %v2596 = vshrl.u32 %v2595, 7
        %v2597 = vsub.s32 0, %v2596
        %v2598 = vrot.slane %v2568, %v2597
        %v2599 = vlaneseq
        %v2600 = vshrl.u32 %v2599, 7
        %v2601 = vsub.s32 0, %v2600
        %v2602 = vrot.slane %v2569, %v2601
        %v2603 = vsel %vm2570, %v2574, %v2590
        %v2604 = vsel %vm2570, %v2578, %v2594
        %v2605 = vsel %vm2570, %v2582, %v2598
        %v2606 = vsel %vm2570, %v2586, %v2602
        %v2611 = vcombine.low %v2603, %v2604
        %v2612 = vcombine.low %v2605, %v2606
        %v2614 = vunpack.c.l.s4 1983009808
        %v2615 = vunpack.c.0.s8 %v2614
        %v2616 = vlaneseq
        %v2617 = vshrl.u32 %v2616, 7
        %v2618 = vsub.s32 %v2615, %v2617
        %v2619 = vrot.slane %v2611, %v2618
        %v2621 = vunpack.c.l.s4 1983009808
        %v2622 = vunpack.c.0.s8 %v2621
        %v2623 = vlaneseq
        %v2624 = vshrl.u32 %v2623, 7
        %v2625 = vsub.s32 %v2622, %v2624
        %v2626 = vrot.slane %v2612, %v2625
        %v2627 = vcombine.low %v2619, %v2626
        %2629 = vst [vmem:[%s406] sm:$0xff] %v2627
        %s2630 = sand.u32 %s291, 1
        %s2631 = scalar_lea.sflag [#allocation3], %s2630
        %s2632 = sand.u32 %s291, 1
        %s2633 = smul.addr %s2632, 8
        %s2634 = scalar_lea.vmem [#allocation2], %s2633
        // Predicated region
        $region69: #{tpu_custom_call.1} parent=67 // pred_check
          %p2635 = pneg %p301
        $region70: #{tpu_custom_call.1} parent=67 // pred_check_branch
          %2637 = sbr.rel (%p2635) target = $region72
        $region71: #{tpu_custom_call.1} parent=67 // pred_region
          %s2639 = ssub.s32 128, 128
          %2640 = vsyncadd %s2631, %s2639
          %s2641 = smul.addr %s26, 4
          %s2642 = smul.addr %s2641, 32
          %s2643 = scalar_lea.hbm %s12, %s2642
          %s2645 = sshll.u32 %s2634, 4
          %s2646 = int_to_ptr.vmem [resolvable:$true] %s2645
          %2648 = dma.vmem_to_hbm [thread:$0]  %s2646, 128, %s2643, %s2631
        $region72: #{tpu_custom_call.1} parent=67 // pred_fallthru
          _
      $region68: #{tpu_custom_call.1} parent=5 // pred_fallthru
        _
      %p2649 = scmp.le.s32.totalorder 2, %s21
      // Predicated region
      $region73: #{tpu_custom_call.1} parent=5 // pred_check
        %p2650 = pneg %p2649
      $region74: #{tpu_custom_call.1} parent=5 // pred_check_branch
        %2652 = sbr.rel (%p2650) target = $region76
      $region75: #{tpu_custom_call.1} parent=5 // pred_region
        %s2653 = ssub.s32 %s21, 2
        // Predicated region
        $region77: #{tpu_custom_call.1} parent=75 // pred_check
          %p2654 = pneg %p307
        $region78: #{tpu_custom_call.1} parent=75 // pred_check_branch
          %2656 = sbr.rel (%p2654) target = $region80
        $region79: #{tpu_custom_call.1} parent=75 // pred_region
          %s2657 = sand.u32 %s292, 1
          %s2658 = scalar_lea.sflag [#allocation3], %s2657
          %s2659 = sand.u32 %s292, 1
          %s2660 = smul.addr %s2659, 8
          %s2661 = scalar_lea.vmem [#allocation2], %s2660
          %2662 = dma.done %s2658, 128
        $region80: #{tpu_custom_call.1} parent=75 // pred_fallthru
          _
      $region76: #{tpu_custom_call.1} parent=5 // pred_fallthru
        _
    $region6: #{tpu_custom_call.1} parent=1 // loop_footer
      %s25 = sadd.s32 1, %s21
    $region7: #{tpu_custom_call.1} parent=1 // loop_footer_branch
      %20 = sbr.rel target = $region3
    $region8: #{tpu_custom_call.1} parent=1 // loop_exit
      _
    %2663 = vsyncpa [#allocation3], 1
    %s2664 = scalar_lea.sflag [#allocation3], 1
    %2665 = vsyncpa %s2664, 1

</llo_original>
